<compile_context>
chip_gen: v6e
topology: v6e:2x2x1
jax: 0.10.0
libtpu: 0.0.40
codegen_flags: <defaults>
</compile_context>

<pallas_src>
import numpy as np
import jax
import jax.numpy as jnp
from jax.experimental import pallas as pl
from jax.experimental.pallas import tpu as pltpu

# ----------------------------- configuration --------------------------------
F_NODE = 4                      # len(args.node_features_name)
HIDDEN_SIZES = [16, 16, 16]     # args.hidden_sizes
HEADS = [1, 1, 1]               # args.heads
GRAPH_POOLED_DIM = 32           # args.graph_pooled_dim
K_SORTPOOL = 10                 # args.k
CONV1D_CHANNELS = [16, 32]
CONV1D_KWS = [GRAPH_POOLED_DIM, 5]

_DENSE_PRE = int((K_SORTPOOL - 2) / 2 + 1)                     # after maxpool1d(2,2)
DENSE_DIM = (_DENSE_PRE - CONV1D_KWS[1] + 1) * CONV1D_CHANNELS[1]

_VMEM = pl.BlockSpec(memory_space=pltpu.MemorySpace.VMEM)


# ------------------------------ fused Pallas kernel --------------------------
def graph_encoder_kernel(a_ref, x_ref,
                         wg1_ref, bg1_ref, wg2_ref, bg2_ref, wg3_ref, bg3_ref,
                         sg_ref, gsel_ref, rrep_ref, srep_ref, sseg_ref, jmod_ref,
                         w1t_ref, b1_ref, esel_ref, osel_ref, w2tap_ref, b2_ref,
                         wl_ref, bl_ref, o_ref):
    f32 = jnp.float32
    a = a_ref[...]                                        # (N, N) normalized adjacency

    # ---------------- 3 fused GCN layers: relu(Ahat @ (h @ W) + b) ----------------
    h = jnp.dot(x_ref[...], wg1_ref[...], preferred_element_type=f32)
    h = jnp.maximum(jnp.dot(a, h, preferred_element_type=f32) + bg1_ref[...], 0.0)
    h = jnp.dot(h, wg2_ref[...], preferred_element_type=f32)
    h = jnp.maximum(jnp.dot(a, h, preferred_element_type=f32) + bg2_ref[...], 0.0)
    h = jnp.dot(h, wg3_ref[...], preferred_element_type=f32)
    h3 = jnp.dot(a, h, preferred_element_type=f32) + bg3_ref[...]          # (N, D)

    n = h3.shape[0]
    d = h3.shape[1]

    # ---------------- SortPooling: node selection (no lax.sort) ----------------
    # As in the PyTorch module: key[m] = node m's max feature; within each graph the
    # nodes are ranked ASCENDING by key (ties -> node index) and the FIRST k are kept;
    # graphs with < k nodes get zero-padded rows (all-zero selection rows do that).
    keyc = jnp.max(h3, axis=-1, keepdims=True)                             # (N, 1)
    row_i = jax.lax.broadcasted_iota(jnp.int32, (n, n), 0)
    col_i = jax.lax.broadcasted_iota(jnp.int32, (n, n), 1)
    keyr = jnp.sum(jnp.where(row_i == col_i, keyc, 0.0),
                   axis=0, keepdims=True)                                  # keyc^T -> (1, N)
    before_n = (keyc < keyr) | ((keyc == keyr) & (row_i < col_i))          # m strictly before n'
    rank = jnp.sum(jnp.where(before_n, sg_ref[...], 0.0),
                   axis=0, keepdims=True)                                  # (1, N) in-graph rank
    sel = jnp.where(rank == rrep_ref[...], gsel_ref[...], 0.0)             # (B*k, N) one-hot rows
    sp = jnp.dot(sel, h3, preferred_element_type=f32)                      # (B*k, D) selected nodes

    # ---------------- per-row ASCENDING feature sort (rank / one-hot) ----------------
    qd = srep_ref.shape[0]                                                 # B*k*D
    rows = jnp.dot(srep_ref[...], sp, preferred_element_type=f32)          # (Q*D, D): row q repeated D times
    kidx = jax.lax.broadcasted_iota(jnp.int32, (qd, d), 1)                 # lane index k
    jmod = jmod_ref[...]                                                   # (Q*D, 1): j = row % D
    vj = jnp.sum(jnp.where(kidx == jmod, rows, 0.0),
                 axis=-1, keepdims=True)                                   # value of element j
    before_f = (rows < vj) | ((rows == vj) & (kidx < jmod))                # element k strictly before j
    frank = jnp.sum(before_f.astype(jnp.int32), axis=-1, keepdims=True)    # (Q*D, 1) rank of element j
    scat = jnp.where(frank == kidx, vj, 0.0)                               # scatter value j to its rank slot
    sp_sorted = jnp.dot(sseg_ref[...], scat, preferred_element_type=f32)   # (B*k, D) rows sorted ascending

    # ---------------- DGCNN 1-D conv head ----------------
    # Conv1d(1, C1, D, stride=D) over the flattened (k*D) sequence == per-time-step matmul.
    y1 = jnp.maximum(jnp.dot(sp_sorted, w1t_ref[...], preferred_element_type=f32)
                     + b1_ref[...], 0.0)                                   # (B*k, C1)

    # MaxPool1d(2,2) + Conv1d(C1, C2, K2, 1) fused as K2 row-pair selections + tap matmuls.
    # For this config the conv2 output length is 1, so there is no output-position loop.
    k2 = esel_ref.shape[0]
    bsz = esel_ref.shape[1]
    c2 = w2tap_ref.shape[2]
    acc = jnp.zeros((bsz, c2), f32)
    for t in range(k2):                                                    # static trip count -> unrolled
        pooled_t = jnp.maximum(
            jnp.dot(esel_ref[t], y1, preferred_element_type=f32),
            jnp.dot(osel_ref[t], y1, preferred_element_type=f32))          # (B, C1) maxpool @ time t
        acc = acc + jnp.dot(pooled_t, w2tap_ref[t], preferred_element_type=f32)
    y2 = jnp.maximum(acc + b2_ref[...], 0.0)                               # (B, C2) == flatten (L2 == 1)

    out = jnp.dot(y2, wl_ref[...], preferred_element_type=f32) + bl_ref[...]
    o_ref[...] = jnp.maximum(out, 0.0)                                     # (B, graph_pooled_dim)


def graph_encoder_forward(ahat, x, params, consts):
    (wg1, bg1, wg2, bg2, wg3, bg3, w1t, b1, w2tap, b2, wl, bl) = params
    (sg, gsel, rrep, srep, sseg, jmod, esel, osel) = consts
    b_sz, p_dim = esel.shape[1], wl.shape[1]
    # TODO(synk): for large N, add a grid (row-tiled Ahat, "parallel" axis for the 2nd v7x
    # TensorCore) and bf16-cast Ahat; untiled whole-array VMEM is fine at these sizes.
    return pl.pallas_call(
        graph_encoder_kernel,
        out_shape=jax.ShapeDtypeStruct((b_sz, p_dim), jnp.float32),
        in_specs=[_VMEM] * 22,
        out_specs=_VMEM,
    )(ahat, x, wg1, bg1, wg2, bg2, wg3, bg3,
      sg, gsel, rrep, srep, sseg, jmod,
      w1t, b1, esel, osel, w2tap, b2, wl, bl)


# ------------------------------ host-side constants --------------------------
def build_ahat(edges, n):
    """Dense GCNConv normalization: D^-1/2 (A + I) D^-1/2 (message src -> dst)."""
    a = np.zeros((n, n), np.float32)
    for s, t in edges:
        a[t, s] = 1.0
    a += np.eye(n, dtype=np.float32)
    deg = a.sum(axis=1)
    dinv = 1.0 / np.sqrt(deg)
    return jnp.asarray(dinv[:, None] * a * dinv[None, :])


def build_constants(batch_np, k, d, k2):
    """0/1 selection matrices that let the kernel do sortpooling / pooling with matmuls."""
    n = batch_np.shape[0]
    b = int(batch_np.max()) + 1
    q = b * k
    assert k % 2 == 0, "maxpool row pairing assumes even k"
    kp = k // 2
    assert kp - k2 + 1 == 1, "head constants assume conv2 output length 1 (the fixed config)"

    sg = (batch_np[:, None] == batch_np[None, :]).astype(np.float32)       # same-graph mask (N, N)
    gsel = np.zeros((q, n), np.float32)                                    # graph membership, row b*k+r
    rrep = np.zeros((q, 1), np.float32)                                    # rank wanted by row b*k+r
    for bi in range(b):
        for r in range(k):
            gsel[bi * k + r] = (batch_np == bi)
            rrep[bi * k + r, 0] = r
    srep = np.zeros((q * d, q), np.float32)                                # repeat each row D times
    sseg = np.zeros((q, q * d), np.float32)                                # segment-sum back to Q rows
    for qi in range(q):
        srep[qi * d:(qi + 1) * d, qi] = 1.0
        sseg[qi, qi * d:(qi + 1) * d] = 1.0
    jmod = (np.arange(q * d) % d).astype(np.int32).reshape(q * d, 1)       # element index j per row
    esel = np.zeros((k2, b, q), np.float32)                                # even row of maxpool pair
    osel = np.zeros((k2, b, q), np.float32)                                # odd  row of maxpool pair
    for t in range(k2):
        for bi in range(b):
            esel[t, bi, bi * k + 2 * t] = 1.0
            osel[t, bi, bi * k + 2 * t + 1] = 1.0
    return tuple(jnp.asarray(c) for c in (sg, gsel, rrep, srep, sseg, jmod, esel, osel))


# ------------------------------ pure-JAX reference ---------------------------
def gcn_ref(ahat, x, w, b, relu):
    out = ahat @ (x @ w) + b
    return jnp.maximum(out, 0.0) if relu else out


def sortpooling_ref(feat, batch_np, batch_size, k):
    """Mirrors GraphEncoder.sortpooling_embedding op-by-op (ascending feature sort per node;
    nodes of each graph ordered ASCENDING by their max feature; first k kept; zero-pad after)."""
    feat = jnp.sort(feat, axis=-1)
    d = feat.shape[-1]
    rets = []
    for i in range(batch_size):
        idx = np.nonzero(batch_np == i)[0]
        cur = feat[idx]
        order = jnp.argsort(cur[:, -1])        # == torch.sort(flip(cur,1), dim=0).indices[:, 0]
        srt = cur[order]
        n_i = cur.shape[0]
        if n_i >= k:
            rets.append(srt[:k])
        else:
            rets.append(jnp.concatenate([srt, jnp.zeros((k - n_i, d), feat.dtype)], axis=0))
    return jnp.stack(rets, axis=0)             # (B, k, D)


def head_ref(sp, w1t, b1, w2t, b2, wl, bl):
    B, k, D = sp.shape
    C1, C2, K2 = w1t.shape[1], w2t.shape[1], CONV1D_KWS[1]
    y1 = jnp.maximum(sp.reshape(B * k, D) @ w1t + b1, 0.0).reshape(B, k, C1)
    kp = k // 2
    yp = jnp.maximum(y1[:, 0:2 * kp:2, :], y1[:, 1:2 * kp:2, :])
    L2 = kp - K2 + 1
    outs = [yp[:, t:t + K2, :].reshape(B, K2 * C1) @ w2t + b2 for t in range(L2)]
    y2 = jnp.maximum(jnp.stack(outs, axis=-1), 0.0).reshape(B, C2 * L2)
    return jnp.maximum(y2 @ wl + bl, 0.0)


# ------------------------------ main -----------------------------------------
if __name__ == "__main__":
    B = 2
    graph_sizes = [12, 8]                           # second graph exercises k-padding
    N = sum(graph_sizes)
    batch_np = np.concatenate([np.full(n, i, np.int64) for i, n in enumerate(graph_sizes)])

    # deterministic edges: ring within each graph (both directions) + a chord each
    def ring_edges(start, n):
        e = []
        for i in range(n):
            a, b = start + i, start + (i + 1) % n
            e += [(a, b), (b, a)]
        return e
    edges = (ring_edges(0, graph_sizes[0]) + ring_edges(graph_sizes[0], graph_sizes[1])
             + [(0, 6), (6, 0), (12, 16), (16, 12)])
    ahat = build_ahat(edges, N)

    # deterministic parameters
    key = jax.random.PRNGKey(0)
    ks = jax.random.split(key, 16)

    def glorot(k_, shape):
        fan_in, fan_out = shape[0], shape[-1]
        lim = float(np.sqrt(6.0 / (fan_in + fan_out)))
        return jax.random.uniform(k_, shape, jnp.float32, -lim, lim)

    d1 = HIDDEN_SIZES[0] * HEADS[0]
    d2 = HIDDEN_SIZES[1] * HEADS[1]
    Wg1, bg1 = glorot(ks[0], (F_NODE, d1)), 0.01 * jax.random.normal(ks[1], (1, d1))
    Wg2, bg2 = glorot(ks[2], (d1, d2)), 0.01 * jax.random.normal(ks[3], (1, d2))
    Wg3, bg3 = glorot(ks[4], (d2, GRAPH_POOLED_DIM)), 0.01 * jax.random.normal(ks[5], (1, GRAPH_POOLED_DIM))

    C1, C2, K2, D = CONV1D_CHANNELS[0], CONV1D_CHANNELS[1], CONV1D_KWS[1], GRAPH_POOLED_DIM
    # Conv1d(1, C1, D, stride=D): weight (C1,1,D) -> stored pre-transposed as (D, C1)
    W1t = glorot(ks[6], (D, C1))
    b1 = 0.01 * jax.random.normal(ks[7], (1, C1))
    # Conv1d(C1, C2, K2, 1): weight (C2,C1,K2)
    W2 = glorot(ks[8], (C2, C1, K2))
    W2t = jnp.transpose(W2, (2, 1, 0)).reshape(K2 * C1, C2)   # (tap*C1+c1, c2) for the reference
    w2tap = jnp.transpose(W2, (2, 1, 0))                       # (K2, C1, C2)     for the kernel
    b2 = 0.01 * jax.random.normal(ks[9], (1, C2))
    # Linear(dense_dim, graph_pooled_dim): stored as (dense_dim, P)
    Wl = glorot(ks[10], (DENSE_DIM, GRAPH_POOLED_DIM))
    bl = 0.01 * jax.random.normal(ks[11], (1, GRAPH_POOLED_DIM))

    # input node features  x: (N, F_NODE)
    x = jax.random.normal(ks[12], (N, F_NODE), jnp.float32)

    consts = build_constants(batch_np, K_SORTPOOL, GRAPH_POOLED_DIM, CONV1D_KWS[1])
    params = (Wg1, bg1, Wg2, bg2, Wg3, bg3, W1t, b1, w2tap, b2, Wl, bl)

    # ----------------- forward: ONE fused Pallas kernel -----------------
    embed = graph_encoder_forward(ahat, x, params, consts)
    embed = jax.block_until_ready(embed)

    # ----------------- independent pure-JAX reference check -----------------
    r1 = gcn_ref(ahat, x, Wg1, bg1, True)
    r2 = gcn_ref(ahat, r1, Wg2, bg2, True)
    r3 = gcn_ref(ahat, r2, Wg3, bg3, False)
    sp_ref = sortpooling_ref(r3, batch_np, B, K_SORTPOOL)
    ref = head_ref(sp_ref, W1t, b1, W2t, b2, Wl, bl)
    np.testing.assert_allclose(np.asarray(embed), np.asarray(ref), rtol=1e-4, atol=1e-4)

    print("KERNEL_OK")
</pallas_src>

<mosaic_0001>
module attributes {stable_mosaic.version = 11 : i64} {
  func.func @graph_encoder_kernel(%arg0: memref<20x20xf32, #tpu.memory_space<vmem>>, %arg1: memref<20x4xf32, #tpu.memory_space<vmem>>, %arg2: memref<4x16xf32, #tpu.memory_space<vmem>>, %arg3: memref<1x16xf32, #tpu.memory_space<vmem>>, %arg4: memref<16x16xf32, #tpu.memory_space<vmem>>, %arg5: memref<1x16xf32, #tpu.memory_space<vmem>>, %arg6: memref<16x32xf32, #tpu.memory_space<vmem>>, %arg7: memref<1x32xf32, #tpu.memory_space<vmem>>, %arg8: memref<20x20xf32, #tpu.memory_space<vmem>>, %arg9: memref<20x20xf32, #tpu.memory_space<vmem>>, %arg10: memref<20x1xf32, #tpu.memory_space<vmem>>, %arg11: memref<640x20xf32, #tpu.memory_space<vmem>>, %arg12: memref<20x640xf32, #tpu.memory_space<vmem>>, %arg13: memref<640x1xi32, #tpu.memory_space<vmem>>, %arg14: memref<32x16xf32, #tpu.memory_space<vmem>>, %arg15: memref<1x16xf32, #tpu.memory_space<vmem>>, %arg16: memref<5x2x20xf32, #tpu.memory_space<vmem>>, %arg17: memref<5x2x20xf32, #tpu.memory_space<vmem>>, %arg18: memref<5x16x32xf32, #tpu.memory_space<vmem>>, %arg19: memref<1x32xf32, #tpu.memory_space<vmem>>, %arg20: memref<32x32xf32, #tpu.memory_space<vmem>>, %arg21: memref<1x32xf32, #tpu.memory_space<vmem>>, %arg22: memref<2x32xf32, #tpu.memory_space<vmem>>) attributes {dimension_semantics = [], scalar_prefetch = 0 : i64, scratch_operands = 0 : i64, tpu.core_type = #tpu.core_type<tc>} {
    %c0 = arith.constant 0 : index
    %c0_0 = arith.constant 0 : index
    %0 = vector.load %arg0[%c0, %c0_0] : memref<20x20xf32, #tpu.memory_space<vmem>>, vector<20x20xf32>
    %c0_1 = arith.constant 0 : index
    %c0_2 = arith.constant 0 : index
    %1 = vector.load %arg1[%c0_1, %c0_2] : memref<20x4xf32, #tpu.memory_space<vmem>>, vector<20x4xf32>
    %c0_3 = arith.constant 0 : index
    %c0_4 = arith.constant 0 : index
    %2 = vector.load %arg2[%c0_3, %c0_4] : memref<4x16xf32, #tpu.memory_space<vmem>>, vector<4x16xf32>
    %cst = arith.constant dense<0.000000e+00> : vector<20x16xf32>
    %3 = tpu.matmul %1, %2, %cst {dimension_numbers = #tpu.dot_dimension_numbers<[1], [0], [0], [1], [0, 0, 1, 1], [], []>} : vector<20x4xf32>, vector<4x16xf32>, vector<20x16xf32> -> vector<20x16xf32>
    %cst_5 = arith.constant dense<0.000000e+00> : vector<20x16xf32>
    %4 = tpu.matmul %0, %3, %cst_5 {dimension_numbers = #tpu.dot_dimension_numbers<[1], [0], [0], [1], [0, 0, 1, 1], [], []>} : vector<20x20xf32>, vector<20x16xf32>, vector<20x16xf32> -> vector<20x16xf32>
    %c0_6 = arith.constant 0 : index
    %c0_7 = arith.constant 0 : index
    %5 = vector.load %arg3[%c0_6, %c0_7] : memref<1x16xf32, #tpu.memory_space<vmem>>, vector<1x16xf32>
    %6 = vector.broadcast %5 : vector<1x16xf32> to vector<20x16xf32>
    %7 = arith.addf %4, %6 : vector<20x16xf32>
    %cst_8 = arith.constant 0.000000e+00 : f32
    %8 = vector.broadcast %cst_8 : f32 to vector<20x16xf32>
    %9 = arith.maximumf %7, %8 : vector<20x16xf32>
    %c0_9 = arith.constant 0 : index
    %c0_10 = arith.constant 0 : index
    %10 = vector.load %arg4[%c0_9, %c0_10] : memref<16x16xf32, #tpu.memory_space<vmem>>, vector<16x16xf32>
    %cst_11 = arith.constant dense<0.000000e+00> : vector<20x16xf32>
    %11 = tpu.matmul %9, %10, %cst_11 {dimension_numbers = #tpu.dot_dimension_numbers<[1], [0], [0], [1], [0, 0, 1, 1], [], []>} : vector<20x16xf32>, vector<16x16xf32>, vector<20x16xf32> -> vector<20x16xf32>
    %cst_12 = arith.constant dense<0.000000e+00> : vector<20x16xf32>
    %12 = tpu.matmul %0, %11, %cst_12 {dimension_numbers = #tpu.dot_dimension_numbers<[1], [0], [0], [1], [0, 0, 1, 1], [], []>} : vector<20x20xf32>, vector<20x16xf32>, vector<20x16xf32> -> vector<20x16xf32>
    %c0_13 = arith.constant 0 : index
    %c0_14 = arith.constant 0 : index
    %13 = vector.load %arg5[%c0_13, %c0_14] : memref<1x16xf32, #tpu.memory_space<vmem>>, vector<1x16xf32>
    %14 = vector.broadcast %13 : vector<1x16xf32> to vector<20x16xf32>
    %15 = arith.addf %12, %14 : vector<20x16xf32>
    %cst_15 = arith.constant 0.000000e+00 : f32
    %16 = vector.broadcast %cst_15 : f32 to vector<20x16xf32>
    %17 = arith.maximumf %15, %16 : vector<20x16xf32>
    %c0_16 = arith.constant 0 : index
    %c0_17 = arith.constant 0 : index
    %18 = vector.load %arg6[%c0_16, %c0_17] : memref<16x32xf32, #tpu.memory_space<vmem>>, vector<16x32xf32>
    %cst_18 = arith.constant dense<0.000000e+00> : vector<20x32xf32>
    %19 = tpu.matmul %17, %18, %cst_18 {dimension_numbers = #tpu.dot_dimension_numbers<[1], [0], [0], [1], [0, 0, 1, 1], [], []>} : vector<20x16xf32>, vector<16x32xf32>, vector<20x32xf32> -> vector<20x32xf32>
    %cst_19 = arith.constant dense<0.000000e+00> : vector<20x32xf32>
    %20 = tpu.matmul %0, %19, %cst_19 {dimension_numbers = #tpu.dot_dimension_numbers<[1], [0], [0], [1], [0, 0, 1, 1], [], []>} : vector<20x20xf32>, vector<20x32xf32>, vector<20x32xf32> -> vector<20x32xf32>
    %c0_20 = arith.constant 0 : index
    %c0_21 = arith.constant 0 : index
    %21 = vector.load %arg7[%c0_20, %c0_21] : memref<1x32xf32, #tpu.memory_space<vmem>>, vector<1x32xf32>
    %22 = vector.broadcast %21 : vector<1x32xf32> to vector<20x32xf32>
    %23 = arith.addf %20, %22 : vector<20x32xf32>
    %cst_22 = arith.constant dense<0xFF800000> : vector<20xf32>
    %24 = vector.multi_reduction <maximumf>, %23, %cst_22 [1] : vector<20x32xf32> to vector<20xf32>
    %25 = vector.shape_cast %24 : vector<20xf32> to vector<20x1xf32>
    %26 = tpu.iota {dimensions = array<i32: 0>} : vector<20x20xi32>
    %27 = tpu.iota {dimensions = array<i32: 1>} : vector<20x20xi32>
    %28 = arith.cmpi eq, %26, %27 : vector<20x20xi32>
    %cst_23 = arith.constant 0.000000e+00 : f32
    %29 = vector.shape_cast %25 : vector<20x1xf32> to vector<20x1xf32>
    %30 = vector.broadcast %29 : vector<20x1xf32> to vector<20x20xf32>
    %31 = vector.broadcast %cst_23 : f32 to vector<20x20xf32>
    %32 = arith.select %28, %30, %31 : vector<20x20xi1>, vector<20x20xf32>
    %cst_24 = arith.constant dense<0.000000e+00> : vector<20xf32>
    %33 = vector.multi_reduction <add>, %32, %cst_24 [0] : vector<20x20xf32> to vector<20xf32>
    %34 = vector.shape_cast %33 : vector<20xf32> to vector<1x20xf32>
    %35 = vector.broadcast %25 : vector<20x1xf32> to vector<20x20xf32>
    %36 = vector.broadcast %34 : vector<1x20xf32> to vector<20x20xf32>
    %37 = arith.cmpf olt, %35, %36 : vector<20x20xf32>
    %38 = vector.broadcast %25 : vector<20x1xf32> to vector<20x20xf32>
    %39 = vector.broadcast %34 : vector<1x20xf32> to vector<20x20xf32>
    %40 = arith.cmpf oeq, %38, %39 : vector<20x20xf32>
    %41 = arith.cmpi slt, %26, %27 : vector<20x20xi32>
    %42 = arith.andi %40, %41 : vector<20x20xi1>
    %43 = arith.ori %37, %42 : vector<20x20xi1>
    %c0_25 = arith.constant 0 : index
    %c0_26 = arith.constant 0 : index
    %44 = vector.load %arg8[%c0_25, %c0_26] : memref<20x20xf32, #tpu.memory_space<vmem>>, vector<20x20xf32>
    %cst_27 = arith.constant 0.000000e+00 : f32
    %45 = vector.broadcast %cst_27 : f32 to vector<20x20xf32>
    %46 = arith.select %43, %44, %45 : vector<20x20xi1>, vector<20x20xf32>
    %cst_28 = arith.constant dense<0.000000e+00> : vector<20xf32>
    %47 = vector.multi_reduction <add>, %46, %cst_28 [0] : vector<20x20xf32> to vector<20xf32>
    %48 = vector.shape_cast %47 : vector<20xf32> to vector<1x20xf32>
    %c0_29 = arith.constant 0 : index
    %c0_30 = arith.constant 0 : index
    %49 = vector.load %arg10[%c0_29, %c0_30] : memref<20x1xf32, #tpu.memory_space<vmem>>, vector<20x1xf32>
    %50 = vector.broadcast %48 : vector<1x20xf32> to vector<20x20xf32>
    %51 = vector.broadcast %49 : vector<20x1xf32> to vector<20x20xf32>
    %52 = arith.cmpf oeq, %50, %51 : vector<20x20xf32>
    %c0_31 = arith.constant 0 : index
    %c0_32 = arith.constant 0 : index
    %53 = vector.load %arg9[%c0_31, %c0_32] : memref<20x20xf32, #tpu.memory_space<vmem>>, vector<20x20xf32>
    %cst_33 = arith.constant 0.000000e+00 : f32
    %54 = vector.broadcast %cst_33 : f32 to vector<20x20xf32>
    %55 = arith.select %52, %53, %54 : vector<20x20xi1>, vector<20x20xf32>
    %cst_34 = arith.constant dense<0.000000e+00> : vector<20x32xf32>
    %56 = tpu.matmul %55, %23, %cst_34 {dimension_numbers = #tpu.dot_dimension_numbers<[1], [0], [0], [1], [0, 0, 1, 1], [], []>} : vector<20x20xf32>, vector<20x32xf32>, vector<20x32xf32> -> vector<20x32xf32>
    %c0_35 = arith.constant 0 : index
    %c0_36 = arith.constant 0 : index
    %57 = vector.load %arg11[%c0_35, %c0_36] : memref<640x20xf32, #tpu.memory_space<vmem>>, vector<640x20xf32>
    %cst_37 = arith.constant dense<0.000000e+00> : vector<640x32xf32>
    %58 = tpu.matmul %57, %56, %cst_37 {dimension_numbers = #tpu.dot_dimension_numbers<[1], [0], [0], [1], [0, 0, 1, 1], [], []>} : vector<640x20xf32>, vector<20x32xf32>, vector<640x32xf32> -> vector<640x32xf32>
    %59 = tpu.iota {dimensions = array<i32: 1>} : vector<640x32xi32>
    %c0_38 = arith.constant 0 : index
    %c0_39 = arith.constant 0 : index
    %60 = vector.load %arg13[%c0_38, %c0_39] : memref<640x1xi32, #tpu.memory_space<vmem>>, vector<640x1xi32>
    %61 = vector.broadcast %60 : vector<640x1xi32> to vector<640x32xi32>
    %62 = arith.cmpi eq, %59, %61 : vector<640x32xi32>
    %cst_40 = arith.constant 0.000000e+00 : f32
    %63 = vector.broadcast %cst_40 : f32 to vector<640x32xf32>
    %64 = arith.select %62, %58, %63 : vector<640x32xi1>, vector<640x32xf32>
    %cst_41 = arith.constant dense<0.000000e+00> : vector<640xf32>
    %65 = vector.multi_reduction <add>, %64, %cst_41 [1] : vector<640x32xf32> to vector<640xf32>
    %66 = vector.shape_cast %65 : vector<640xf32> to vector<640x1xf32>
    %67 = vector.broadcast %66 : vector<640x1xf32> to vector<640x32xf32>
    %68 = arith.cmpf olt, %58, %67 : vector<640x32xf32>
    %69 = vector.broadcast %66 : vector<640x1xf32> to vector<640x32xf32>
    %70 = arith.cmpf oeq, %58, %69 : vector<640x32xf32>
    %71 = vector.broadcast %60 : vector<640x1xi32> to vector<640x32xi32>
    %72 = arith.cmpi slt, %59, %71 : vector<640x32xi32>
    %73 = arith.andi %70, %72 : vector<640x32xi1>
    %74 = arith.ori %68, %73 : vector<640x32xi1>
    %75 = arith.extui %74 : vector<640x32xi1> to vector<640x32xi32>
    %cst_42 = arith.constant dense<0> : vector<640xi32>
    %76 = vector.multi_reduction <add>, %75, %cst_42 [1] : vector<640x32xi32> to vector<640xi32>
    %77 = vector.shape_cast %76 : vector<640xi32> to vector<640x1xi32>
    %78 = vector.broadcast %77 : vector<640x1xi32> to vector<640x32xi32>
    %79 = arith.cmpi eq, %78, %59 : vector<640x32xi32>
    %cst_43 = arith.constant 0.000000e+00 : f32
    %80 = vector.shape_cast %66 : vector<640x1xf32> to vector<640x1xf32>
    %81 = vector.broadcast %80 : vector<640x1xf32> to vector<640x32xf32>
    %82 = vector.broadcast %cst_43 : f32 to vector<640x32xf32>
    %83 = arith.select %79, %81, %82 : vector<640x32xi1>, vector<640x32xf32>
    %c0_44 = arith.constant 0 : index
    %c0_45 = arith.constant 0 : index
    %84 = vector.load %arg12[%c0_44, %c0_45] : memref<20x640xf32, #tpu.memory_space<vmem>>, vector<20x640xf32>
    %cst_46 = arith.constant dense<0.000000e+00> : vector<20x32xf32>
    %85 = tpu.matmul %84, %83, %cst_46 {dimension_numbers = #tpu.dot_dimension_numbers<[1], [0], [0], [1], [0, 0, 1, 1], [], []>} : vector<20x640xf32>, vector<640x32xf32>, vector<20x32xf32> -> vector<20x32xf32>
    %c0_47 = arith.constant 0 : index
    %c0_48 = arith.constant 0 : index
    %86 = vector.load %arg14[%c0_47, %c0_48] : memref<32x16xf32, #tpu.memory_space<vmem>>, vector<32x16xf32>
    %cst_49 = arith.constant dense<0.000000e+00> : vector<20x16xf32>
    %87 = tpu.matmul %85, %86, %cst_49 {dimension_numbers = #tpu.dot_dimension_numbers<[1], [0], [0], [1], [0, 0, 1, 1], [], []>} : vector<20x32xf32>, vector<32x16xf32>, vector<20x16xf32> -> vector<20x16xf32>
    %c0_50 = arith.constant 0 : index
    %c0_51 = arith.constant 0 : index
    %88 = vector.load %arg15[%c0_50, %c0_51] : memref<1x16xf32, #tpu.memory_space<vmem>>, vector<1x16xf32>
    %89 = vector.broadcast %88 : vector<1x16xf32> to vector<20x16xf32>
    %90 = arith.addf %87, %89 : vector<20x16xf32>
    %cst_52 = arith.constant 0.000000e+00 : f32
    %91 = vector.broadcast %cst_52 : f32 to vector<20x16xf32>
    %92 = arith.maximumf %90, %91 : vector<20x16xf32>
    %cst_53 = arith.constant 0.000000e+00 : f32
    %93 = vector.broadcast %cst_53 : f32 to vector<2x32xf32>
    %c0_54 = arith.constant 0 : index
    %c0_55 = arith.constant 0 : index
    %c0_56 = arith.constant 0 : index
    %94 = vector.load %arg16[%c0_54, %c0_55, %c0_56] : memref<5x2x20xf32, #tpu.memory_space<vmem>>, vector<1x2x20xf32>
    %95 = vector.shape_cast %94 : vector<1x2x20xf32> to vector<2x20xf32>
    %cst_57 = arith.constant dense<0.000000e+00> : vector<2x16xf32>
    %96 = tpu.matmul %95, %92, %cst_57 {dimension_numbers = #tpu.dot_dimension_numbers<[1], [0], [0], [1], [0, 0, 1, 1], [], []>} : vector<2x20xf32>, vector<20x16xf32>, vector<2x16xf32> -> vector<2x16xf32>
    %c0_58 = arith.constant 0 : index
    %c0_59 = arith.constant 0 : index
    %c0_60 = arith.constant 0 : index
    %97 = vector.load %arg17[%c0_58, %c0_59, %c0_60] : memref<5x2x20xf32, #tpu.memory_space<vmem>>, vector<1x2x20xf32>
    %98 = vector.shape_cast %97 : vector<1x2x20xf32> to vector<2x20xf32>
    %cst_61 = arith.constant dense<0.000000e+00> : vector<2x16xf32>
    %99 = tpu.matmul %98, %92, %cst_61 {dimension_numbers = #tpu.dot_dimension_numbers<[1], [0], [0], [1], [0, 0, 1, 1], [], []>} : vector<2x20xf32>, vector<20x16xf32>, vector<2x16xf32> -> vector<2x16xf32>
    %100 = arith.maximumf %96, %99 : vector<2x16xf32>
    %c0_62 = arith.constant 0 : index
    %c0_63 = arith.constant 0 : index
    %c0_64 = arith.constant 0 : index
    %101 = vector.load %arg18[%c0_62, %c0_63, %c0_64] : memref<5x16x32xf32, #tpu.memory_space<vmem>>, vector<1x16x32xf32>
    %102 = vector.shape_cast %101 : vector<1x16x32xf32> to vector<16x32xf32>
    %cst_65 = arith.constant dense<0.000000e+00> : vector<2x32xf32>
    %103 = tpu.matmul %100, %102, %cst_65 {dimension_numbers = #tpu.dot_dimension_numbers<[1], [0], [0], [1], [0, 0, 1, 1], [], []>} : vector<2x16xf32>, vector<16x32xf32>, vector<2x32xf32> -> vector<2x32xf32>
    %104 = arith.addf %93, %103 : vector<2x32xf32>
    %c1 = arith.constant 1 : index
    %c0_66 = arith.constant 0 : index
    %c0_67 = arith.constant 0 : index
    %105 = vector.load %arg16[%c1, %c0_66, %c0_67] : memref<5x2x20xf32, #tpu.memory_space<vmem>>, vector<1x2x20xf32>
    %106 = vector.shape_cast %105 : vector<1x2x20xf32> to vector<2x20xf32>
    %cst_68 = arith.constant dense<0.000000e+00> : vector<2x16xf32>
    %107 = tpu.matmul %106, %92, %cst_68 {dimension_numbers = #tpu.dot_dimension_numbers<[1], [0], [0], [1], [0, 0, 1, 1], [], []>} : vector<2x20xf32>, vector<20x16xf32>, vector<2x16xf32> -> vector<2x16xf32>
    %c1_69 = arith.constant 1 : index
    %c0_70 = arith.constant 0 : index
    %c0_71 = arith.constant 0 : index
    %108 = vector.load %arg17[%c1_69, %c0_70, %c0_71] : memref<5x2x20xf32, #tpu.memory_space<vmem>>, vector<1x2x20xf32>
    %109 = vector.shape_cast %108 : vector<1x2x20xf32> to vector<2x20xf32>
    %cst_72 = arith.constant dense<0.000000e+00> : vector<2x16xf32>
    %110 = tpu.matmul %109, %92, %cst_72 {dimension_numbers = #tpu.dot_dimension_numbers<[1], [0], [0], [1], [0, 0, 1, 1], [], []>} : vector<2x20xf32>, vector<20x16xf32>, vector<2x16xf32> -> vector<2x16xf32>
    %111 = arith.maximumf %107, %110 : vector<2x16xf32>
    %c1_73 = arith.constant 1 : index
    %c0_74 = arith.constant 0 : index
    %c0_75 = arith.constant 0 : index
    %112 = vector.load %arg18[%c1_73, %c0_74, %c0_75] : memref<5x16x32xf32, #tpu.memory_space<vmem>>, vector<1x16x32xf32>
    %113 = vector.shape_cast %112 : vector<1x16x32xf32> to vector<16x32xf32>
    %cst_76 = arith.constant dense<0.000000e+00> : vector<2x32xf32>
    %114 = tpu.matmul %111, %113, %cst_76 {dimension_numbers = #tpu.dot_dimension_numbers<[1], [0], [0], [1], [0, 0, 1, 1], [], []>} : vector<2x16xf32>, vector<16x32xf32>, vector<2x32xf32> -> vector<2x32xf32>
    %115 = arith.addf %104, %114 : vector<2x32xf32>
    %c2 = arith.constant 2 : index
    %c0_77 = arith.constant 0 : index
    %c0_78 = arith.constant 0 : index
    %116 = vector.load %arg16[%c2, %c0_77, %c0_78] : memref<5x2x20xf32, #tpu.memory_space<vmem>>, vector<1x2x20xf32>
    %117 = vector.shape_cast %116 : vector<1x2x20xf32> to vector<2x20xf32>
    %cst_79 = arith.constant dense<0.000000e+00> : vector<2x16xf32>
    %118 = tpu.matmul %117, %92, %cst_79 {dimension_numbers = #tpu.dot_dimension_numbers<[1], [0], [0], [1], [0, 0, 1, 1], [], []>} : vector<2x20xf32>, vector<20x16xf32>, vector<2x16xf32> -> vector<2x16xf32>
    %c2_80 = arith.constant 2 : index
    %c0_81 = arith.constant 0 : index
    %c0_82 = arith.constant 0 : index
    %119 = vector.load %arg17[%c2_80, %c0_81, %c0_82] : memref<5x2x20xf32, #tpu.memory_space<vmem>>, vector<1x2x20xf32>
    %120 = vector.shape_cast %119 : vector<1x2x20xf32> to vector<2x20xf32>
    %cst_83 = arith.constant dense<0.000000e+00> : vector<2x16xf32>
    %121 = tpu.matmul %120, %92, %cst_83 {dimension_numbers = #tpu.dot_dimension_numbers<[1], [0], [0], [1], [0, 0, 1, 1], [], []>} : vector<2x20xf32>, vector<20x16xf32>, vector<2x16xf32> -> vector<2x16xf32>
    %122 = arith.maximumf %118, %121 : vector<2x16xf32>
    %c2_84 = arith.constant 2 : index
    %c0_85 = arith.constant 0 : index
    %c0_86 = arith.constant 0 : index
    %123 = vector.load %arg18[%c2_84, %c0_85, %c0_86] : memref<5x16x32xf32, #tpu.memory_space<vmem>>, vector<1x16x32xf32>
    %124 = vector.shape_cast %123 : vector<1x16x32xf32> to vector<16x32xf32>
    %cst_87 = arith.constant dense<0.000000e+00> : vector<2x32xf32>
    %125 = tpu.matmul %122, %124, %cst_87 {dimension_numbers = #tpu.dot_dimension_numbers<[1], [0], [0], [1], [0, 0, 1, 1], [], []>} : vector<2x16xf32>, vector<16x32xf32>, vector<2x32xf32> -> vector<2x32xf32>
    %126 = arith.addf %115, %125 : vector<2x32xf32>
    %c3 = arith.constant 3 : index
    %c0_88 = arith.constant 0 : index
    %c0_89 = arith.constant 0 : index
    %127 = vector.load %arg16[%c3, %c0_88, %c0_89] : memref<5x2x20xf32, #tpu.memory_space<vmem>>, vector<1x2x20xf32>
    %128 = vector.shape_cast %127 : vector<1x2x20xf32> to vector<2x20xf32>
    %cst_90 = arith.constant dense<0.000000e+00> : vector<2x16xf32>
    %129 = tpu.matmul %128, %92, %cst_90 {dimension_numbers = #tpu.dot_dimension_numbers<[1], [0], [0], [1], [0, 0, 1, 1], [], []>} : vector<2x20xf32>, vector<20x16xf32>, vector<2x16xf32> -> vector<2x16xf32>
    %c3_91 = arith.constant 3 : index
    %c0_92 = arith.constant 0 : index
    %c0_93 = arith.constant 0 : index
    %130 = vector.load %arg17[%c3_91, %c0_92, %c0_93] : memref<5x2x20xf32, #tpu.memory_space<vmem>>, vector<1x2x20xf32>
    %131 = vector.shape_cast %130 : vector<1x2x20xf32> to vector<2x20xf32>
    %cst_94 = arith.constant dense<0.000000e+00> : vector<2x16xf32>
    %132 = tpu.matmul %131, %92, %cst_94 {dimension_numbers = #tpu.dot_dimension_numbers<[1], [0], [0], [1], [0, 0, 1, 1], [], []>} : vector<2x20xf32>, vector<20x16xf32>, vector<2x16xf32> -> vector<2x16xf32>
    %133 = arith.maximumf %129, %132 : vector<2x16xf32>
    %c3_95 = arith.constant 3 : index
    %c0_96 = arith.constant 0 : index
    %c0_97 = arith.constant 0 : index
    %134 = vector.load %arg18[%c3_95, %c0_96, %c0_97] : memref<5x16x32xf32, #tpu.memory_space<vmem>>, vector<1x16x32xf32>
    %135 = vector.shape_cast %134 : vector<1x16x32xf32> to vector<16x32xf32>
    %cst_98 = arith.constant dense<0.000000e+00> : vector<2x32xf32>
    %136 = tpu.matmul %133, %135, %cst_98 {dimension_numbers = #tpu.dot_dimension_numbers<[1], [0], [0], [1], [0, 0, 1, 1], [], []>} : vector<2x16xf32>, vector<16x32xf32>, vector<2x32xf32> -> vector<2x32xf32>
    %137 = arith.addf %126, %136 : vector<2x32xf32>
    %c4 = arith.constant 4 : index
    %c0_99 = arith.constant 0 : index
    %c0_100 = arith.constant 0 : index
    %138 = vector.load %arg16[%c4, %c0_99, %c0_100] : memref<5x2x20xf32, #tpu.memory_space<vmem>>, vector<1x2x20xf32>
    %139 = vector.shape_cast %138 : vector<1x2x20xf32> to vector<2x20xf32>
    %cst_101 = arith.constant dense<0.000000e+00> : vector<2x16xf32>
    %140 = tpu.matmul %139, %92, %cst_101 {dimension_numbers = #tpu.dot_dimension_numbers<[1], [0], [0], [1], [0, 0, 1, 1], [], []>} : vector<2x20xf32>, vector<20x16xf32>, vector<2x16xf32> -> vector<2x16xf32>
    %c4_102 = arith.constant 4 : index
    %c0_103 = arith.constant 0 : index
    %c0_104 = arith.constant 0 : index
    %141 = vector.load %arg17[%c4_102, %c0_103, %c0_104] : memref<5x2x20xf32, #tpu.memory_space<vmem>>, vector<1x2x20xf32>
    %142 = vector.shape_cast %141 : vector<1x2x20xf32> to vector<2x20xf32>
    %cst_105 = arith.constant dense<0.000000e+00> : vector<2x16xf32>
    %143 = tpu.matmul %142, %92, %cst_105 {dimension_numbers = #tpu.dot_dimension_numbers<[1], [0], [0], [1], [0, 0, 1, 1], [], []>} : vector<2x20xf32>, vector<20x16xf32>, vector<2x16xf32> -> vector<2x16xf32>
    %144 = arith.maximumf %140, %143 : vector<2x16xf32>
    %c4_106 = arith.constant 4 : index
    %c0_107 = arith.constant 0 : index
    %c0_108 = arith.constant 0 : index
    %145 = vector.load %arg18[%c4_106, %c0_107, %c0_108] : memref<5x16x32xf32, #tpu.memory_space<vmem>>, vector<1x16x32xf32>
    %146 = vector.shape_cast %145 : vector<1x16x32xf32> to vector<16x32xf32>
    %cst_109 = arith.constant dense<0.000000e+00> : vector<2x32xf32>
    %147 = tpu.matmul %144, %146, %cst_109 {dimension_numbers = #tpu.dot_dimension_numbers<[1], [0], [0], [1], [0, 0, 1, 1], [], []>} : vector<2x16xf32>, vector<16x32xf32>, vector<2x32xf32> -> vector<2x32xf32>
    %148 = arith.addf %137, %147 : vector<2x32xf32>
    %c0_110 = arith.constant 0 : index
    %c0_111 = arith.constant 0 : index
    %149 = vector.load %arg19[%c0_110, %c0_111] : memref<1x32xf32, #tpu.memory_space<vmem>>, vector<1x32xf32>
    %150 = vector.broadcast %149 : vector<1x32xf32> to vector<2x32xf32>
    %151 = arith.addf %148, %150 : vector<2x32xf32>
    %cst_112 = arith.constant 0.000000e+00 : f32
    %152 = vector.broadcast %cst_112 : f32 to vector<2x32xf32>
    %153 = arith.maximumf %151, %152 : vector<2x32xf32>
    %c0_113 = arith.constant 0 : index
    %c0_114 = arith.constant 0 : index
    %154 = vector.load %arg20[%c0_113, %c0_114] : memref<32x32xf32, #tpu.memory_space<vmem>>, vector<32x32xf32>
    %cst_115 = arith.constant dense<0.000000e+00> : vector<2x32xf32>
    %155 = tpu.matmul %153, %154, %cst_115 {dimension_numbers = #tpu.dot_dimension_numbers<[1], [0], [0], [1], [0, 0, 1, 1], [], []>} : vector<2x32xf32>, vector<32x32xf32>, vector<2x32xf32> -> vector<2x32xf32>
    %c0_116 = arith.constant 0 : index
    %c0_117 = arith.constant 0 : index
    %156 = vector.load %arg21[%c0_116, %c0_117] : memref<1x32xf32, #tpu.memory_space<vmem>>, vector<1x32xf32>
    %157 = vector.broadcast %156 : vector<1x32xf32> to vector<2x32xf32>
    %158 = arith.addf %155, %157 : vector<2x32xf32>
    %cst_118 = arith.constant 0.000000e+00 : f32
    %159 = vector.broadcast %cst_118 : f32 to vector<2x32xf32>
    %160 = arith.maximumf %158, %159 : vector<2x32xf32>
    %c0_119 = arith.constant 0 : index
    %c0_120 = arith.constant 0 : index
    %161 = vector.load %arg22[%c0_119, %c0_120] : memref<2x32xf32, #tpu.memory_space<vmem>>, vector<2x32xf32>
    tpu.vector_store %arg22[%c0_119, %c0_120], %160 {strides = array<i32>} : memref<2x32xf32, #tpu.memory_space<vmem>>, vector<2x32xf32>,
    return
  }
}

</mosaic_0001>

<llo_original>
// kernel: tpu_custom_call.1
$region0: #{tpu_custom_call.1}
  #allocation0 [shape = 'u32[]', space=smem, size = 0x4, offset = 0x4, fixed_abs, tag = 'smem constant byte address 0x4 - core index']
  #allocation1 [shape = 'u32[144,128]{1,0:T(1,128)}', space=vmem, size = 0x12000, scoped, tag = 'internal scratch']
  %s0 = inlined_call_operand.vmem [shape: f32[20,20], index: 0, kind: input, shape index: {}]
  %s1 = inlined_call_operand.vmem [shape: f32[20,4], index: 1, kind: input, shape index: {}]
  %s2 = inlined_call_operand.vmem [shape: f32[4,16], index: 2, kind: input, shape index: {}]
  %s3 = inlined_call_operand.vmem [shape: f32[1,16], index: 3, kind: input, shape index: {}]
  %s4 = inlined_call_operand.vmem [shape: f32[16,16], index: 4, kind: input, shape index: {}]
  %s5 = inlined_call_operand.vmem [shape: f32[1,16], index: 5, kind: input, shape index: {}]
  %s6 = inlined_call_operand.vmem [shape: f32[16,32], index: 6, kind: input, shape index: {}]
  %s7 = inlined_call_operand.vmem [shape: f32[1,32], index: 7, kind: input, shape index: {}]
  %s8 = inlined_call_operand.vmem [shape: f32[20,20], index: 8, kind: input, shape index: {}]
  %s9 = inlined_call_operand.vmem [shape: f32[20,20], index: 9, kind: input, shape index: {}]
  %s10 = inlined_call_operand.vmem [shape: f32[20,1], index: 10, kind: input, shape index: {}]
  %s11 = inlined_call_operand.vmem [shape: f32[640,20], index: 11, kind: input, shape index: {}]
  %s12 = inlined_call_operand.vmem [shape: f32[20,640], index: 12, kind: input, shape index: {}]
  %s13 = inlined_call_operand.vmem [shape: s32[640,1], index: 13, kind: input, shape index: {}]
  %s14 = inlined_call_operand.vmem [shape: f32[32,16], index: 14, kind: input, shape index: {}]
  %s15 = inlined_call_operand.vmem [shape: f32[1,16], index: 15, kind: input, shape index: {}]
  %s16 = inlined_call_operand.vmem [shape: f32[5,2,20], index: 16, kind: input, shape index: {}]
  %s17 = inlined_call_operand.vmem [shape: f32[5,2,20], index: 17, kind: input, shape index: {}]
  %s18 = inlined_call_operand.vmem [shape: f32[5,16,32], index: 18, kind: input, shape index: {}]
  %s19 = inlined_call_operand.vmem [shape: f32[1,32], index: 19, kind: input, shape index: {}]
  %s20 = inlined_call_operand.vmem [shape: f32[32,32], index: 20, kind: input, shape index: {}]
  %s21 = inlined_call_operand.vmem [shape: f32[1,32], index: 21, kind: input, shape index: {}]
  %s22 = inlined_call_operand.hbm [shape: f32[2,32], index: 22, kind: output, shape index: {}]
  %s23 = sld [smem:[#allocation0]]
  $region98: #{tpu_custom_call.1} parent=0
    _
  %s25 = ssub.s32 1, %s23
  %s26 = scalar_select 0, %s25, %s23
  $region1: #{tpu_custom_call.1} parent=0
    #allocation2 [shape = 'u8[1024]{0}', space=vmem, size = 0x400, scoped, tag = 'output window, operand 0, single buffered']
    #allocation3 [shape = 's32[1]{0}', space=sflag, size = 0x4, scoped, tag = 'scoped memory for tpu_custom_call.1']
    %27 = vsyncpa [#allocation3], 0
    // Predicated region
    $region2: #{tpu_custom_call.1} parent=1 // pred_check
      _
    $region3: #{tpu_custom_call.1} parent=1 // pred_check_branch
      %29 = sbr.rel (0) target = $region5
    $region4: #{tpu_custom_call.1} parent=1 // pred_region
      _
    $region5: #{tpu_custom_call.1} parent=1 // pred_fallthru
      _
    // Predicated region
    $region6: #{tpu_custom_call.1} parent=1 // pred_check
      _
    $region7: #{tpu_custom_call.1} parent=1 // pred_check_branch
      %31 = sbr.rel (0) target = $region9
    $region8: #{tpu_custom_call.1} parent=1 // pred_region
      _
    $region9: #{tpu_custom_call.1} parent=1 // pred_fallthru
      _
    // Predicated region
    $region10: #{tpu_custom_call.1} parent=1 // pred_check
      _
    $region11: #{tpu_custom_call.1} parent=1 // pred_check_branch
      %33 = sbr.rel (0) target = $region13
    $region12: #{tpu_custom_call.1} parent=1 // pred_region
      _
    $region13: #{tpu_custom_call.1} parent=1 // pred_fallthru
      _
    // Predicated region
    $region14: #{tpu_custom_call.1} parent=1 // pred_check
      _
    $region15: #{tpu_custom_call.1} parent=1 // pred_check_branch
      %35 = sbr.rel (0) target = $region17
    $region16: #{tpu_custom_call.1} parent=1 // pred_region
      _
    $region17: #{tpu_custom_call.1} parent=1 // pred_fallthru
      _
    // Predicated region
    $region18: #{tpu_custom_call.1} parent=1 // pred_check
      _
    $region19: #{tpu_custom_call.1} parent=1 // pred_check_branch
      %37 = sbr.rel (0) target = $region21
    $region20: #{tpu_custom_call.1} parent=1 // pred_region
      _
    $region21: #{tpu_custom_call.1} parent=1 // pred_fallthru
      _
    // Predicated region
    $region22: #{tpu_custom_call.1} parent=1 // pred_check
      _
    $region23: #{tpu_custom_call.1} parent=1 // pred_check_branch
      %39 = sbr.rel (0) target = $region25
    $region24: #{tpu_custom_call.1} parent=1 // pred_region
      _
    $region25: #{tpu_custom_call.1} parent=1 // pred_fallthru
      _
    // Predicated region
    $region26: #{tpu_custom_call.1} parent=1 // pred_check
      _
    $region27: #{tpu_custom_call.1} parent=1 // pred_check_branch
      %41 = sbr.rel (0) target = $region29
    $region28: #{tpu_custom_call.1} parent=1 // pred_region
      _
    $region29: #{tpu_custom_call.1} parent=1 // pred_fallthru
      _
    // Predicated region
    $region30: #{tpu_custom_call.1} parent=1 // pred_check
      _
    $region31: #{tpu_custom_call.1} parent=1 // pred_check_branch
      %43 = sbr.rel (0) target = $region33
    $region32: #{tpu_custom_call.1} parent=1 // pred_region
      _
    $region33: #{tpu_custom_call.1} parent=1 // pred_fallthru
      _
    // Predicated region
    $region34: #{tpu_custom_call.1} parent=1 // pred_check
      _
    $region35: #{tpu_custom_call.1} parent=1 // pred_check_branch
      %45 = sbr.rel (0) target = $region37
    $region36: #{tpu_custom_call.1} parent=1 // pred_region
      _
    $region37: #{tpu_custom_call.1} parent=1 // pred_fallthru
      _
    // Predicated region
    $region38: #{tpu_custom_call.1} parent=1 // pred_check
      _
    $region39: #{tpu_custom_call.1} parent=1 // pred_check_branch
      %47 = sbr.rel (0) target = $region41
    $region40: #{tpu_custom_call.1} parent=1 // pred_region
      _
    $region41: #{tpu_custom_call.1} parent=1 // pred_fallthru
      _
    // Predicated region
    $region42: #{tpu_custom_call.1} parent=1 // pred_check
      _
    $region43: #{tpu_custom_call.1} parent=1 // pred_check_branch
      %49 = sbr.rel (0) target = $region45
    $region44: #{tpu_custom_call.1} parent=1 // pred_region
      _
    $region45: #{tpu_custom_call.1} parent=1 // pred_fallthru
      _
    // Predicated region
    $region46: #{tpu_custom_call.1} parent=1 // pred_check
      _
    $region47: #{tpu_custom_call.1} parent=1 // pred_check_branch
      %51 = sbr.rel (0) target = $region49
    $region48: #{tpu_custom_call.1} parent=1 // pred_region
      _
    $region49: #{tpu_custom_call.1} parent=1 // pred_fallthru
      _
    // Predicated region
    $region50: #{tpu_custom_call.1} parent=1 // pred_check
      _
    $region51: #{tpu_custom_call.1} parent=1 // pred_check_branch
      %53 = sbr.rel (0) target = $region53
    $region52: #{tpu_custom_call.1} parent=1 // pred_region
      _
    $region53: #{tpu_custom_call.1} parent=1 // pred_fallthru
      _
    // Predicated region
    $region54: #{tpu_custom_call.1} parent=1 // pred_check
      _
    $region55: #{tpu_custom_call.1} parent=1 // pred_check_branch
      %55 = sbr.rel (0) target = $region57
    $region56: #{tpu_custom_call.1} parent=1 // pred_region
      _
    $region57: #{tpu_custom_call.1} parent=1 // pred_fallthru
      _
    // Predicated region
    $region58: #{tpu_custom_call.1} parent=1 // pred_check
      _
    $region59: #{tpu_custom_call.1} parent=1 // pred_check_branch
      %57 = sbr.rel (0) target = $region61
    $region60: #{tpu_custom_call.1} parent=1 // pred_region
      _
    $region61: #{tpu_custom_call.1} parent=1 // pred_fallthru
      _
    // Predicated region
    $region62: #{tpu_custom_call.1} parent=1 // pred_check
      _
    $region63: #{tpu_custom_call.1} parent=1 // pred_check_branch
      %59 = sbr.rel (0) target = $region65
    $region64: #{tpu_custom_call.1} parent=1 // pred_region
      _
    $region65: #{tpu_custom_call.1} parent=1 // pred_fallthru
      _
    // Predicated region
    $region66: #{tpu_custom_call.1} parent=1 // pred_check
      _
    $region67: #{tpu_custom_call.1} parent=1 // pred_check_branch
      %61 = sbr.rel (0) target = $region69
    $region68: #{tpu_custom_call.1} parent=1 // pred_region
      _
    $region69: #{tpu_custom_call.1} parent=1 // pred_fallthru
      _
    // Predicated region
    $region70: #{tpu_custom_call.1} parent=1 // pred_check
      _
    $region71: #{tpu_custom_call.1} parent=1 // pred_check_branch
      %63 = sbr.rel (0) target = $region73
    $region72: #{tpu_custom_call.1} parent=1 // pred_region
      _
    $region73: #{tpu_custom_call.1} parent=1 // pred_fallthru
      _
    // Predicated region
    $region74: #{tpu_custom_call.1} parent=1 // pred_check
      _
    $region75: #{tpu_custom_call.1} parent=1 // pred_check_branch
      %65 = sbr.rel (0) target = $region77
    $region76: #{tpu_custom_call.1} parent=1 // pred_region
      _
    $region77: #{tpu_custom_call.1} parent=1 // pred_fallthru
      _
    // Predicated region
    $region78: #{tpu_custom_call.1} parent=1 // pred_check
      _
    $region79: #{tpu_custom_call.1} parent=1 // pred_check_branch
      %67 = sbr.rel (0) target = $region81
    $region80: #{tpu_custom_call.1} parent=1 // pred_region
      _
    $region81: #{tpu_custom_call.1} parent=1 // pred_fallthru
      _
    // Predicated region
    $region82: #{tpu_custom_call.1} parent=1 // pred_check
      _
    $region83: #{tpu_custom_call.1} parent=1 // pred_check_branch
      %69 = sbr.rel (0) target = $region85
    $region84: #{tpu_custom_call.1} parent=1 // pred_region
      _
    $region85: #{tpu_custom_call.1} parent=1 // pred_fallthru
      _
    // Predicated region
    $region86: #{tpu_custom_call.1} parent=1 // pred_check
      _
    $region87: #{tpu_custom_call.1} parent=1 // pred_check_branch
      %71 = sbr.rel (0) target = $region89
    $region88: #{tpu_custom_call.1} parent=1 // pred_region
      _
    $region89: #{tpu_custom_call.1} parent=1 // pred_fallthru
      _
    %v72 = vld [vmem:[%s0] sm:$0xff]
    %v73 = vld [vmem:[%s0 + $0x8] sm:$0xff]
    %v74 = vld [vmem:[%s0 + $0x10] sm:$0xf]
    %v75 = vld [vmem:[%s1] sm:$0xff]
    %v76 = vld [vmem:[%s1 + $0x8] sm:$0xff]
    %v77 = vld [vmem:[%s1 + $0x10] sm:$0xf]
    %v78 = vld [vmem:[%s2] sm:$0xf]
    %vm79 = vcmask 31744
    %v81 = vsel %vm79, %v75, 0
    %v84 = vsel %vm79, %v76, 0
    %v87 = vsel %vm79, %v77, 0
    %vm89 = vcmask 1043456
    %v91 = vsel %vm89, %v78, 0
    %93 = vmatprep.subr.mxu0 0.0
    %94 = vmatpush1.msra.mxu0 0.0
    %95 = vmatprep.subr.mxu0 0.0
    %96 = vmatpush1.msra.mxu0 0.0
    %97 = vmatprep.subr.mxu0 0.0
    %98 = vmatpush1.msra.mxu0 0.0
    %99 = vmatprep.subr.mxu0 0.0
    %100 = vmatpush1.msra.mxu0 0.0
    %101 = vmatprep.subr.mxu0 0.0
    %102 = vmatpush1.msra.mxu0 0.0
    %103 = vmatprep.subr.mxu0 0.0
    %104 = vmatpush1.msra.mxu0 0.0
    %105 = vmatprep.subr.mxu0 0.0
    %106 = vmatpush1.msra.mxu0 0.0
    %107 = vmatprep.subr.mxu0 0.0
    %108 = vmatpush1.msra.mxu0 0.0
    %109 = vmatprep.subr.mxu0 0.0
    %110 = vmatpush1.msra.mxu0 0.0
    %111 = vmatprep.subr.mxu0 0.0
    %112 = vmatpush1.msra.mxu0 0.0
    %113 = vmatprep.subr.mxu0 0.0
    %114 = vmatpush1.msra.mxu0 0.0
    %115 = vmatprep.subr.mxu0 0.0
    %116 = vmatpush1.msra.mxu0 0.0
    %117 = vmatprep.subr.mxu0 0.0
    %118 = vmatpush1.msra.mxu0 0.0
    %119 = vmatprep.subr.mxu0 0.0
    %120 = vmatpush1.msra.mxu0 0.0
    %121 = vmatprep.subr.mxu0 0.0
    %122 = vmatpush1.msra.mxu0 0.0
    %123 = vmatprep.subr.mxu0 0.0
    %124 = vmatpush1.msra.mxu0 %v91
    %125 = vmatprep.subr.mxu0 0.0
    %126 = vmatpush2.msra.mxu0 0.0
    %127 = vmatprep.subr.mxu0 0.0
    %128 = vmatpush2.msra.mxu0 0.0
    %129 = vmatprep.subr.mxu0 0.0
    %130 = vmatpush2.msra.mxu0 0.0
    %131 = vmatprep.subr.mxu0 0.0
    %132 = vmatpush2.msra.mxu0 0.0
    %133 = vmatprep.subr.mxu0 0.0
    %134 = vmatpush2.msra.mxu0 0.0
    %135 = vmatprep.subr.mxu0 0.0
    %136 = vmatpush2.msra.mxu0 0.0
    %137 = vmatprep.subr.mxu0 0.0
    %138 = vmatpush2.msra.mxu0 0.0
    %139 = vmatprep.subr.mxu0 0.0
    %140 = vmatpush2.msra.mxu0 0.0
    %141 = vmatprep.subr.mxu0 0.0
    %142 = vmatpush2.msra.mxu0 0.0
    %143 = vmatprep.subr.mxu0 0.0
    %144 = vmatpush2.msra.mxu0 0.0
    %145 = vmatprep.subr.mxu0 0.0
    %146 = vmatpush2.msra.mxu0 0.0
    %147 = vmatprep.subr.mxu0 0.0
    %148 = vmatpush2.msra.mxu0 0.0
    %149 = vmatprep.subr.mxu0 0.0
    %150 = vmatpush2.msra.mxu0 0.0
    %151 = vmatprep.subr.mxu0 0.0
    %152 = vmatpush2.msra.mxu0 0.0
    %153 = vmatprep.subr.mxu0 0.0
    %154 = vmatpush2.msra.mxu0 0.0
    %155 = vmatprep.subr.mxu0 0.0
    %156 = vmatpush2.msra.mxu0 0.0
    %157 = vmatprep.mubr.f32.mxu0 0.0
    %158 = vmatmul.mubr.f32.gmra.mxu0 %v81
    %v159 = vpop.f32.mrf.mxu0
    %v160 = vadd.f32 0.0, %v159
    %v161 = vpop.f32.mrf.mxu0
    %162 = vmatprep.mubr.f32.mxu0 0.0
    %163 = vmatmul.mubr.f32.gmra.mxu0 %v84
    %v164 = vpop.f32.mrf.mxu0
    %v165 = vadd.f32 0.0, %v164
    %v166 = vpop.f32.mrf.mxu0
    %167 = vmatprep.mubr.f32.mxu0 0.0
    %168 = vmatmul.mubr.f32.gmra.mxu0 %v87
    %v169 = vpop.f32.mrf.mxu0
    %v170 = vadd.f32 0.0, %v169
    %v171 = vpop.f32.mrf.mxu0
    %172 = vdwg.mxu0
    %v173 = vld [vmem:[%s3] sm:$0x1]
    %v175 = vlaneseq
    %v176 = vshrl.u32 %v175, 7
    %v177 = vsub.s32 0, %v176
    %v178 = vrot.slane %v173, %v177
    %vm180 = vcmask 162816
    %v182 = vsel %vm180, %v72, 0
    %v185 = vsel %vm180, %v73, 0
    %v188 = vsel %vm180, %v74, 0
    %v191 = vsel %vm89, %v170, 0
    %193 = vmatprep.subr.mxu0 0.0
    %194 = vmatpush1.msra.mxu0 0.0
    %195 = vmatprep.subr.mxu0 0.0
    %196 = vmatpush1.msra.mxu0 0.0
    %197 = vmatprep.subr.mxu0 0.0
    %198 = vmatpush1.msra.mxu0 0.0
    %199 = vmatprep.subr.mxu0 0.0
    %200 = vmatpush1.msra.mxu0 0.0
    %201 = vmatprep.subr.mxu0 0.0
    %202 = vmatpush1.msra.mxu0 0.0
    %203 = vmatprep.subr.mxu0 0.0
    %204 = vmatpush1.msra.mxu0 0.0
    %205 = vmatprep.subr.mxu0 0.0
    %206 = vmatpush1.msra.mxu0 0.0
    %207 = vmatprep.subr.mxu0 0.0
    %208 = vmatpush1.msra.mxu0 0.0
    %209 = vmatprep.subr.mxu0 0.0
    %210 = vmatpush1.msra.mxu0 0.0
    %211 = vmatprep.subr.mxu0 0.0
    %212 = vmatpush1.msra.mxu0 0.0
    %213 = vmatprep.subr.mxu0 0.0
    %214 = vmatpush1.msra.mxu0 0.0
    %215 = vmatprep.subr.mxu0 0.0
    %216 = vmatpush1.msra.mxu0 0.0
    %217 = vmatprep.subr.mxu0 0.0
    %218 = vmatpush1.msra.mxu0 0.0
    %219 = vmatprep.subr.mxu0 0.0
    %220 = vmatpush1.msra.mxu0 %v191
    %221 = vmatprep.subr.mxu0 0.0
    %222 = vmatpush1.msra.mxu0 %v165
    %223 = vmatprep.subr.mxu0 0.0
    %224 = vmatpush1.msra.mxu0 %v160
    %225 = vmatprep.subr.mxu0 0.0
    %226 = vmatpush2.msra.mxu0 0.0
    %227 = vmatprep.subr.mxu0 0.0
    %228 = vmatpush2.msra.mxu0 0.0
    %229 = vmatprep.subr.mxu0 0.0
    %230 = vmatpush2.msra.mxu0 0.0
    %231 = vmatprep.subr.mxu0 0.0
    %232 = vmatpush2.msra.mxu0 0.0
    %233 = vmatprep.subr.mxu0 0.0
    %234 = vmatpush2.msra.mxu0 0.0
    %235 = vmatprep.subr.mxu0 0.0
    %236 = vmatpush2.msra.mxu0 0.0
    %237 = vmatprep.subr.mxu0 0.0
    %238 = vmatpush2.msra.mxu0 0.0
    %239 = vmatprep.subr.mxu0 0.0
    %240 = vmatpush2.msra.mxu0 0.0
    %241 = vmatprep.subr.mxu0 0.0
    %242 = vmatpush2.msra.mxu0 0.0
    %243 = vmatprep.subr.mxu0 0.0
    %244 = vmatpush2.msra.mxu0 0.0
    %245 = vmatprep.subr.mxu0 0.0
    %246 = vmatpush2.msra.mxu0 0.0
    %247 = vmatprep.subr.mxu0 0.0
    %248 = vmatpush2.msra.mxu0 0.0
    %249 = vmatprep.subr.mxu0 0.0
    %250 = vmatpush2.msra.mxu0 0.0
    %251 = vmatprep.subr.mxu0 0.0
    %252 = vmatpush2.msra.mxu0 0.0
    %253 = vmatprep.subr.mxu0 0.0
    %254 = vmatpush2.msra.mxu0 0.0
    %255 = vmatprep.subr.mxu0 0.0
    %256 = vmatpush2.msra.mxu0 0.0
    %257 = vmatprep.mubr.f32.mxu0 0.0
    %258 = vmatmul.mubr.f32.gmra.mxu0 %v182
    %v259 = vpop.f32.mrf.mxu0
    %v260 = vadd.f32 %v178, %v259
    %v261 = vpop.f32.mrf.mxu0
    %262 = vmatprep.mubr.f32.mxu0 0.0
    %263 = vmatmul.mubr.f32.gmra.mxu0 %v185
    %v264 = vpop.f32.mrf.mxu0
    %v265 = vadd.f32 %v178, %v264
    %v266 = vpop.f32.mrf.mxu0
    %267 = vmatprep.mubr.f32.mxu0 0.0
    %268 = vmatmul.mubr.f32.gmra.mxu0 %v188
    %v269 = vpop.f32.mrf.mxu0
    %v270 = vadd.f32 %v178, %v269
    %v271 = vpop.f32.mrf.mxu0
    %272 = vdwg.mxu0
    %v273 = vmax.f32 %v260, 0.0
    %v274 = vmax.f32 %v265, 0.0
    %v275 = vmax.f32 %v270, 0.0
    %v276 = vld [vmem:[%s4] sm:$0xff]
    %v277 = vld [vmem:[%s4 + $0x8] sm:$0xff]
    %vm278 = vcmask 130048
    %v280 = vsel %vm278, %v273, 0
    %v283 = vsel %vm278, %v274, 0
    %v286 = vsel %vm278, %v275, 0
    %288 = vmatprep.subr.mxu0 0.0
    %289 = vmatpush1.msra.mxu0 0.0
    %290 = vmatprep.subr.mxu0 0.0
    %291 = vmatpush1.msra.mxu0 0.0
    %292 = vmatprep.subr.mxu0 0.0
    %293 = vmatpush1.msra.mxu0 0.0
    %294 = vmatprep.subr.mxu0 0.0
    %295 = vmatpush1.msra.mxu0 0.0
    %296 = vmatprep.subr.mxu0 0.0
    %297 = vmatpush1.msra.mxu0 0.0
    %298 = vmatprep.subr.mxu0 0.0
    %299 = vmatpush1.msra.mxu0 0.0
    %300 = vmatprep.subr.mxu0 0.0
    %301 = vmatpush1.msra.mxu0 0.0
    %302 = vmatprep.subr.mxu0 0.0
    %303 = vmatpush1.msra.mxu0 0.0
    %304 = vmatprep.subr.mxu0 0.0
    %305 = vmatpush1.msra.mxu0 0.0
    %306 = vmatprep.subr.mxu0 0.0
    %307 = vmatpush1.msra.mxu0 0.0
    %308 = vmatprep.subr.mxu0 0.0
    %309 = vmatpush1.msra.mxu0 0.0
    %310 = vmatprep.subr.mxu0 0.0
    %311 = vmatpush1.msra.mxu0 0.0
    %312 = vmatprep.subr.mxu0 0.0
    %313 = vmatpush1.msra.mxu0 0.0
    %314 = vmatprep.subr.mxu0 0.0
    %315 = vmatpush1.msra.mxu0 0.0
    %316 = vmatprep.subr.mxu0 0.0
    %317 = vmatpush1.msra.mxu0 %v277
    %318 = vmatprep.subr.mxu0 0.0
    %319 = vmatpush1.msra.mxu0 %v276
    %320 = vmatprep.subr.mxu0 0.0
    %321 = vmatpush2.msra.mxu0 0.0
    %322 = vmatprep.subr.mxu0 0.0
    %323 = vmatpush2.msra.mxu0 0.0
    %324 = vmatprep.subr.mxu0 0.0
    %325 = vmatpush2.msra.mxu0 0.0
    %326 = vmatprep.subr.mxu0 0.0
    %327 = vmatpush2.msra.mxu0 0.0
    %328 = vmatprep.subr.mxu0 0.0
    %329 = vmatpush2.msra.mxu0 0.0
    %330 = vmatprep.subr.mxu0 0.0
    %331 = vmatpush2.msra.mxu0 0.0
    %332 = vmatprep.subr.mxu0 0.0
    %333 = vmatpush2.msra.mxu0 0.0
    %334 = vmatprep.subr.mxu0 0.0
    %335 = vmatpush2.msra.mxu0 0.0
    %336 = vmatprep.subr.mxu0 0.0
    %337 = vmatpush2.msra.mxu0 0.0
    %338 = vmatprep.subr.mxu0 0.0
    %339 = vmatpush2.msra.mxu0 0.0
    %340 = vmatprep.subr.mxu0 0.0
    %341 = vmatpush2.msra.mxu0 0.0
    %342 = vmatprep.subr.mxu0 0.0
    %343 = vmatpush2.msra.mxu0 0.0
    %344 = vmatprep.subr.mxu0 0.0
    %345 = vmatpush2.msra.mxu0 0.0
    %346 = vmatprep.subr.mxu0 0.0
    %347 = vmatpush2.msra.mxu0 0.0
    %348 = vmatprep.subr.mxu0 0.0
    %349 = vmatpush2.msra.mxu0 0.0
    %350 = vmatprep.subr.mxu0 0.0
    %351 = vmatpush2.msra.mxu0 0.0
    %352 = vmatprep.mubr.f32.mxu0 0.0
    %353 = vmatmul.mubr.f32.gmra.mxu0 %v280
    %v354 = vpop.f32.mrf.mxu0
    %v355 = vadd.f32 0.0, %v354
    %v356 = vpop.f32.mrf.mxu0
    %357 = vmatprep.mubr.f32.mxu0 0.0
    %358 = vmatmul.mubr.f32.gmra.mxu0 %v283
    %v359 = vpop.f32.mrf.mxu0
    %v360 = vadd.f32 0.0, %v359
    %v361 = vpop.f32.mrf.mxu0
    %362 = vmatprep.mubr.f32.mxu0 0.0
    %363 = vmatmul.mubr.f32.gmra.mxu0 %v286
    %v364 = vpop.f32.mrf.mxu0
    %v365 = vadd.f32 0.0, %v364
    %v366 = vpop.f32.mrf.mxu0
    %367 = vdwg.mxu0
    %v368 = vld [vmem:[%s5] sm:$0x1]
    %v370 = vlaneseq
    %v371 = vshrl.u32 %v370, 7
    %v372 = vsub.s32 0, %v371
    %v373 = vrot.slane %v368, %v372
    %v376 = vsel %vm89, %v365, 0
    %378 = vmatprep.subr.mxu0 0.0
    %379 = vmatpush1.msra.mxu0 0.0
    %380 = vmatprep.subr.mxu0 0.0
    %381 = vmatpush1.msra.mxu0 0.0
    %382 = vmatprep.subr.mxu0 0.0
    %383 = vmatpush1.msra.mxu0 0.0
    %384 = vmatprep.subr.mxu0 0.0
    %385 = vmatpush1.msra.mxu0 0.0
    %386 = vmatprep.subr.mxu0 0.0
    %387 = vmatpush1.msra.mxu0 0.0
    %388 = vmatprep.subr.mxu0 0.0
    %389 = vmatpush1.msra.mxu0 0.0
    %390 = vmatprep.subr.mxu0 0.0
    %391 = vmatpush1.msra.mxu0 0.0
    %392 = vmatprep.subr.mxu0 0.0
    %393 = vmatpush1.msra.mxu0 0.0
    %394 = vmatprep.subr.mxu0 0.0
    %395 = vmatpush1.msra.mxu0 0.0
    %396 = vmatprep.subr.mxu0 0.0
    %397 = vmatpush1.msra.mxu0 0.0
    %398 = vmatprep.subr.mxu0 0.0
    %399 = vmatpush1.msra.mxu0 0.0
    %400 = vmatprep.subr.mxu0 0.0
    %401 = vmatpush1.msra.mxu0 0.0
    %402 = vmatprep.subr.mxu0 0.0
    %403 = vmatpush1.msra.mxu0 0.0
    %404 = vmatprep.subr.mxu0 0.0
    %405 = vmatpush1.msra.mxu0 %v376
    %406 = vmatprep.subr.mxu0 0.0
    %407 = vmatpush1.msra.mxu0 %v360
    %408 = vmatprep.subr.mxu0 0.0
    %409 = vmatpush1.msra.mxu0 %v355
    %410 = vmatprep.subr.mxu0 0.0
    %411 = vmatpush2.msra.mxu0 0.0
    %412 = vmatprep.subr.mxu0 0.0
    %413 = vmatpush2.msra.mxu0 0.0
    %414 = vmatprep.subr.mxu0 0.0
    %415 = vmatpush2.msra.mxu0 0.0
    %416 = vmatprep.subr.mxu0 0.0
    %417 = vmatpush2.msra.mxu0 0.0
    %418 = vmatprep.subr.mxu0 0.0
    %419 = vmatpush2.msra.mxu0 0.0
    %420 = vmatprep.subr.mxu0 0.0
    %421 = vmatpush2.msra.mxu0 0.0
    %422 = vmatprep.subr.mxu0 0.0
    %423 = vmatpush2.msra.mxu0 0.0
    %424 = vmatprep.subr.mxu0 0.0
    %425 = vmatpush2.msra.mxu0 0.0
    %426 = vmatprep.subr.mxu0 0.0
    %427 = vmatpush2.msra.mxu0 0.0
    %428 = vmatprep.subr.mxu0 0.0
    %429 = vmatpush2.msra.mxu0 0.0
    %430 = vmatprep.subr.mxu0 0.0
    %431 = vmatpush2.msra.mxu0 0.0
    %432 = vmatprep.subr.mxu0 0.0
    %433 = vmatpush2.msra.mxu0 0.0
    %434 = vmatprep.subr.mxu0 0.0
    %435 = vmatpush2.msra.mxu0 0.0
    %436 = vmatprep.subr.mxu0 0.0
    %437 = vmatpush2.msra.mxu0 0.0
    %438 = vmatprep.subr.mxu0 0.0
    %439 = vmatpush2.msra.mxu0 0.0
    %440 = vmatprep.subr.mxu0 0.0
    %441 = vmatpush2.msra.mxu0 0.0
    %442 = vmatprep.mubr.f32.mxu0 0.0
    %443 = vmatmul.mubr.f32.gmra.mxu0 %v182
    %v444 = vpop.f32.mrf.mxu0
    %v445 = vadd.f32 %v373, %v444
    %v446 = vpop.f32.mrf.mxu0
    %447 = vmatprep.mubr.f32.mxu0 0.0
    %448 = vmatmul.mubr.f32.gmra.mxu0 %v185
    %v449 = vpop.f32.mrf.mxu0
    %v450 = vadd.f32 %v373, %v449
    %v451 = vpop.f32.mrf.mxu0
    %452 = vmatprep.mubr.f32.mxu0 0.0
    %453 = vmatmul.mubr.f32.gmra.mxu0 %v188
    %v454 = vpop.f32.mrf.mxu0
    %v455 = vadd.f32 %v373, %v454
    %v456 = vpop.f32.mrf.mxu0
    %457 = vdwg.mxu0
    %v458 = vmax.f32 %v445, 0.0
    %v459 = vmax.f32 %v450, 0.0
    %v460 = vmax.f32 %v455, 0.0
    %v461 = vld [vmem:[%s6] sm:$0xff]
    %v462 = vld [vmem:[%s6 + $0x8] sm:$0xff]
    %v464 = vsel %vm278, %v458, 0
    %v467 = vsel %vm278, %v459, 0
    %v470 = vsel %vm278, %v460, 0
    %472 = vmatprep.subr.mxu0 0.0
    %473 = vmatpush1.msra.mxu0 0.0
    %474 = vmatprep.subr.mxu0 0.0
    %475 = vmatpush1.msra.mxu0 0.0
    %476 = vmatprep.subr.mxu0 0.0
    %477 = vmatpush1.msra.mxu0 0.0
    %478 = vmatprep.subr.mxu0 0.0
    %479 = vmatpush1.msra.mxu0 0.0
    %480 = vmatprep.subr.mxu0 0.0
    %481 = vmatpush1.msra.mxu0 0.0
    %482 = vmatprep.subr.mxu0 0.0
    %483 = vmatpush1.msra.mxu0 0.0
    %484 = vmatprep.subr.mxu0 0.0
    %485 = vmatpush1.msra.mxu0 0.0
    %486 = vmatprep.subr.mxu0 0.0
    %487 = vmatpush1.msra.mxu0 0.0
    %488 = vmatprep.subr.mxu0 0.0
    %489 = vmatpush1.msra.mxu0 0.0
    %490 = vmatprep.subr.mxu0 0.0
    %491 = vmatpush1.msra.mxu0 0.0
    %492 = vmatprep.subr.mxu0 0.0
    %493 = vmatpush1.msra.mxu0 0.0
    %494 = vmatprep.subr.mxu0 0.0
    %495 = vmatpush1.msra.mxu0 0.0
    %496 = vmatprep.subr.mxu0 0.0
    %497 = vmatpush1.msra.mxu0 0.0
    %498 = vmatprep.subr.mxu0 0.0
    %499 = vmatpush1.msra.mxu0 0.0
    %500 = vmatprep.subr.mxu0 0.0
    %501 = vmatpush1.msra.mxu0 %v462
    %502 = vmatprep.subr.mxu0 0.0
    %503 = vmatpush1.msra.mxu0 %v461
    %504 = vmatprep.subr.mxu0 0.0
    %505 = vmatpush2.msra.mxu0 0.0
    %506 = vmatprep.subr.mxu0 0.0
    %507 = vmatpush2.msra.mxu0 0.0
    %508 = vmatprep.subr.mxu0 0.0
    %509 = vmatpush2.msra.mxu0 0.0
    %510 = vmatprep.subr.mxu0 0.0
    %511 = vmatpush2.msra.mxu0 0.0
    %512 = vmatprep.subr.mxu0 0.0
    %513 = vmatpush2.msra.mxu0 0.0
    %514 = vmatprep.subr.mxu0 0.0
    %515 = vmatpush2.msra.mxu0 0.0
    %516 = vmatprep.subr.mxu0 0.0
    %517 = vmatpush2.msra.mxu0 0.0
    %518 = vmatprep.subr.mxu0 0.0
    %519 = vmatpush2.msra.mxu0 0.0
    %520 = vmatprep.subr.mxu0 0.0
    %521 = vmatpush2.msra.mxu0 0.0
    %522 = vmatprep.subr.mxu0 0.0
    %523 = vmatpush2.msra.mxu0 0.0
    %524 = vmatprep.subr.mxu0 0.0
    %525 = vmatpush2.msra.mxu0 0.0
    %526 = vmatprep.subr.mxu0 0.0
    %527 = vmatpush2.msra.mxu0 0.0
    %528 = vmatprep.subr.mxu0 0.0
    %529 = vmatpush2.msra.mxu0 0.0
    %530 = vmatprep.subr.mxu0 0.0
    %531 = vmatpush2.msra.mxu0 0.0
    %532 = vmatprep.subr.mxu0 0.0
    %533 = vmatpush2.msra.mxu0 0.0
    %534 = vmatprep.subr.mxu0 0.0
    %535 = vmatpush2.msra.mxu0 0.0
    %536 = vmatprep.mubr.f32.mxu0 0.0
    %537 = vmatmul.mubr.f32.gmra.mxu0 %v464
    %v538 = vpop.f32.mrf.mxu0
    %v539 = vadd.f32 0.0, %v538
    %v540 = vpop.f32.mrf.mxu0
    %541 = vmatprep.mubr.f32.mxu0 0.0
    %542 = vmatmul.mubr.f32.gmra.mxu0 %v467
    %v543 = vpop.f32.mrf.mxu0
    %v544 = vadd.f32 0.0, %v543
    %v545 = vpop.f32.mrf.mxu0
    %546 = vmatprep.mubr.f32.mxu0 0.0
    %547 = vmatmul.mubr.f32.gmra.mxu0 %v470
    %v548 = vpop.f32.mrf.mxu0
    %v549 = vadd.f32 0.0, %v548
    %v550 = vpop.f32.mrf.mxu0
    %551 = vdwg.mxu0
    %v552 = vld [vmem:[%s7] sm:$0x1]
    %v554 = vlaneseq
    %v555 = vshrl.u32 %v554, 7
    %v556 = vsub.s32 0, %v555
    %v557 = vrot.slane %v552, %v556
    %v560 = vsel %vm89, %v549, 0
    %562 = vmatprep.subr.mxu0 0.0
    %563 = vmatpush1.msra.mxu0 0.0
    %564 = vmatprep.subr.mxu0 0.0
    %565 = vmatpush1.msra.mxu0 0.0
    %566 = vmatprep.subr.mxu0 0.0
    %567 = vmatpush1.msra.mxu0 0.0
    %568 = vmatprep.subr.mxu0 0.0
    %569 = vmatpush1.msra.mxu0 0.0
    %570 = vmatprep.subr.mxu0 0.0
    %571 = vmatpush1.msra.mxu0 0.0
    %572 = vmatprep.subr.mxu0 0.0
    %573 = vmatpush1.msra.mxu0 0.0
    %574 = vmatprep.subr.mxu0 0.0
    %575 = vmatpush1.msra.mxu0 0.0
    %576 = vmatprep.subr.mxu0 0.0
    %577 = vmatpush1.msra.mxu0 0.0
    %578 = vmatprep.subr.mxu0 0.0
    %579 = vmatpush1.msra.mxu0 0.0
    %580 = vmatprep.subr.mxu0 0.0
    %581 = vmatpush1.msra.mxu0 0.0
    %582 = vmatprep.subr.mxu0 0.0
    %583 = vmatpush1.msra.mxu0 0.0
    %584 = vmatprep.subr.mxu0 0.0
    %585 = vmatpush1.msra.mxu0 0.0
    %586 = vmatprep.subr.mxu0 0.0
    %587 = vmatpush1.msra.mxu0 0.0
    %588 = vmatprep.subr.mxu0 0.0
    %589 = vmatpush1.msra.mxu0 %v560
    %590 = vmatprep.subr.mxu0 0.0
    %591 = vmatpush1.msra.mxu0 %v544
    %592 = vmatprep.subr.mxu0 0.0
    %593 = vmatpush1.msra.mxu0 %v539
    %594 = vmatprep.subr.mxu0 0.0
    %595 = vmatpush2.msra.mxu0 0.0
    %596 = vmatprep.subr.mxu0 0.0
    %597 = vmatpush2.msra.mxu0 0.0
    %598 = vmatprep.subr.mxu0 0.0
    %599 = vmatpush2.msra.mxu0 0.0
    %600 = vmatprep.subr.mxu0 0.0
    %601 = vmatpush2.msra.mxu0 0.0
    %602 = vmatprep.subr.mxu0 0.0
    %603 = vmatpush2.msra.mxu0 0.0
    %604 = vmatprep.subr.mxu0 0.0
    %605 = vmatpush2.msra.mxu0 0.0
    %606 = vmatprep.subr.mxu0 0.0
    %607 = vmatpush2.msra.mxu0 0.0
    %608 = vmatprep.subr.mxu0 0.0
    %609 = vmatpush2.msra.mxu0 0.0
    %610 = vmatprep.subr.mxu0 0.0
    %611 = vmatpush2.msra.mxu0 0.0
    %612 = vmatprep.subr.mxu0 0.0
    %613 = vmatpush2.msra.mxu0 0.0
    %614 = vmatprep.subr.mxu0 0.0
    %615 = vmatpush2.msra.mxu0 0.0
    %616 = vmatprep.subr.mxu0 0.0
    %617 = vmatpush2.msra.mxu0 0.0
    %618 = vmatprep.subr.mxu0 0.0
    %619 = vmatpush2.msra.mxu0 0.0
    %620 = vmatprep.subr.mxu0 0.0
    %621 = vmatpush2.msra.mxu0 0.0
    %622 = vmatprep.subr.mxu0 0.0
    %623 = vmatpush2.msra.mxu0 0.0
    %624 = vmatprep.subr.mxu0 0.0
    %625 = vmatpush2.msra.mxu0 0.0
    %626 = vmatprep.mubr.f32.mxu0 0.0
    %627 = vmatmul.mubr.f32.gmra.mxu0 %v182
    %v628 = vpop.f32.mrf.mxu0
    %v629 = vadd.f32 %v557, %v628
    %v630 = vpop.f32.mrf.mxu0
    %631 = vmatprep.mubr.f32.mxu0 0.0
    %632 = vmatmul.mubr.f32.gmra.mxu0 %v185
    %v633 = vpop.f32.mrf.mxu0
    %v634 = vadd.f32 %v557, %v633
    %v635 = vpop.f32.mrf.mxu0
    %636 = vmatprep.mubr.f32.mxu0 0.0
    %637 = vmatmul.mubr.f32.gmra.mxu0 %v188
    %v638 = vpop.f32.mrf.mxu0
    %v639 = vadd.f32 %v557, %v638
    %v640 = vpop.f32.mrf.mxu0
    %641 = vdwg.mxu0
    %vm642 = vcmask 261120
    %v643 = vsel %vm642, %v629, -inf
    %644 = vmax.xlane.f32.xlu0 %v643
    %v645 = vpop.xlane.xlu0 %644
    %v646 = vsel %vm642, %v634, -inf
    %647 = vmax.xlane.f32.xlu0 %v646
    %v648 = vpop.xlane.xlu0 %647
    %vm649 = vcmask 257024
    %v650 = vsel %vm649, %v639, -inf
    %651 = vmax.xlane.f32.xlu0 %v650
    %v652 = vpop.xlane.xlu0 %651
    %v653 = vlaneseq
    %v654 = vshrl.u32 %v653, 7
    %v655 = vadd.s32 %v654, 8
    %v656 = vadd.s32 %v654, 16
    %v657 = vlaneseq
    %v658 = vand.u32 %v657, 127
    %vm659 = vcmp.eq.s32.totalorder %v654, %v658
    %vm660 = vcmp.eq.s32.totalorder %v655, %v658
    %vm661 = vcmp.eq.s32.totalorder %v656, %v658
    %v662 = vsel %vm659, %v645, 0.0
    %v663 = vsel %vm660, %v648, 0.0
    %v664 = vsel %vm661, %v652, 0.0
    %v665 = vsel %vm180, %v662, 0.0
    %v666 = vsel %vm180, %v663, 0.0
    %v667 = vadd.f32 %v665, %v666
    %vm668 = vcmask 158720
    %v669 = vsel %vm668, %v664, 0.0
    %v670 = vadd.f32 %v667, %v669
    %v671 = vrot.slane %v670, 4
    %v672 = vadd.f32 %v670, %v671
    %v673 = vrot.slane %v672, 2
    %v674 = vadd.f32 %v672, %v673
    %v675 = vrot.slane %v674, 1
    %v676 = vadd.f32 %v674, %v675
    %vm677 = vcmp.lt.f32.partialorder %v645, %v676
    %vm678 = vcmp.lt.f32.partialorder %v648, %v676
    %vm679 = vcmp.lt.f32.partialorder %v652, %v676
    %vm680 = vcmp.eq.f32.partialorder %v645, %v676
    %vm681 = vcmp.eq.f32.partialorder %v648, %v676
    %vm682 = vcmp.eq.f32.partialorder %v652, %v676
    %vm683 = vcmp.lt.s32.totalorder %v654, %v658
    %vm684 = vcmp.lt.s32.totalorder %v655, %v658
    %vm685 = vcmp.lt.s32.totalorder %v656, %v658
    %vm686 = vmand %vm680, %vm683
    %vm687 = vmand %vm681, %vm684
    %vm688 = vmand %vm682, %vm685
    %vm689 = vmor %vm677, %vm686
    %vm690 = vmor %vm678, %vm687
    %vm691 = vmor %vm679, %vm688
    %v692 = vld [vmem:[%s8] sm:$0xff]
    %v693 = vld [vmem:[%s8 + $0x8] sm:$0xff]
    %v694 = vld [vmem:[%s8 + $0x10] sm:$0xf]
    %v695 = vsel %vm689, %v692, 0.0
    %v696 = vsel %vm690, %v693, 0.0
    %v697 = vsel %vm691, %v694, 0.0
    %v698 = vsel %vm180, %v695, 0.0
    %v699 = vsel %vm180, %v696, 0.0
    %v700 = vadd.f32 %v698, %v699
    %v701 = vsel %vm668, %v697, 0.0
    %v702 = vadd.f32 %v700, %v701
    %v703 = vrot.slane %v702, 4
    %v704 = vadd.f32 %v702, %v703
    %v705 = vrot.slane %v704, 2
    %v706 = vadd.f32 %v704, %v705
    %v707 = vrot.slane %v706, 1
    %v708 = vadd.f32 %v706, %v707
    %v709 = vld [vmem:[%s10] sm:$0xff]
    %v710 = vld [vmem:[%s10 + $0x8] sm:$0xff]
    %v711 = vld [vmem:[%s10 + $0x10] sm:$0xf]
    %713 = vset.pattern.permute.xlu0 0
    %714 = vperm.xlu0 %713, %v709
    %v715 = vpop.permute.xlu0 %714
    %718 = vset.pattern.permute.xlu0 0
    %719 = vperm.xlu0 %718, %v710
    %v720 = vpop.permute.xlu0 %719
    %723 = vset.pattern.permute.xlu0 0
    %724 = vperm.xlu0 %723, %v711
    %v725 = vpop.permute.xlu0 %724
    %vm727 = vcmp.eq.f32.partialorder %v708, %v715
    %vm728 = vcmp.eq.f32.partialorder %v708, %v720
    %vm729 = vcmp.eq.f32.partialorder %v708, %v725
    %v730 = vld [vmem:[%s9] sm:$0xff]
    %v731 = vld [vmem:[%s9 + $0x8] sm:$0xff]
    %v732 = vld [vmem:[%s9 + $0x10] sm:$0xf]
    %v733 = vsel %vm727, %v730, 0.0
    %v734 = vsel %vm728, %v731, 0.0
    %v735 = vsel %vm729, %v732, 0.0
    %v737 = vsel %vm180, %v733, 0
    %v740 = vsel %vm180, %v734, 0
    %v743 = vsel %vm180, %v735, 0
    %v746 = vsel %vm89, %v639, 0
    %748 = vmatprep.subr.mxu0 0.0
    %749 = vmatpush1.msra.mxu0 0.0
    %750 = vmatprep.subr.mxu0 0.0
    %751 = vmatpush1.msra.mxu0 0.0
    %752 = vmatprep.subr.mxu0 0.0
    %753 = vmatpush1.msra.mxu0 0.0
    %754 = vmatprep.subr.mxu0 0.0
    %755 = vmatpush1.msra.mxu0 0.0
    %756 = vmatprep.subr.mxu0 0.0
    %757 = vmatpush1.msra.mxu0 0.0
    %758 = vmatprep.subr.mxu0 0.0
    %759 = vmatpush1.msra.mxu0 0.0
    %760 = vmatprep.subr.mxu0 0.0
    %761 = vmatpush1.msra.mxu0 0.0
    %762 = vmatprep.subr.mxu0 0.0
    %763 = vmatpush1.msra.mxu0 0.0
    %764 = vmatprep.subr.mxu0 0.0
    %765 = vmatpush1.msra.mxu0 0.0
    %766 = vmatprep.subr.mxu0 0.0
    %767 = vmatpush1.msra.mxu0 0.0
    %768 = vmatprep.subr.mxu0 0.0
    %769 = vmatpush1.msra.mxu0 0.0
    %770 = vmatprep.subr.mxu0 0.0
    %771 = vmatpush1.msra.mxu0 0.0
    %772 = vmatprep.subr.mxu0 0.0
    %773 = vmatpush1.msra.mxu0 0.0
    %774 = vmatprep.subr.mxu0 0.0
    %775 = vmatpush1.msra.mxu0 %v746
    %776 = vmatprep.subr.mxu0 0.0
    %777 = vmatpush1.msra.mxu0 %v634
    %778 = vmatprep.subr.mxu0 0.0
    %779 = vmatpush1.msra.mxu0 %v629
    %780 = vmatprep.subr.mxu0 0.0
    %781 = vmatpush2.msra.mxu0 0.0
    %782 = vmatprep.subr.mxu0 0.0
    %783 = vmatpush2.msra.mxu0 0.0
    %784 = vmatprep.subr.mxu0 0.0
    %785 = vmatpush2.msra.mxu0 0.0
    %786 = vmatprep.subr.mxu0 0.0
    %787 = vmatpush2.msra.mxu0 0.0
    %788 = vmatprep.subr.mxu0 0.0
    %789 = vmatpush2.msra.mxu0 0.0
    %790 = vmatprep.subr.mxu0 0.0
    %791 = vmatpush2.msra.mxu0 0.0
    %792 = vmatprep.subr.mxu0 0.0
    %793 = vmatpush2.msra.mxu0 0.0
    %794 = vmatprep.subr.mxu0 0.0
    %795 = vmatpush2.msra.mxu0 0.0
    %796 = vmatprep.subr.mxu0 0.0
    %797 = vmatpush2.msra.mxu0 0.0
    %798 = vmatprep.subr.mxu0 0.0
    %799 = vmatpush2.msra.mxu0 0.0
    %800 = vmatprep.subr.mxu0 0.0
    %801 = vmatpush2.msra.mxu0 0.0
    %802 = vmatprep.subr.mxu0 0.0
    %803 = vmatpush2.msra.mxu0 0.0
    %804 = vmatprep.subr.mxu0 0.0
    %805 = vmatpush2.msra.mxu0 0.0
    %806 = vmatprep.subr.mxu0 0.0
    %807 = vmatpush2.msra.mxu0 0.0
    %808 = vmatprep.subr.mxu0 0.0
    %809 = vmatpush2.msra.mxu0 0.0
    %810 = vmatprep.subr.mxu0 0.0
    %811 = vmatpush2.msra.mxu0 0.0
    %812 = vmatprep.mubr.f32.mxu0 0.0
    %813 = vmatmul.mubr.f32.gmra.mxu0 %v737
    %v814 = vpop.f32.mrf.mxu0
    %v815 = vadd.f32 0.0, %v814
    %v816 = vpop.f32.mrf.mxu0
    %817 = vmatprep.mubr.f32.mxu0 0.0
    %818 = vmatmul.mubr.f32.gmra.mxu0 %v740
    %v819 = vpop.f32.mrf.mxu0
    %v820 = vadd.f32 0.0, %v819
    %v821 = vpop.f32.mrf.mxu0
    %822 = vmatprep.mubr.f32.mxu0 0.0
    %823 = vmatmul.mubr.f32.gmra.mxu0 %v743
    %v824 = vpop.f32.mrf.mxu0
    %v825 = vadd.f32 0.0, %v824
    %v826 = vpop.f32.mrf.mxu0
    %827 = vdwg.mxu0
    %v828 = vld [vmem:[%s11] sm:$0xff]
    %v829 = vld [vmem:[%s11 + $0x8] sm:$0xff]
    %v830 = vld [vmem:[%s11 + $0x10] sm:$0xff]
    %v831 = vld [vmem:[%s11 + $0x18] sm:$0xff]
    %v832 = vld [vmem:[%s11 + $0x20] sm:$0xff]
    %v833 = vld [vmem:[%s11 + $0x28] sm:$0xff]
    %v834 = vld [vmem:[%s11 + $0x30] sm:$0xff]
    %v835 = vld [vmem:[%s11 + $0x38] sm:$0xff]
    %v836 = vld [vmem:[%s11 + $0x40] sm:$0xff]
    %v837 = vld [vmem:[%s11 + $0x48] sm:$0xff]
    %v838 = vld [vmem:[%s11 + $0x50] sm:$0xff]
    %v839 = vld [vmem:[%s11 + $0x58] sm:$0xff]
    %v840 = vld [vmem:[%s11 + $0x60] sm:$0xff]
    %v841 = vld [vmem:[%s11 + $0x68] sm:$0xff]
    %v842 = vld [vmem:[%s11 + $0x70] sm:$0xff]
    %v843 = vld [vmem:[%s11 + $0x78] sm:$0xff]
    %v844 = vld [vmem:[%s11 + $0x80] sm:$0xff]
    %v845 = vld [vmem:[%s11 + $0x88] sm:$0xff]
    %v846 = vld [vmem:[%s11 + $0x90] sm:$0xff]
    %v847 = vld [vmem:[%s11 + $0x98] sm:$0xff]
    %v848 = vld [vmem:[%s11 + $0xa0] sm:$0xff]
    %v849 = vld [vmem:[%s11 + $0xa8] sm:$0xff]
    %v850 = vld [vmem:[%s11 + $0xb0] sm:$0xff]
    %v851 = vld [vmem:[%s11 + $0xb8] sm:$0xff]
    %v852 = vld [vmem:[%s11 + $0xc0] sm:$0xff]
    %v853 = vld [vmem:[%s11 + $0xc8] sm:$0xff]
    %v854 = vld [vmem:[%s11 + $0xd0] sm:$0xff]
    %v855 = vld [vmem:[%s11 + $0xd8] sm:$0xff]
    %v856 = vld [vmem:[%s11 + $0xe0] sm:$0xff]
    %v857 = vld [vmem:[%s11 + $0xe8] sm:$0xff]
    %v858 = vld [vmem:[%s11 + $0xf0] sm:$0xff]
    %v859 = vld [vmem:[%s11 + $0xf8] sm:$0xff]
    %v860 = vld [vmem:[%s11 + $0x100] sm:$0xff]
    %v861 = vld [vmem:[%s11 + $0x108] sm:$0xff]
    %v862 = vld [vmem:[%s11 + $0x110] sm:$0xff]
    %v863 = vld [vmem:[%s11 + $0x118] sm:$0xff]
    %v864 = vld [vmem:[%s11 + $0x120] sm:$0xff]
    %v865 = vld [vmem:[%s11 + $0x128] sm:$0xff]
    %v866 = vld [vmem:[%s11 + $0x130] sm:$0xff]
    %v867 = vld [vmem:[%s11 + $0x138] sm:$0xff]
    %v868 = vld [vmem:[%s11 + $0x140] sm:$0xff]
    %v869 = vld [vmem:[%s11 + $0x148] sm:$0xff]
    %v870 = vld [vmem:[%s11 + $0x150] sm:$0xff]
    %v871 = vld [vmem:[%s11 + $0x158] sm:$0xff]
    %v872 = vld [vmem:[%s11 + $0x160] sm:$0xff]
    %v873 = vld [vmem:[%s11 + $0x168] sm:$0xff]
    %v874 = vld [vmem:[%s11 + $0x170] sm:$0xff]
    %v875 = vld [vmem:[%s11 + $0x178] sm:$0xff]
    %v876 = vld [vmem:[%s11 + $0x180] sm:$0xff]
    %v877 = vld [vmem:[%s11 + $0x188] sm:$0xff]
    %v878 = vld [vmem:[%s11 + $0x190] sm:$0xff]
    %v879 = vld [vmem:[%s11 + $0x198] sm:$0xff]
    %v880 = vld [vmem:[%s11 + $0x1a0] sm:$0xff]
    %v881 = vld [vmem:[%s11 + $0x1a8] sm:$0xff]
    %v882 = vld [vmem:[%s11 + $0x1b0] sm:$0xff]
    %v883 = vld [vmem:[%s11 + $0x1b8] sm:$0xff]
    %v884 = vld [vmem:[%s11 + $0x1c0] sm:$0xff]
    %v885 = vld [vmem:[%s11 + $0x1c8] sm:$0xff]
    %v886 = vld [vmem:[%s11 + $0x1d0] sm:$0xff]
    %v887 = vld [vmem:[%s11 + $0x1d8] sm:$0xff]
    %v888 = vld [vmem:[%s11 + $0x1e0] sm:$0xff]
    %v889 = vld [vmem:[%s11 + $0x1e8] sm:$0xff]
    %v890 = vld [vmem:[%s11 + $0x1f0] sm:$0xff]
    %v891 = vld [vmem:[%s11 + $0x1f8] sm:$0xff]
    %v892 = vld [vmem:[%s11 + $0x200] sm:$0xff]
    %v893 = vld [vmem:[%s11 + $0x208] sm:$0xff]
    %v894 = vld [vmem:[%s11 + $0x210] sm:$0xff]
    %v895 = vld [vmem:[%s11 + $0x218] sm:$0xff]
    %v896 = vld [vmem:[%s11 + $0x220] sm:$0xff]
    %v897 = vld [vmem:[%s11 + $0x228] sm:$0xff]
    %v898 = vld [vmem:[%s11 + $0x230] sm:$0xff]
    %v899 = vld [vmem:[%s11 + $0x238] sm:$0xff]
    %v900 = vld [vmem:[%s11 + $0x240] sm:$0xff]
    %v901 = vld [vmem:[%s11 + $0x248] sm:$0xff]
    %v902 = vld [vmem:[%s11 + $0x250] sm:$0xff]
    %v903 = vld [vmem:[%s11 + $0x258] sm:$0xff]
    %v904 = vld [vmem:[%s11 + $0x260] sm:$0xff]
    %v905 = vld [vmem:[%s11 + $0x268] sm:$0xff]
    %v906 = vld [vmem:[%s11 + $0x270] sm:$0xff]
    %v907 = vld [vmem:[%s11 + $0x278] sm:$0xff]
    %v909 = vsel %vm180, %v828, 0
    %v912 = vsel %vm180, %v829, 0
    %v915 = vsel %vm180, %v830, 0
    %v918 = vsel %vm180, %v831, 0
    %v921 = vsel %vm180, %v832, 0
    %v924 = vsel %vm180, %v833, 0
    %v927 = vsel %vm180, %v834, 0
    %v930 = vsel %vm180, %v835, 0
    %v933 = vsel %vm180, %v836, 0
    %v936 = vsel %vm180, %v837, 0
    %v939 = vsel %vm180, %v838, 0
    %v942 = vsel %vm180, %v839, 0
    %v945 = vsel %vm180, %v840, 0
    %v948 = vsel %vm180, %v841, 0
    %v951 = vsel %vm180, %v842, 0
    %v954 = vsel %vm180, %v843, 0
    %v957 = vsel %vm180, %v844, 0
    %v960 = vsel %vm180, %v845, 0
    %v963 = vsel %vm180, %v846, 0
    %v966 = vsel %vm180, %v847, 0
    %v969 = vsel %vm180, %v848, 0
    %v972 = vsel %vm180, %v849, 0
    %v975 = vsel %vm180, %v850, 0
    %v978 = vsel %vm180, %v851, 0
    %v981 = vsel %vm180, %v852, 0
    %v984 = vsel %vm180, %v853, 0
    %v987 = vsel %vm180, %v854, 0
    %v990 = vsel %vm180, %v855, 0
    %v993 = vsel %vm180, %v856, 0
    %v996 = vsel %vm180, %v857, 0
    %v999 = vsel %vm180, %v858, 0
    %v1002 = vsel %vm180, %v859, 0
    %v1005 = vsel %vm180, %v860, 0
    %v1008 = vsel %vm180, %v861, 0
    %v1011 = vsel %vm180, %v862, 0
    %v1014 = vsel %vm180, %v863, 0
    %v1017 = vsel %vm180, %v864, 0
    %v1020 = vsel %vm180, %v865, 0
    %v1023 = vsel %vm180, %v866, 0
    %v1026 = vsel %vm180, %v867, 0
    %v1029 = vsel %vm180, %v868, 0
    %v1032 = vsel %vm180, %v869, 0
    %v1035 = vsel %vm180, %v870, 0
    %v1038 = vsel %vm180, %v871, 0
    %v1041 = vsel %vm180, %v872, 0
    %v1044 = vsel %vm180, %v873, 0
    %v1047 = vsel %vm180, %v874, 0
    %v1050 = vsel %vm180, %v875, 0
    %v1053 = vsel %vm180, %v876, 0
    %v1056 = vsel %vm180, %v877, 0
    %v1059 = vsel %vm180, %v878, 0
    %v1062 = vsel %vm180, %v879, 0
    %v1065 = vsel %vm180, %v880, 0
    %v1068 = vsel %vm180, %v881, 0
    %v1071 = vsel %vm180, %v882, 0
    %v1074 = vsel %vm180, %v883, 0
    %v1077 = vsel %vm180, %v884, 0
    %v1080 = vsel %vm180, %v885, 0
    %v1083 = vsel %vm180, %v886, 0
    %v1086 = vsel %vm180, %v887, 0
    %v1089 = vsel %vm180, %v888, 0
    %v1092 = vsel %vm180, %v889, 0
    %v1095 = vsel %vm180, %v890, 0
    %v1098 = vsel %vm180, %v891, 0
    %v1101 = vsel %vm180, %v892, 0
    %v1104 = vsel %vm180, %v893, 0
    %v1107 = vsel %vm180, %v894, 0
    %v1110 = vsel %vm180, %v895, 0
    %v1113 = vsel %vm180, %v896, 0
    %v1116 = vsel %vm180, %v897, 0
    %v1119 = vsel %vm180, %v898, 0
    %v1122 = vsel %vm180, %v899, 0
    %v1125 = vsel %vm180, %v900, 0
    %v1128 = vsel %vm180, %v901, 0
    %v1131 = vsel %vm180, %v902, 0
    %v1134 = vsel %vm180, %v903, 0
    %v1137 = vsel %vm180, %v904, 0
    %v1140 = vsel %vm180, %v905, 0
    %v1143 = vsel %vm180, %v906, 0
    %v1146 = vsel %vm180, %v907, 0
    %v1149 = vsel %vm89, %v825, 0
    %1151 = vmatprep.subr.mxu0 0.0
    %1152 = vmatpush1.msra.mxu0 0.0
    %1153 = vmatprep.subr.mxu0 0.0
    %1154 = vmatpush1.msra.mxu0 0.0
    %1155 = vmatprep.subr.mxu0 0.0
    %1156 = vmatpush1.msra.mxu0 0.0
    %1157 = vmatprep.subr.mxu0 0.0
    %1158 = vmatpush1.msra.mxu0 0.0
    %1159 = vmatprep.subr.mxu0 0.0
    %1160 = vmatpush1.msra.mxu0 0.0
    %1161 = vmatprep.subr.mxu0 0.0
    %1162 = vmatpush1.msra.mxu0 0.0
    %1163 = vmatprep.subr.mxu0 0.0
    %1164 = vmatpush1.msra.mxu0 0.0
    %1165 = vmatprep.subr.mxu0 0.0
    %1166 = vmatpush1.msra.mxu0 0.0
    %1167 = vmatprep.subr.mxu0 0.0
    %1168 = vmatpush1.msra.mxu0 0.0
    %1169 = vmatprep.subr.mxu0 0.0
    %1170 = vmatpush1.msra.mxu0 0.0
    %1171 = vmatprep.subr.mxu0 0.0
    %1172 = vmatpush1.msra.mxu0 0.0
    %1173 = vmatprep.subr.mxu0 0.0
    %1174 = vmatpush1.msra.mxu0 0.0
    %1175 = vmatprep.subr.mxu0 0.0
    %1176 = vmatpush1.msra.mxu0 0.0
    %1177 = vmatprep.subr.mxu0 0.0
    %1178 = vmatpush1.msra.mxu0 %v1149
    %1179 = vmatprep.subr.mxu0 0.0
    %1180 = vmatpush1.msra.mxu0 %v820
    %1181 = vmatprep.subr.mxu0 0.0
    %1182 = vmatpush1.msra.mxu0 %v815
    %1183 = vmatprep.subr.mxu0 0.0
    %1184 = vmatpush2.msra.mxu0 0.0
    %1185 = vmatprep.subr.mxu0 0.0
    %1186 = vmatpush2.msra.mxu0 0.0
    %1187 = vmatprep.subr.mxu0 0.0
    %1188 = vmatpush2.msra.mxu0 0.0
    %1189 = vmatprep.subr.mxu0 0.0
    %1190 = vmatpush2.msra.mxu0 0.0
    %1191 = vmatprep.subr.mxu0 0.0
    %1192 = vmatpush2.msra.mxu0 0.0
    %1193 = vmatprep.subr.mxu0 0.0
    %1194 = vmatpush2.msra.mxu0 0.0
    %1195 = vmatprep.subr.mxu0 0.0
    %1196 = vmatpush2.msra.mxu0 0.0
    %1197 = vmatprep.subr.mxu0 0.0
    %1198 = vmatpush2.msra.mxu0 0.0
    %1199 = vmatprep.subr.mxu0 0.0
    %1200 = vmatpush2.msra.mxu0 0.0
    %1201 = vmatprep.subr.mxu0 0.0
    %1202 = vmatpush2.msra.mxu0 0.0
    %1203 = vmatprep.subr.mxu0 0.0
    %1204 = vmatpush2.msra.mxu0 0.0
    %1205 = vmatprep.subr.mxu0 0.0
    %1206 = vmatpush2.msra.mxu0 0.0
    %1207 = vmatprep.subr.mxu0 0.0
    %1208 = vmatpush2.msra.mxu0 0.0
    %1209 = vmatprep.subr.mxu0 0.0
    %1210 = vmatpush2.msra.mxu0 0.0
    %1211 = vmatprep.subr.mxu0 0.0
    %1212 = vmatpush2.msra.mxu0 0.0
    %1213 = vmatprep.subr.mxu0 0.0
    %1214 = vmatpush2.msra.mxu0 0.0
    %1215 = vmatprep.mubr.f32.mxu0 0.0
    %1216 = vmatmul.mubr.f32.gmra.mxu0 %v909
    %v1217 = vpop.f32.mrf.mxu0
    %v1218 = vadd.f32 0.0, %v1217
    %v1219 = vpop.f32.mrf.mxu0
    %1220 = vmatprep.mubr.f32.mxu0 0.0
    %1221 = vmatmul.mubr.f32.gmra.mxu0 %v912
    %v1222 = vpop.f32.mrf.mxu0
    %v1223 = vadd.f32 0.0, %v1222
    %v1224 = vpop.f32.mrf.mxu0
    %1225 = vmatprep.mubr.f32.mxu0 0.0
    %1226 = vmatmul.mubr.f32.gmra.mxu0 %v915
    %v1227 = vpop.f32.mrf.mxu0
    %v1228 = vadd.f32 0.0, %v1227
    %v1229 = vpop.f32.mrf.mxu0
    %1230 = vmatprep.mubr.f32.mxu0 0.0
    %1231 = vmatmul.mubr.f32.gmra.mxu0 %v918
    %v1232 = vpop.f32.mrf.mxu0
    %v1233 = vadd.f32 0.0, %v1232
    %v1234 = vpop.f32.mrf.mxu0
    %1235 = vmatprep.mubr.f32.mxu0 0.0
    %1236 = vmatmul.mubr.f32.gmra.mxu0 %v921
    %v1237 = vpop.f32.mrf.mxu0
    %v1238 = vadd.f32 0.0, %v1237
    %v1239 = vpop.f32.mrf.mxu0
    %1240 = vmatprep.mubr.f32.mxu0 0.0
    %1241 = vmatmul.mubr.f32.gmra.mxu0 %v924
    %v1242 = vpop.f32.mrf.mxu0
    %v1243 = vadd.f32 0.0, %v1242
    %v1244 = vpop.f32.mrf.mxu0
    %1245 = vmatprep.mubr.f32.mxu0 0.0
    %1246 = vmatmul.mubr.f32.gmra.mxu0 %v927
    %v1247 = vpop.f32.mrf.mxu0
    %v1248 = vadd.f32 0.0, %v1247
    %v1249 = vpop.f32.mrf.mxu0
    %1250 = vmatprep.mubr.f32.mxu0 0.0
    %1251 = vmatmul.mubr.f32.gmra.mxu0 %v930
    %v1252 = vpop.f32.mrf.mxu0
    %v1253 = vadd.f32 0.0, %v1252
    %v1254 = vpop.f32.mrf.mxu0
    %1255 = vmatprep.mubr.f32.mxu0 0.0
    %1256 = vmatmul.mubr.f32.gmra.mxu0 %v933
    %v1257 = vpop.f32.mrf.mxu0
    %v1258 = vadd.f32 0.0, %v1257
    %v1259 = vpop.f32.mrf.mxu0
    %1260 = vmatprep.mubr.f32.mxu0 0.0
    %1261 = vmatmul.mubr.f32.gmra.mxu0 %v936
    %v1262 = vpop.f32.mrf.mxu0
    %v1263 = vadd.f32 0.0, %v1262
    %v1264 = vpop.f32.mrf.mxu0
    %1265 = vmatprep.mubr.f32.mxu0 0.0
    %1266 = vmatmul.mubr.f32.gmra.mxu0 %v939
    %v1267 = vpop.f32.mrf.mxu0
    %v1268 = vadd.f32 0.0, %v1267
    %v1269 = vpop.f32.mrf.mxu0
    %1270 = vmatprep.mubr.f32.mxu0 0.0
    %1271 = vmatmul.mubr.f32.gmra.mxu0 %v942
    %v1272 = vpop.f32.mrf.mxu0
    %v1273 = vadd.f32 0.0, %v1272
    %v1274 = vpop.f32.mrf.mxu0
    %1275 = vmatprep.mubr.f32.mxu0 0.0
    %1276 = vmatmul.mubr.f32.gmra.mxu0 %v945
    %v1277 = vpop.f32.mrf.mxu0
    %v1278 = vadd.f32 0.0, %v1277
    %v1279 = vpop.f32.mrf.mxu0
    %1280 = vmatprep.mubr.f32.mxu0 0.0
    %1281 = vmatmul.mubr.f32.gmra.mxu0 %v948
    %v1282 = vpop.f32.mrf.mxu0
    %v1283 = vadd.f32 0.0, %v1282
    %v1284 = vpop.f32.mrf.mxu0
    %1285 = vmatprep.mubr.f32.mxu0 0.0
    %1286 = vmatmul.mubr.f32.gmra.mxu0 %v951
    %v1287 = vpop.f32.mrf.mxu0
    %v1288 = vadd.f32 0.0, %v1287
    %v1289 = vpop.f32.mrf.mxu0
    %1290 = vmatprep.mubr.f32.mxu0 0.0
    %1291 = vmatmul.mubr.f32.gmra.mxu0 %v954
    %v1292 = vpop.f32.mrf.mxu0
    %v1293 = vadd.f32 0.0, %v1292
    %v1294 = vpop.f32.mrf.mxu0
    %1295 = vmatprep.mubr.f32.mxu0 0.0
    %1296 = vmatmul.mubr.f32.gmra.mxu0 %v957
    %v1297 = vpop.f32.mrf.mxu0
    %v1298 = vadd.f32 0.0, %v1297
    %v1299 = vpop.f32.mrf.mxu0
    %1300 = vmatprep.mubr.f32.mxu0 0.0
    %1301 = vmatmul.mubr.f32.gmra.mxu0 %v960
    %v1302 = vpop.f32.mrf.mxu0
    %v1303 = vadd.f32 0.0, %v1302
    %v1304 = vpop.f32.mrf.mxu0
    %1305 = vmatprep.mubr.f32.mxu0 0.0
    %1306 = vmatmul.mubr.f32.gmra.mxu0 %v963
    %v1307 = vpop.f32.mrf.mxu0
    %v1308 = vadd.f32 0.0, %v1307
    %v1309 = vpop.f32.mrf.mxu0
    %1310 = vmatprep.mubr.f32.mxu0 0.0
    %1311 = vmatmul.mubr.f32.gmra.mxu0 %v966
    %v1312 = vpop.f32.mrf.mxu0
    %v1313 = vadd.f32 0.0, %v1312
    %v1314 = vpop.f32.mrf.mxu0
    %1315 = vmatprep.mubr.f32.mxu0 0.0
    %1316 = vmatmul.mubr.f32.gmra.mxu0 %v969
    %v1317 = vpop.f32.mrf.mxu0
    %v1318 = vadd.f32 0.0, %v1317
    %v1319 = vpop.f32.mrf.mxu0
    %1320 = vmatprep.mubr.f32.mxu0 0.0
    %1321 = vmatmul.mubr.f32.gmra.mxu0 %v972
    %v1322 = vpop.f32.mrf.mxu0
    %v1323 = vadd.f32 0.0, %v1322
    %v1324 = vpop.f32.mrf.mxu0
    %1325 = vmatprep.mubr.f32.mxu0 0.0
    %1326 = vmatmul.mubr.f32.gmra.mxu0 %v975
    %v1327 = vpop.f32.mrf.mxu0
    %v1328 = vadd.f32 0.0, %v1327
    %v1329 = vpop.f32.mrf.mxu0
    %1330 = vmatprep.mubr.f32.mxu0 0.0
    %1331 = vmatmul.mubr.f32.gmra.mxu0 %v978
    %v1332 = vpop.f32.mrf.mxu0
    %v1333 = vadd.f32 0.0, %v1332
    %v1334 = vpop.f32.mrf.mxu0
    %1335 = vmatprep.mubr.f32.mxu0 0.0
    %1336 = vmatmul.mubr.f32.gmra.mxu0 %v981
    %v1337 = vpop.f32.mrf.mxu0
    %v1338 = vadd.f32 0.0, %v1337
    %v1339 = vpop.f32.mrf.mxu0
    %1340 = vmatprep.mubr.f32.mxu0 0.0
    %1341 = vmatmul.mubr.f32.gmra.mxu0 %v984
    %v1342 = vpop.f32.mrf.mxu0
    %v1343 = vadd.f32 0.0, %v1342
    %v1344 = vpop.f32.mrf.mxu0
    %1345 = vmatprep.mubr.f32.mxu0 0.0
    %1346 = vmatmul.mubr.f32.gmra.mxu0 %v987
    %v1347 = vpop.f32.mrf.mxu0
    %v1348 = vadd.f32 0.0, %v1347
    %v1349 = vpop.f32.mrf.mxu0
    %1350 = vmatprep.mubr.f32.mxu0 0.0
    %1351 = vmatmul.mubr.f32.gmra.mxu0 %v990
    %v1352 = vpop.f32.mrf.mxu0
    %v1353 = vadd.f32 0.0, %v1352
    %v1354 = vpop.f32.mrf.mxu0
    %1355 = vmatprep.mubr.f32.mxu0 0.0
    %1356 = vmatmul.mubr.f32.gmra.mxu0 %v993
    %v1357 = vpop.f32.mrf.mxu0
    %v1358 = vadd.f32 0.0, %v1357
    %v1359 = vpop.f32.mrf.mxu0
    %1360 = vmatprep.mubr.f32.mxu0 0.0
    %1361 = vmatmul.mubr.f32.gmra.mxu0 %v996
    %v1362 = vpop.f32.mrf.mxu0
    %v1363 = vadd.f32 0.0, %v1362
    %v1364 = vpop.f32.mrf.mxu0
    %1365 = vmatprep.mubr.f32.mxu0 0.0
    %1366 = vmatmul.mubr.f32.gmra.mxu0 %v999
    %v1367 = vpop.f32.mrf.mxu0
    %v1368 = vadd.f32 0.0, %v1367
    %v1369 = vpop.f32.mrf.mxu0
    %1370 = vmatprep.mubr.f32.mxu0 0.0
    %1371 = vmatmul.mubr.f32.gmra.mxu0 %v1002
    %v1372 = vpop.f32.mrf.mxu0
    %v1373 = vadd.f32 0.0, %v1372
    %v1374 = vpop.f32.mrf.mxu0
    %1375 = vmatprep.mubr.f32.mxu0 0.0
    %1376 = vmatmul.mubr.f32.gmra.mxu0 %v1005
    %v1377 = vpop.f32.mrf.mxu0
    %v1378 = vadd.f32 0.0, %v1377
    %v1379 = vpop.f32.mrf.mxu0
    %1380 = vmatprep.mubr.f32.mxu0 0.0
    %1381 = vmatmul.mubr.f32.gmra.mxu0 %v1008
    %v1382 = vpop.f32.mrf.mxu0
    %v1383 = vadd.f32 0.0, %v1382
    %v1384 = vpop.f32.mrf.mxu0
    %1385 = vmatprep.mubr.f32.mxu0 0.0
    %1386 = vmatmul.mubr.f32.gmra.mxu0 %v1011
    %v1387 = vpop.f32.mrf.mxu0
    %v1388 = vadd.f32 0.0, %v1387
    %v1389 = vpop.f32.mrf.mxu0
    %1390 = vmatprep.mubr.f32.mxu0 0.0
    %1391 = vmatmul.mubr.f32.gmra.mxu0 %v1014
    %v1392 = vpop.f32.mrf.mxu0
    %v1393 = vadd.f32 0.0, %v1392
    %v1394 = vpop.f32.mrf.mxu0
    %1395 = vmatprep.mubr.f32.mxu0 0.0
    %1396 = vmatmul.mubr.f32.gmra.mxu0 %v1017
    %v1397 = vpop.f32.mrf.mxu0
    %v1398 = vadd.f32 0.0, %v1397
    %v1399 = vpop.f32.mrf.mxu0
    %1400 = vmatprep.mubr.f32.mxu0 0.0
    %1401 = vmatmul.mubr.f32.gmra.mxu0 %v1020
    %v1402 = vpop.f32.mrf.mxu0
    %v1403 = vadd.f32 0.0, %v1402
    %v1404 = vpop.f32.mrf.mxu0
    %1405 = vmatprep.mubr.f32.mxu0 0.0
    %1406 = vmatmul.mubr.f32.gmra.mxu0 %v1023
    %v1407 = vpop.f32.mrf.mxu0
    %v1408 = vadd.f32 0.0, %v1407
    %v1409 = vpop.f32.mrf.mxu0
    %1410 = vmatprep.mubr.f32.mxu0 0.0
    %1411 = vmatmul.mubr.f32.gmra.mxu0 %v1026
    %v1412 = vpop.f32.mrf.mxu0
    %v1413 = vadd.f32 0.0, %v1412
    %v1414 = vpop.f32.mrf.mxu0
    %1415 = vmatprep.mubr.f32.mxu0 0.0
    %1416 = vmatmul.mubr.f32.gmra.mxu0 %v1029
    %v1417 = vpop.f32.mrf.mxu0
    %v1418 = vadd.f32 0.0, %v1417
    %v1419 = vpop.f32.mrf.mxu0
    %1420 = vmatprep.mubr.f32.mxu0 0.0
    %1421 = vmatmul.mubr.f32.gmra.mxu0 %v1032
    %v1422 = vpop.f32.mrf.mxu0
    %v1423 = vadd.f32 0.0, %v1422
    %v1424 = vpop.f32.mrf.mxu0
    %1425 = vmatprep.mubr.f32.mxu0 0.0
    %1426 = vmatmul.mubr.f32.gmra.mxu0 %v1035
    %v1427 = vpop.f32.mrf.mxu0
    %v1428 = vadd.f32 0.0, %v1427
    %v1429 = vpop.f32.mrf.mxu0
    %1430 = vmatprep.mubr.f32.mxu0 0.0
    %1431 = vmatmul.mubr.f32.gmra.mxu0 %v1038
    %v1432 = vpop.f32.mrf.mxu0
    %v1433 = vadd.f32 0.0, %v1432
    %v1434 = vpop.f32.mrf.mxu0
    %1435 = vmatprep.mubr.f32.mxu0 0.0
    %1436 = vmatmul.mubr.f32.gmra.mxu0 %v1041
    %v1437 = vpop.f32.mrf.mxu0
    %v1438 = vadd.f32 0.0, %v1437
    %v1439 = vpop.f32.mrf.mxu0
    %1440 = vmatprep.mubr.f32.mxu0 0.0
    %1441 = vmatmul.mubr.f32.gmra.mxu0 %v1044
    %v1442 = vpop.f32.mrf.mxu0
    %v1443 = vadd.f32 0.0, %v1442
    %v1444 = vpop.f32.mrf.mxu0
    %1445 = vmatprep.mubr.f32.mxu0 0.0
    %1446 = vmatmul.mubr.f32.gmra.mxu0 %v1047
    %v1447 = vpop.f32.mrf.mxu0
    %v1448 = vadd.f32 0.0, %v1447
    %v1449 = vpop.f32.mrf.mxu0
    %1450 = vmatprep.mubr.f32.mxu0 0.0
    %1451 = vmatmul.mubr.f32.gmra.mxu0 %v1050
    %v1452 = vpop.f32.mrf.mxu0
    %v1453 = vadd.f32 0.0, %v1452
    %v1454 = vpop.f32.mrf.mxu0
    %1455 = vmatprep.mubr.f32.mxu0 0.0
    %1456 = vmatmul.mubr.f32.gmra.mxu0 %v1053
    %v1457 = vpop.f32.mrf.mxu0
    %v1458 = vadd.f32 0.0, %v1457
    %v1459 = vpop.f32.mrf.mxu0
    %1460 = vmatprep.mubr.f32.mxu0 0.0
    %1461 = vmatmul.mubr.f32.gmra.mxu0 %v1056
    %v1462 = vpop.f32.mrf.mxu0
    %v1463 = vadd.f32 0.0, %v1462
    %v1464 = vpop.f32.mrf.mxu0
    %1465 = vmatprep.mubr.f32.mxu0 0.0
    %1466 = vmatmul.mubr.f32.gmra.mxu0 %v1059
    %v1467 = vpop.f32.mrf.mxu0
    %v1468 = vadd.f32 0.0, %v1467
    %v1469 = vpop.f32.mrf.mxu0
    %1470 = vmatprep.mubr.f32.mxu0 0.0
    %1471 = vmatmul.mubr.f32.gmra.mxu0 %v1062
    %v1472 = vpop.f32.mrf.mxu0
    %v1473 = vadd.f32 0.0, %v1472
    %v1474 = vpop.f32.mrf.mxu0
    %1475 = vmatprep.mubr.f32.mxu0 0.0
    %1476 = vmatmul.mubr.f32.gmra.mxu0 %v1065
    %v1477 = vpop.f32.mrf.mxu0
    %v1478 = vadd.f32 0.0, %v1477
    %v1479 = vpop.f32.mrf.mxu0
    %1480 = vmatprep.mubr.f32.mxu0 0.0
    %1481 = vmatmul.mubr.f32.gmra.mxu0 %v1068
    %v1482 = vpop.f32.mrf.mxu0
    %v1483 = vadd.f32 0.0, %v1482
    %v1484 = vpop.f32.mrf.mxu0
    %1485 = vmatprep.mubr.f32.mxu0 0.0
    %1486 = vmatmul.mubr.f32.gmra.mxu0 %v1071
    %v1487 = vpop.f32.mrf.mxu0
    %v1488 = vadd.f32 0.0, %v1487
    %v1489 = vpop.f32.mrf.mxu0
    %1490 = vmatprep.mubr.f32.mxu0 0.0
    %1491 = vmatmul.mubr.f32.gmra.mxu0 %v1074
    %v1492 = vpop.f32.mrf.mxu0
    %v1493 = vadd.f32 0.0, %v1492
    %v1494 = vpop.f32.mrf.mxu0
    %1495 = vmatprep.mubr.f32.mxu0 0.0
    %1496 = vmatmul.mubr.f32.gmra.mxu0 %v1077
    %v1497 = vpop.f32.mrf.mxu0
    %v1498 = vadd.f32 0.0, %v1497
    %v1499 = vpop.f32.mrf.mxu0
    %1500 = vmatprep.mubr.f32.mxu0 0.0
    %1501 = vmatmul.mubr.f32.gmra.mxu0 %v1080
    %v1502 = vpop.f32.mrf.mxu0
    %v1503 = vadd.f32 0.0, %v1502
    %v1504 = vpop.f32.mrf.mxu0
    %1505 = vmatprep.mubr.f32.mxu0 0.0
    %1506 = vmatmul.mubr.f32.gmra.mxu0 %v1083
    %v1507 = vpop.f32.mrf.mxu0
    %v1508 = vadd.f32 0.0, %v1507
    %v1509 = vpop.f32.mrf.mxu0
    %1510 = vmatprep.mubr.f32.mxu0 0.0
    %1511 = vmatmul.mubr.f32.gmra.mxu0 %v1086
    %v1512 = vpop.f32.mrf.mxu0
    %v1513 = vadd.f32 0.0, %v1512
    %v1514 = vpop.f32.mrf.mxu0
    %1515 = vmatprep.mubr.f32.mxu0 0.0
    %1516 = vmatmul.mubr.f32.gmra.mxu0 %v1089
    %v1517 = vpop.f32.mrf.mxu0
    %v1518 = vadd.f32 0.0, %v1517
    %v1519 = vpop.f32.mrf.mxu0
    %1520 = vmatprep.mubr.f32.mxu0 0.0
    %1521 = vmatmul.mubr.f32.gmra.mxu0 %v1092
    %v1522 = vpop.f32.mrf.mxu0
    %v1523 = vadd.f32 0.0, %v1522
    %v1524 = vpop.f32.mrf.mxu0
    %1525 = vmatprep.mubr.f32.mxu0 0.0
    %1526 = vmatmul.mubr.f32.gmra.mxu0 %v1095
    %v1527 = vpop.f32.mrf.mxu0
    %v1528 = vadd.f32 0.0, %v1527
    %v1529 = vpop.f32.mrf.mxu0
    %1530 = vmatprep.mubr.f32.mxu0 0.0
    %1531 = vmatmul.mubr.f32.gmra.mxu0 %v1098
    %v1532 = vpop.f32.mrf.mxu0
    %v1533 = vadd.f32 0.0, %v1532
    %v1534 = vpop.f32.mrf.mxu0
    %1535 = vmatprep.mubr.f32.mxu0 0.0
    %1536 = vmatmul.mubr.f32.gmra.mxu0 %v1101
    %v1537 = vpop.f32.mrf.mxu0
    %v1538 = vadd.f32 0.0, %v1537
    %v1539 = vpop.f32.mrf.mxu0
    %1540 = vmatprep.mubr.f32.mxu0 0.0
    %1541 = vmatmul.mubr.f32.gmra.mxu0 %v1104
    %v1542 = vpop.f32.mrf.mxu0
    %v1543 = vadd.f32 0.0, %v1542
    %v1544 = vpop.f32.mrf.mxu0
    %1545 = vmatprep.mubr.f32.mxu0 0.0
    %1546 = vmatmul.mubr.f32.gmra.mxu0 %v1107
    %v1547 = vpop.f32.mrf.mxu0
    %v1548 = vadd.f32 0.0, %v1547
    %v1549 = vpop.f32.mrf.mxu0
    %1550 = vmatprep.mubr.f32.mxu0 0.0
    %1551 = vmatmul.mubr.f32.gmra.mxu0 %v1110
    %v1552 = vpop.f32.mrf.mxu0
    %v1553 = vadd.f32 0.0, %v1552
    %v1554 = vpop.f32.mrf.mxu0
    %1555 = vmatprep.mubr.f32.mxu0 0.0
    %1556 = vmatmul.mubr.f32.gmra.mxu0 %v1113
    %v1557 = vpop.f32.mrf.mxu0
    %v1558 = vadd.f32 0.0, %v1557
    %v1559 = vpop.f32.mrf.mxu0
    %1560 = vmatprep.mubr.f32.mxu0 0.0
    %1561 = vmatmul.mubr.f32.gmra.mxu0 %v1116
    %v1562 = vpop.f32.mrf.mxu0
    %v1563 = vadd.f32 0.0, %v1562
    %v1564 = vpop.f32.mrf.mxu0
    %1565 = vmatprep.mubr.f32.mxu0 0.0
    %1566 = vmatmul.mubr.f32.gmra.mxu0 %v1119
    %v1567 = vpop.f32.mrf.mxu0
    %v1568 = vadd.f32 0.0, %v1567
    %v1569 = vpop.f32.mrf.mxu0
    %1570 = vmatprep.mubr.f32.mxu0 0.0
    %1571 = vmatmul.mubr.f32.gmra.mxu0 %v1122
    %v1572 = vpop.f32.mrf.mxu0
    %v1573 = vadd.f32 0.0, %v1572
    %v1574 = vpop.f32.mrf.mxu0
    %1575 = vmatprep.mubr.f32.mxu0 0.0
    %1576 = vmatmul.mubr.f32.gmra.mxu0 %v1125
    %v1577 = vpop.f32.mrf.mxu0
    %v1578 = vadd.f32 0.0, %v1577
    %v1579 = vpop.f32.mrf.mxu0
    %1580 = vmatprep.mubr.f32.mxu0 0.0
    %1581 = vmatmul.mubr.f32.gmra.mxu0 %v1128
    %v1582 = vpop.f32.mrf.mxu0
    %v1583 = vadd.f32 0.0, %v1582
    %v1584 = vpop.f32.mrf.mxu0
    %1585 = vmatprep.mubr.f32.mxu0 0.0
    %1586 = vmatmul.mubr.f32.gmra.mxu0 %v1131
    %v1587 = vpop.f32.mrf.mxu0
    %v1588 = vadd.f32 0.0, %v1587
    %v1589 = vpop.f32.mrf.mxu0
    %1590 = vmatprep.mubr.f32.mxu0 0.0
    %1591 = vmatmul.mubr.f32.gmra.mxu0 %v1134
    %v1592 = vpop.f32.mrf.mxu0
    %v1593 = vadd.f32 0.0, %v1592
    %v1594 = vpop.f32.mrf.mxu0
    %1595 = vmatprep.mubr.f32.mxu0 0.0
    %1596 = vmatmul.mubr.f32.gmra.mxu0 %v1137
    %v1597 = vpop.f32.mrf.mxu0
    %v1598 = vadd.f32 0.0, %v1597
    %v1599 = vpop.f32.mrf.mxu0
    %1600 = vmatprep.mubr.f32.mxu0 0.0
    %1601 = vmatmul.mubr.f32.gmra.mxu0 %v1140
    %v1602 = vpop.f32.mrf.mxu0
    %v1603 = vadd.f32 0.0, %v1602
    %v1604 = vpop.f32.mrf.mxu0
    %1605 = vmatprep.mubr.f32.mxu0 0.0
    %1606 = vmatmul.mubr.f32.gmra.mxu0 %v1143
    %v1607 = vpop.f32.mrf.mxu0
    %v1608 = vadd.f32 0.0, %v1607
    %v1609 = vpop.f32.mrf.mxu0
    %1610 = vmatprep.mubr.f32.mxu0 0.0
    %1611 = vmatmul.mubr.f32.gmra.mxu0 %v1146
    %v1612 = vpop.f32.mrf.mxu0
    %v1613 = vadd.f32 0.0, %v1612
    %v1614 = vpop.f32.mrf.mxu0
    %1615 = vdwg.mxu0
    %v1616 = vld [vmem:[%s13] sm:$0xff]
    %v1617 = vld [vmem:[%s13 + $0x8] sm:$0xff]
    %v1618 = vld [vmem:[%s13 + $0x10] sm:$0xff]
    %v1619 = vld [vmem:[%s13 + $0x18] sm:$0xff]
    %v1620 = vld [vmem:[%s13 + $0x20] sm:$0xff]
    %v1621 = vld [vmem:[%s13 + $0x28] sm:$0xff]
    %v1622 = vld [vmem:[%s13 + $0x30] sm:$0xff]
    %v1623 = vld [vmem:[%s13 + $0x38] sm:$0xff]
    %v1624 = vld [vmem:[%s13 + $0x40] sm:$0xff]
    %v1625 = vld [vmem:[%s13 + $0x48] sm:$0xff]
    %v1626 = vld [vmem:[%s13 + $0x50] sm:$0xff]
    %v1627 = vld [vmem:[%s13 + $0x58] sm:$0xff]
    %v1628 = vld [vmem:[%s13 + $0x60] sm:$0xff]
    %v1629 = vld [vmem:[%s13 + $0x68] sm:$0xff]
    %v1630 = vld [vmem:[%s13 + $0x70] sm:$0xff]
    %v1631 = vld [vmem:[%s13 + $0x78] sm:$0xff]
    %v1632 = vld [vmem:[%s13 + $0x80] sm:$0xff]
    %v1633 = vld [vmem:[%s13 + $0x88] sm:$0xff]
    %v1634 = vld [vmem:[%s13 + $0x90] sm:$0xff]
    %v1635 = vld [vmem:[%s13 + $0x98] sm:$0xff]
    %v1636 = vld [vmem:[%s13 + $0xa0] sm:$0xff]
    %v1637 = vld [vmem:[%s13 + $0xa8] sm:$0xff]
    %v1638 = vld [vmem:[%s13 + $0xb0] sm:$0xff]
    %v1639 = vld [vmem:[%s13 + $0xb8] sm:$0xff]
    %v1640 = vld [vmem:[%s13 + $0xc0] sm:$0xff]
    %v1641 = vld [vmem:[%s13 + $0xc8] sm:$0xff]
    %v1642 = vld [vmem:[%s13 + $0xd0] sm:$0xff]
    %v1643 = vld [vmem:[%s13 + $0xd8] sm:$0xff]
    %v1644 = vld [vmem:[%s13 + $0xe0] sm:$0xff]
    %v1645 = vld [vmem:[%s13 + $0xe8] sm:$0xff]
    %v1646 = vld [vmem:[%s13 + $0xf0] sm:$0xff]
    %v1647 = vld [vmem:[%s13 + $0xf8] sm:$0xff]
    %v1648 = vld [vmem:[%s13 + $0x100] sm:$0xff]
    %v1649 = vld [vmem:[%s13 + $0x108] sm:$0xff]
    %v1650 = vld [vmem:[%s13 + $0x110] sm:$0xff]
    %v1651 = vld [vmem:[%s13 + $0x118] sm:$0xff]
    %v1652 = vld [vmem:[%s13 + $0x120] sm:$0xff]
    %v1653 = vld [vmem:[%s13 + $0x128] sm:$0xff]
    %v1654 = vld [vmem:[%s13 + $0x130] sm:$0xff]
    %v1655 = vld [vmem:[%s13 + $0x138] sm:$0xff]
    %v1656 = vld [vmem:[%s13 + $0x140] sm:$0xff]
    %v1657 = vld [vmem:[%s13 + $0x148] sm:$0xff]
    %v1658 = vld [vmem:[%s13 + $0x150] sm:$0xff]
    %v1659 = vld [vmem:[%s13 + $0x158] sm:$0xff]
    %v1660 = vld [vmem:[%s13 + $0x160] sm:$0xff]
    %v1661 = vld [vmem:[%s13 + $0x168] sm:$0xff]
    %v1662 = vld [vmem:[%s13 + $0x170] sm:$0xff]
    %v1663 = vld [vmem:[%s13 + $0x178] sm:$0xff]
    %v1664 = vld [vmem:[%s13 + $0x180] sm:$0xff]
    %v1665 = vld [vmem:[%s13 + $0x188] sm:$0xff]
    %v1666 = vld [vmem:[%s13 + $0x190] sm:$0xff]
    %v1667 = vld [vmem:[%s13 + $0x198] sm:$0xff]
    %v1668 = vld [vmem:[%s13 + $0x1a0] sm:$0xff]
    %v1669 = vld [vmem:[%s13 + $0x1a8] sm:$0xff]
    %v1670 = vld [vmem:[%s13 + $0x1b0] sm:$0xff]
    %v1671 = vld [vmem:[%s13 + $0x1b8] sm:$0xff]
    %v1672 = vld [vmem:[%s13 + $0x1c0] sm:$0xff]
    %v1673 = vld [vmem:[%s13 + $0x1c8] sm:$0xff]
    %v1674 = vld [vmem:[%s13 + $0x1d0] sm:$0xff]
    %v1675 = vld [vmem:[%s13 + $0x1d8] sm:$0xff]
    %v1676 = vld [vmem:[%s13 + $0x1e0] sm:$0xff]
    %v1677 = vld [vmem:[%s13 + $0x1e8] sm:$0xff]
    %v1678 = vld [vmem:[%s13 + $0x1f0] sm:$0xff]
    %v1679 = vld [vmem:[%s13 + $0x1f8] sm:$0xff]
    %v1680 = vld [vmem:[%s13 + $0x200] sm:$0xff]
    %v1681 = vld [vmem:[%s13 + $0x208] sm:$0xff]
    %v1682 = vld [vmem:[%s13 + $0x210] sm:$0xff]
    %v1683 = vld [vmem:[%s13 + $0x218] sm:$0xff]
    %v1684 = vld [vmem:[%s13 + $0x220] sm:$0xff]
    %v1685 = vld [vmem:[%s13 + $0x228] sm:$0xff]
    %v1686 = vld [vmem:[%s13 + $0x230] sm:$0xff]
    %v1687 = vld [vmem:[%s13 + $0x238] sm:$0xff]
    %v1688 = vld [vmem:[%s13 + $0x240] sm:$0xff]
    %v1689 = vld [vmem:[%s13 + $0x248] sm:$0xff]
    %v1690 = vld [vmem:[%s13 + $0x250] sm:$0xff]
    %v1691 = vld [vmem:[%s13 + $0x258] sm:$0xff]
    %v1692 = vld [vmem:[%s13 + $0x260] sm:$0xff]
    %v1693 = vld [vmem:[%s13 + $0x268] sm:$0xff]
    %v1694 = vld [vmem:[%s13 + $0x270] sm:$0xff]
    %v1695 = vld [vmem:[%s13 + $0x278] sm:$0xff]
    %1696 = vset.pattern.permute.xlu0 0
    %1697 = vperm.xlu0 %1696, %v1616
    %v1698 = vpop.permute.xlu0 %1697
    %1699 = vset.pattern.permute.xlu0 0
    %1700 = vperm.xlu0 %1699, %v1617
    %v1701 = vpop.permute.xlu0 %1700
    %1702 = vset.pattern.permute.xlu0 0
    %1703 = vperm.xlu0 %1702, %v1618
    %v1704 = vpop.permute.xlu0 %1703
    %1705 = vset.pattern.permute.xlu0 0
    %1706 = vperm.xlu0 %1705, %v1619
    %v1707 = vpop.permute.xlu0 %1706
    %1708 = vset.pattern.permute.xlu0 0
    %1709 = vperm.xlu0 %1708, %v1620
    %v1710 = vpop.permute.xlu0 %1709
    %1711 = vset.pattern.permute.xlu0 0
    %1712 = vperm.xlu0 %1711, %v1621
    %v1713 = vpop.permute.xlu0 %1712
    %1714 = vset.pattern.permute.xlu0 0
    %1715 = vperm.xlu0 %1714, %v1622
    %v1716 = vpop.permute.xlu0 %1715
    %1717 = vset.pattern.permute.xlu0 0
    %1718 = vperm.xlu0 %1717, %v1623
    %v1719 = vpop.permute.xlu0 %1718
    %1720 = vset.pattern.permute.xlu0 0
    %1721 = vperm.xlu0 %1720, %v1624
    %v1722 = vpop.permute.xlu0 %1721
    %1723 = vset.pattern.permute.xlu0 0
    %1724 = vperm.xlu0 %1723, %v1625
    %v1725 = vpop.permute.xlu0 %1724
    %1726 = vset.pattern.permute.xlu0 0
    %1727 = vperm.xlu0 %1726, %v1626
    %v1728 = vpop.permute.xlu0 %1727
    %1729 = vset.pattern.permute.xlu0 0
    %1730 = vperm.xlu0 %1729, %v1627
    %v1731 = vpop.permute.xlu0 %1730
    %1732 = vset.pattern.permute.xlu0 0
    %1733 = vperm.xlu0 %1732, %v1628
    %v1734 = vpop.permute.xlu0 %1733
    %1735 = vset.pattern.permute.xlu0 0
    %1736 = vperm.xlu0 %1735, %v1629
    %v1737 = vpop.permute.xlu0 %1736
    %1738 = vset.pattern.permute.xlu0 0
    %1739 = vperm.xlu0 %1738, %v1630
    %v1740 = vpop.permute.xlu0 %1739
    %1741 = vset.pattern.permute.xlu0 0
    %1742 = vperm.xlu0 %1741, %v1631
    %v1743 = vpop.permute.xlu0 %1742
    %1744 = vset.pattern.permute.xlu0 0
    %1745 = vperm.xlu0 %1744, %v1632
    %v1746 = vpop.permute.xlu0 %1745
    %1747 = vset.pattern.permute.xlu0 0
    %1748 = vperm.xlu0 %1747, %v1633
    %v1749 = vpop.permute.xlu0 %1748
    %1750 = vset.pattern.permute.xlu0 0
    %1751 = vperm.xlu0 %1750, %v1634
    %v1752 = vpop.permute.xlu0 %1751
    %1753 = vset.pattern.permute.xlu0 0
    %1754 = vperm.xlu0 %1753, %v1635
    %v1755 = vpop.permute.xlu0 %1754
    %1756 = vset.pattern.permute.xlu0 0
    %1757 = vperm.xlu0 %1756, %v1636
    %v1758 = vpop.permute.xlu0 %1757
    %1759 = vset.pattern.permute.xlu0 0
    %1760 = vperm.xlu0 %1759, %v1637
    %v1761 = vpop.permute.xlu0 %1760
    %1762 = vset.pattern.permute.xlu0 0
    %1763 = vperm.xlu0 %1762, %v1638
    %v1764 = vpop.permute.xlu0 %1763
    %1765 = vset.pattern.permute.xlu0 0
    %1766 = vperm.xlu0 %1765, %v1639
    %v1767 = vpop.permute.xlu0 %1766
    %1768 = vset.pattern.permute.xlu0 0
    %1769 = vperm.xlu0 %1768, %v1640
    %v1770 = vpop.permute.xlu0 %1769
    %1771 = vset.pattern.permute.xlu0 0
    %1772 = vperm.xlu0 %1771, %v1641
    %v1773 = vpop.permute.xlu0 %1772
    %1774 = vset.pattern.permute.xlu0 0
    %1775 = vperm.xlu0 %1774, %v1642
    %v1776 = vpop.permute.xlu0 %1775
    %1777 = vset.pattern.permute.xlu0 0
    %1778 = vperm.xlu0 %1777, %v1643
    %v1779 = vpop.permute.xlu0 %1778
    %1780 = vset.pattern.permute.xlu0 0
    %1781 = vperm.xlu0 %1780, %v1644
    %v1782 = vpop.permute.xlu0 %1781
    %1783 = vset.pattern.permute.xlu0 0
    %1784 = vperm.xlu0 %1783, %v1645
    %v1785 = vpop.permute.xlu0 %1784
    %1786 = vset.pattern.permute.xlu0 0
    %1787 = vperm.xlu0 %1786, %v1646
    %v1788 = vpop.permute.xlu0 %1787
    %1789 = vset.pattern.permute.xlu0 0
    %1790 = vperm.xlu0 %1789, %v1647
    %v1791 = vpop.permute.xlu0 %1790
    %1792 = vset.pattern.permute.xlu0 0
    %1793 = vperm.xlu0 %1792, %v1648
    %v1794 = vpop.permute.xlu0 %1793
    %1795 = vset.pattern.permute.xlu0 0
    %1796 = vperm.xlu0 %1795, %v1649
    %v1797 = vpop.permute.xlu0 %1796
    %1798 = vset.pattern.permute.xlu0 0
    %1799 = vperm.xlu0 %1798, %v1650
    %v1800 = vpop.permute.xlu0 %1799
    %1801 = vset.pattern.permute.xlu0 0
    %1802 = vperm.xlu0 %1801, %v1651
    %v1803 = vpop.permute.xlu0 %1802
    %1804 = vset.pattern.permute.xlu0 0
    %1805 = vperm.xlu0 %1804, %v1652
    %v1806 = vpop.permute.xlu0 %1805
    %1807 = vset.pattern.permute.xlu0 0
    %1808 = vperm.xlu0 %1807, %v1653
    %v1809 = vpop.permute.xlu0 %1808
    %1810 = vset.pattern.permute.xlu0 0
    %1811 = vperm.xlu0 %1810, %v1654
    %v1812 = vpop.permute.xlu0 %1811
    %1813 = vset.pattern.permute.xlu0 0
    %1814 = vperm.xlu0 %1813, %v1655
    %v1815 = vpop.permute.xlu0 %1814
    %1816 = vset.pattern.permute.xlu0 0
    %1817 = vperm.xlu0 %1816, %v1656
    %v1818 = vpop.permute.xlu0 %1817
    %1819 = vset.pattern.permute.xlu0 0
    %1820 = vperm.xlu0 %1819, %v1657
    %v1821 = vpop.permute.xlu0 %1820
    %1822 = vset.pattern.permute.xlu0 0
    %1823 = vperm.xlu0 %1822, %v1658
    %v1824 = vpop.permute.xlu0 %1823
    %1825 = vset.pattern.permute.xlu0 0
    %1826 = vperm.xlu0 %1825, %v1659
    %v1827 = vpop.permute.xlu0 %1826
    %1828 = vset.pattern.permute.xlu0 0
    %1829 = vperm.xlu0 %1828, %v1660
    %v1830 = vpop.permute.xlu0 %1829
    %1831 = vset.pattern.permute.xlu0 0
    %1832 = vperm.xlu0 %1831, %v1661
    %v1833 = vpop.permute.xlu0 %1832
    %1834 = vset.pattern.permute.xlu0 0
    %1835 = vperm.xlu0 %1834, %v1662
    %v1836 = vpop.permute.xlu0 %1835
    %1837 = vset.pattern.permute.xlu0 0
    %1838 = vperm.xlu0 %1837, %v1663
    %v1839 = vpop.permute.xlu0 %1838
    %1840 = vset.pattern.permute.xlu0 0
    %1841 = vperm.xlu0 %1840, %v1664
    %v1842 = vpop.permute.xlu0 %1841
    %1843 = vset.pattern.permute.xlu0 0
    %1844 = vperm.xlu0 %1843, %v1665
    %v1845 = vpop.permute.xlu0 %1844
    %1846 = vset.pattern.permute.xlu0 0
    %1847 = vperm.xlu0 %1846, %v1666
    %v1848 = vpop.permute.xlu0 %1847
    %1849 = vset.pattern.permute.xlu0 0
    %1850 = vperm.xlu0 %1849, %v1667
    %v1851 = vpop.permute.xlu0 %1850
    %1852 = vset.pattern.permute.xlu0 0
    %1853 = vperm.xlu0 %1852, %v1668
    %v1854 = vpop.permute.xlu0 %1853
    %1855 = vset.pattern.permute.xlu0 0
    %1856 = vperm.xlu0 %1855, %v1669
    %v1857 = vpop.permute.xlu0 %1856
    %1858 = vset.pattern.permute.xlu0 0
    %1859 = vperm.xlu0 %1858, %v1670
    %v1860 = vpop.permute.xlu0 %1859
    %1861 = vset.pattern.permute.xlu0 0
    %1862 = vperm.xlu0 %1861, %v1671
    %v1863 = vpop.permute.xlu0 %1862
    %1864 = vset.pattern.permute.xlu0 0
    %1865 = vperm.xlu0 %1864, %v1672
    %v1866 = vpop.permute.xlu0 %1865
    %1867 = vset.pattern.permute.xlu0 0
    %1868 = vperm.xlu0 %1867, %v1673
    %v1869 = vpop.permute.xlu0 %1868
    %1870 = vset.pattern.permute.xlu0 0
    %1871 = vperm.xlu0 %1870, %v1674
    %v1872 = vpop.permute.xlu0 %1871
    %1873 = vset.pattern.permute.xlu0 0
    %1874 = vperm.xlu0 %1873, %v1675
    %v1875 = vpop.permute.xlu0 %1874
    %1876 = vset.pattern.permute.xlu0 0
    %1877 = vperm.xlu0 %1876, %v1676
    %v1878 = vpop.permute.xlu0 %1877
    %1879 = vset.pattern.permute.xlu0 0
    %1880 = vperm.xlu0 %1879, %v1677
    %v1881 = vpop.permute.xlu0 %1880
    %1882 = vset.pattern.permute.xlu0 0
    %1883 = vperm.xlu0 %1882, %v1678
    %v1884 = vpop.permute.xlu0 %1883
    %1885 = vset.pattern.permute.xlu0 0
    %1886 = vperm.xlu0 %1885, %v1679
    %v1887 = vpop.permute.xlu0 %1886
    %1888 = vset.pattern.permute.xlu0 0
    %1889 = vperm.xlu0 %1888, %v1680
    %v1890 = vpop.permute.xlu0 %1889
    %1891 = vset.pattern.permute.xlu0 0
    %1892 = vperm.xlu0 %1891, %v1681
    %v1893 = vpop.permute.xlu0 %1892
    %1894 = vset.pattern.permute.xlu0 0
    %1895 = vperm.xlu0 %1894, %v1682
    %v1896 = vpop.permute.xlu0 %1895
    %1897 = vset.pattern.permute.xlu0 0
    %1898 = vperm.xlu0 %1897, %v1683
    %v1899 = vpop.permute.xlu0 %1898
    %1900 = vset.pattern.permute.xlu0 0
    %1901 = vperm.xlu0 %1900, %v1684
    %v1902 = vpop.permute.xlu0 %1901
    %1903 = vset.pattern.permute.xlu0 0
    %1904 = vperm.xlu0 %1903, %v1685
    %v1905 = vpop.permute.xlu0 %1904
    %1906 = vset.pattern.permute.xlu0 0
    %1907 = vperm.xlu0 %1906, %v1686
    %v1908 = vpop.permute.xlu0 %1907
    %1909 = vset.pattern.permute.xlu0 0
    %1910 = vperm.xlu0 %1909, %v1687
    %v1911 = vpop.permute.xlu0 %1910
    %1912 = vset.pattern.permute.xlu0 0
    %1913 = vperm.xlu0 %1912, %v1688
    %v1914 = vpop.permute.xlu0 %1913
    %1915 = vset.pattern.permute.xlu0 0
    %1916 = vperm.xlu0 %1915, %v1689
    %v1917 = vpop.permute.xlu0 %1916
    %1918 = vset.pattern.permute.xlu0 0
    %1919 = vperm.xlu0 %1918, %v1690
    %v1920 = vpop.permute.xlu0 %1919
    %1921 = vset.pattern.permute.xlu0 0
    %1922 = vperm.xlu0 %1921, %v1691
    %v1923 = vpop.permute.xlu0 %1922
    %1924 = vset.pattern.permute.xlu0 0
    %1925 = vperm.xlu0 %1924, %v1692
    %v1926 = vpop.permute.xlu0 %1925
    %1927 = vset.pattern.permute.xlu0 0
    %1928 = vperm.xlu0 %1927, %v1693
    %v1929 = vpop.permute.xlu0 %1928
    %1930 = vset.pattern.permute.xlu0 0
    %1931 = vperm.xlu0 %1930, %v1694
    %v1932 = vpop.permute.xlu0 %1931
    %1933 = vset.pattern.permute.xlu0 0
    %1934 = vperm.xlu0 %1933, %v1695
    %v1935 = vpop.permute.xlu0 %1934
    %vm1936 = vcmp.eq.s32.totalorder %v658, %v1698
    %vm1937 = vcmp.eq.s32.totalorder %v658, %v1701
    %vm1938 = vcmp.eq.s32.totalorder %v658, %v1704
    %vm1939 = vcmp.eq.s32.totalorder %v658, %v1707
    %vm1940 = vcmp.eq.s32.totalorder %v658, %v1710
    %vm1941 = vcmp.eq.s32.totalorder %v658, %v1713
    %vm1942 = vcmp.eq.s32.totalorder %v658, %v1716
    %vm1943 = vcmp.eq.s32.totalorder %v658, %v1719
    %vm1944 = vcmp.eq.s32.totalorder %v658, %v1722
    %vm1945 = vcmp.eq.s32.totalorder %v658, %v1725
    %vm1946 = vcmp.eq.s32.totalorder %v658, %v1728
    %vm1947 = vcmp.eq.s32.totalorder %v658, %v1731
    %vm1948 = vcmp.eq.s32.totalorder %v658, %v1734
    %vm1949 = vcmp.eq.s32.totalorder %v658, %v1737
    %vm1950 = vcmp.eq.s32.totalorder %v658, %v1740
    %vm1951 = vcmp.eq.s32.totalorder %v658, %v1743
    %vm1952 = vcmp.eq.s32.totalorder %v658, %v1746
    %vm1953 = vcmp.eq.s32.totalorder %v658, %v1749
    %vm1954 = vcmp.eq.s32.totalorder %v658, %v1752
    %vm1955 = vcmp.eq.s32.totalorder %v658, %v1755
    %vm1956 = vcmp.eq.s32.totalorder %v658, %v1758
    %vm1957 = vcmp.eq.s32.totalorder %v658, %v1761
    %vm1958 = vcmp.eq.s32.totalorder %v658, %v1764
    %vm1959 = vcmp.eq.s32.totalorder %v658, %v1767
    %vm1960 = vcmp.eq.s32.totalorder %v658, %v1770
    %vm1961 = vcmp.eq.s32.totalorder %v658, %v1773
    %vm1962 = vcmp.eq.s32.totalorder %v658, %v1776
    %vm1963 = vcmp.eq.s32.totalorder %v658, %v1779
    %vm1964 = vcmp.eq.s32.totalorder %v658, %v1782
    %vm1965 = vcmp.eq.s32.totalorder %v658, %v1785
    %vm1966 = vcmp.eq.s32.totalorder %v658, %v1788
    %vm1967 = vcmp.eq.s32.totalorder %v658, %v1791
    %vm1968 = vcmp.eq.s32.totalorder %v658, %v1794
    %vm1969 = vcmp.eq.s32.totalorder %v658, %v1797
    %vm1970 = vcmp.eq.s32.totalorder %v658, %v1800
    %vm1971 = vcmp.eq.s32.totalorder %v658, %v1803
    %vm1972 = vcmp.eq.s32.totalorder %v658, %v1806
    %vm1973 = vcmp.eq.s32.totalorder %v658, %v1809
    %vm1974 = vcmp.eq.s32.totalorder %v658, %v1812
    %vm1975 = vcmp.eq.s32.totalorder %v658, %v1815
    %vm1976 = vcmp.eq.s32.totalorder %v658, %v1818
    %vm1977 = vcmp.eq.s32.totalorder %v658, %v1821
    %vm1978 = vcmp.eq.s32.totalorder %v658, %v1824
    %vm1979 = vcmp.eq.s32.totalorder %v658, %v1827
    %vm1980 = vcmp.eq.s32.totalorder %v658, %v1830
    %vm1981 = vcmp.eq.s32.totalorder %v658, %v1833
    %vm1982 = vcmp.eq.s32.totalorder %v658, %v1836
    %vm1983 = vcmp.eq.s32.totalorder %v658, %v1839
    %vm1984 = vcmp.eq.s32.totalorder %v658, %v1842
    %vm1985 = vcmp.eq.s32.totalorder %v658, %v1845
    %vm1986 = vcmp.eq.s32.totalorder %v658, %v1848
    %vm1987 = vcmp.eq.s32.totalorder %v658, %v1851
    %vm1988 = vcmp.eq.s32.totalorder %v658, %v1854
    %vm1989 = vcmp.eq.s32.totalorder %v658, %v1857
    %vm1990 = vcmp.eq.s32.totalorder %v658, %v1860
    %vm1991 = vcmp.eq.s32.totalorder %v658, %v1863
    %vm1992 = vcmp.eq.s32.totalorder %v658, %v1866
    %vm1993 = vcmp.eq.s32.totalorder %v658, %v1869
    %vm1994 = vcmp.eq.s32.totalorder %v658, %v1872
    %vm1995 = vcmp.eq.s32.totalorder %v658, %v1875
    %vm1996 = vcmp.eq.s32.totalorder %v658, %v1878
    %vm1997 = vcmp.eq.s32.totalorder %v658, %v1881
    %vm1998 = vcmp.eq.s32.totalorder %v658, %v1884
    %vm1999 = vcmp.eq.s32.totalorder %v658, %v1887
    %vm2000 = vcmp.eq.s32.totalorder %v658, %v1890
    %vm2001 = vcmp.eq.s32.totalorder %v658, %v1893
    %vm2002 = vcmp.eq.s32.totalorder %v658, %v1896
    %vm2003 = vcmp.eq.s32.totalorder %v658, %v1899
    %vm2004 = vcmp.eq.s32.totalorder %v658, %v1902
    %vm2005 = vcmp.eq.s32.totalorder %v658, %v1905
    %vm2006 = vcmp.eq.s32.totalorder %v658, %v1908
    %vm2007 = vcmp.eq.s32.totalorder %v658, %v1911
    %vm2008 = vcmp.eq.s32.totalorder %v658, %v1914
    %vm2009 = vcmp.eq.s32.totalorder %v658, %v1917
    %vm2010 = vcmp.eq.s32.totalorder %v658, %v1920
    %vm2011 = vcmp.eq.s32.totalorder %v658, %v1923
    %vm2012 = vcmp.eq.s32.totalorder %v658, %v1926
    %vm2013 = vcmp.eq.s32.totalorder %v658, %v1929
    %vm2014 = vcmp.eq.s32.totalorder %v658, %v1932
    %vm2015 = vcmp.eq.s32.totalorder %v658, %v1935
    %v2016 = vsel %vm1936, %v1218, 0.0
    %v2017 = vsel %vm1937, %v1223, 0.0
    %v2018 = vsel %vm1938, %v1228, 0.0
    %v2019 = vsel %vm1939, %v1233, 0.0
    %v2020 = vsel %vm1940, %v1238, 0.0
    %v2021 = vsel %vm1941, %v1243, 0.0
    %v2022 = vsel %vm1942, %v1248, 0.0
    %v2023 = vsel %vm1943, %v1253, 0.0
    %v2024 = vsel %vm1944, %v1258, 0.0
    %v2025 = vsel %vm1945, %v1263, 0.0
    %v2026 = vsel %vm1946, %v1268, 0.0
    %v2027 = vsel %vm1947, %v1273, 0.0
    %v2028 = vsel %vm1948, %v1278, 0.0
    %v2029 = vsel %vm1949, %v1283, 0.0
    %v2030 = vsel %vm1950, %v1288, 0.0
    %v2031 = vsel %vm1951, %v1293, 0.0
    %v2032 = vsel %vm1952, %v1298, 0.0
    %v2033 = vsel %vm1953, %v1303, 0.0
    %v2034 = vsel %vm1954, %v1308, 0.0
    %v2035 = vsel %vm1955, %v1313, 0.0
    %v2036 = vsel %vm1956, %v1318, 0.0
    %v2037 = vsel %vm1957, %v1323, 0.0
    %v2038 = vsel %vm1958, %v1328, 0.0
    %v2039 = vsel %vm1959, %v1333, 0.0
    %v2040 = vsel %vm1960, %v1338, 0.0
    %v2041 = vsel %vm1961, %v1343, 0.0
    %v2042 = vsel %vm1962, %v1348, 0.0
    %v2043 = vsel %vm1963, %v1353, 0.0
    %v2044 = vsel %vm1964, %v1358, 0.0
    %v2045 = vsel %vm1965, %v1363, 0.0
    %v2046 = vsel %vm1966, %v1368, 0.0
    %v2047 = vsel %vm1967, %v1373, 0.0
    %v2048 = vsel %vm1968, %v1378, 0.0
    %v2049 = vsel %vm1969, %v1383, 0.0
    %v2050 = vsel %vm1970, %v1388, 0.0
    %v2051 = vsel %vm1971, %v1393, 0.0
    %v2052 = vsel %vm1972, %v1398, 0.0
    %v2053 = vsel %vm1973, %v1403, 0.0
    %v2054 = vsel %vm1974, %v1408, 0.0
    %v2055 = vsel %vm1975, %v1413, 0.0
    %v2056 = vsel %vm1976, %v1418, 0.0
    %v2057 = vsel %vm1977, %v1423, 0.0
    %v2058 = vsel %vm1978, %v1428, 0.0
    %v2059 = vsel %vm1979, %v1433, 0.0
    %v2060 = vsel %vm1980, %v1438, 0.0
    %v2061 = vsel %vm1981, %v1443, 0.0
    %v2062 = vsel %vm1982, %v1448, 0.0
    %v2063 = vsel %vm1983, %v1453, 0.0
    %v2064 = vsel %vm1984, %v1458, 0.0
    %v2065 = vsel %vm1985, %v1463, 0.0
    %v2066 = vsel %vm1986, %v1468, 0.0
    %v2067 = vsel %vm1987, %v1473, 0.0
    %v2068 = vsel %vm1988, %v1478, 0.0
    %v2069 = vsel %vm1989, %v1483, 0.0
    %v2070 = vsel %vm1990, %v1488, 0.0
    %v2071 = vsel %vm1991, %v1493, 0.0
    %v2072 = vsel %vm1992, %v1498, 0.0
    %v2073 = vsel %vm1993, %v1503, 0.0
    %v2074 = vsel %vm1994, %v1508, 0.0
    %v2075 = vsel %vm1995, %v1513, 0.0
    %v2076 = vsel %vm1996, %v1518, 0.0
    %v2077 = vsel %vm1997, %v1523, 0.0
    %v2078 = vsel %vm1998, %v1528, 0.0
    %v2079 = vsel %vm1999, %v1533, 0.0
    %v2080 = vsel %vm2000, %v1538, 0.0
    %v2081 = vsel %vm2001, %v1543, 0.0
    %v2082 = vsel %vm2002, %v1548, 0.0
    %v2083 = vsel %vm2003, %v1553, 0.0
    %v2084 = vsel %vm2004, %v1558, 0.0
    %v2085 = vsel %vm2005, %v1563, 0.0
    %v2086 = vsel %vm2006, %v1568, 0.0
    %v2087 = vsel %vm2007, %v1573, 0.0
    %v2088 = vsel %vm2008, %v1578, 0.0
    %v2089 = vsel %vm2009, %v1583, 0.0
    %v2090 = vsel %vm2010, %v1588, 0.0
    %v2091 = vsel %vm2011, %v1593, 0.0
    %v2092 = vsel %vm2012, %v1598, 0.0
    %v2093 = vsel %vm2013, %v1603, 0.0
    %v2094 = vsel %vm2014, %v1608, 0.0
    %v2095 = vsel %vm2015, %v1613, 0.0
    %v2096 = vsel %vm642, %v2016, 0.0
    %2097 = vadd.xlane.f32.xlu0 %v2096
    %v2098 = vpop.xlane.xlu0 %2097
    %v2099 = vsel %vm642, %v2017, 0.0
    %2100 = vadd.xlane.f32.xlu0 %v2099
    %v2101 = vpop.xlane.xlu0 %2100
    %v2102 = vsel %vm642, %v2018, 0.0
    %2103 = vadd.xlane.f32.xlu0 %v2102
    %v2104 = vpop.xlane.xlu0 %2103
    %v2105 = vsel %vm642, %v2019, 0.0
    %2106 = vadd.xlane.f32.xlu0 %v2105
    %v2107 = vpop.xlane.xlu0 %2106
    %v2108 = vsel %vm642, %v2020, 0.0
    %2109 = vadd.xlane.f32.xlu0 %v2108
    %v2110 = vpop.xlane.xlu0 %2109
    %v2111 = vsel %vm642, %v2021, 0.0
    %2112 = vadd.xlane.f32.xlu0 %v2111
    %v2113 = vpop.xlane.xlu0 %2112
    %v2114 = vsel %vm642, %v2022, 0.0
    %2115 = vadd.xlane.f32.xlu0 %v2114
    %v2116 = vpop.xlane.xlu0 %2115
    %v2117 = vsel %vm642, %v2023, 0.0
    %2118 = vadd.xlane.f32.xlu0 %v2117
    %v2119 = vpop.xlane.xlu0 %2118
    %v2120 = vsel %vm642, %v2024, 0.0
    %2121 = vadd.xlane.f32.xlu0 %v2120
    %v2122 = vpop.xlane.xlu0 %2121
    %v2123 = vsel %vm642, %v2025, 0.0
    %2124 = vadd.xlane.f32.xlu0 %v2123
    %v2125 = vpop.xlane.xlu0 %2124
    %v2126 = vsel %vm642, %v2026, 0.0
    %2127 = vadd.xlane.f32.xlu0 %v2126
    %v2128 = vpop.xlane.xlu0 %2127
    %v2129 = vsel %vm642, %v2027, 0.0
    %2130 = vadd.xlane.f32.xlu0 %v2129
    %v2131 = vpop.xlane.xlu0 %2130
    %v2132 = vsel %vm642, %v2028, 0.0
    %2133 = vadd.xlane.f32.xlu0 %v2132
    %v2134 = vpop.xlane.xlu0 %2133
    %v2135 = vsel %vm642, %v2029, 0.0
    %2136 = vadd.xlane.f32.xlu0 %v2135
    %v2137 = vpop.xlane.xlu0 %2136
    %v2138 = vsel %vm642, %v2030, 0.0
    %2139 = vadd.xlane.f32.xlu0 %v2138
    %v2140 = vpop.xlane.xlu0 %2139
    %v2141 = vsel %vm642, %v2031, 0.0
    %2142 = vadd.xlane.f32.xlu0 %v2141
    %v2143 = vpop.xlane.xlu0 %2142
    %v2144 = vsel %vm642, %v2032, 0.0
    %2145 = vadd.xlane.f32.xlu0 %v2144
    %v2146 = vpop.xlane.xlu0 %2145
    %v2147 = vsel %vm642, %v2033, 0.0
    %2148 = vadd.xlane.f32.xlu0 %v2147
    %v2149 = vpop.xlane.xlu0 %2148
    %v2150 = vsel %vm642, %v2034, 0.0
    %2151 = vadd.xlane.f32.xlu0 %v2150
    %v2152 = vpop.xlane.xlu0 %2151
    %v2153 = vsel %vm642, %v2035, 0.0
    %2154 = vadd.xlane.f32.xlu0 %v2153
    %v2155 = vpop.xlane.xlu0 %2154
    %v2156 = vsel %vm642, %v2036, 0.0
    %2157 = vadd.xlane.f32.xlu0 %v2156
    %v2158 = vpop.xlane.xlu0 %2157
    %v2159 = vsel %vm642, %v2037, 0.0
    %2160 = vadd.xlane.f32.xlu0 %v2159
    %v2161 = vpop.xlane.xlu0 %2160
    %v2162 = vsel %vm642, %v2038, 0.0
    %2163 = vadd.xlane.f32.xlu0 %v2162
    %v2164 = vpop.xlane.xlu0 %2163
    %v2165 = vsel %vm642, %v2039, 0.0
    %2166 = vadd.xlane.f32.xlu0 %v2165
    %v2167 = vpop.xlane.xlu0 %2166
    %v2168 = vsel %vm642, %v2040, 0.0
    %2169 = vadd.xlane.f32.xlu0 %v2168
    %v2170 = vpop.xlane.xlu0 %2169
    %v2171 = vsel %vm642, %v2041, 0.0
    %2172 = vadd.xlane.f32.xlu0 %v2171
    %v2173 = vpop.xlane.xlu0 %2172
    %v2174 = vsel %vm642, %v2042, 0.0
    %2175 = vadd.xlane.f32.xlu0 %v2174
    %v2176 = vpop.xlane.xlu0 %2175
    %v2177 = vsel %vm642, %v2043, 0.0
    %2178 = vadd.xlane.f32.xlu0 %v2177
    %v2179 = vpop.xlane.xlu0 %2178
    %v2180 = vsel %vm642, %v2044, 0.0
    %2181 = vadd.xlane.f32.xlu0 %v2180
    %v2182 = vpop.xlane.xlu0 %2181
    %v2183 = vsel %vm642, %v2045, 0.0
    %2184 = vadd.xlane.f32.xlu0 %v2183
    %v2185 = vpop.xlane.xlu0 %2184
    %v2186 = vsel %vm642, %v2046, 0.0
    %2187 = vadd.xlane.f32.xlu0 %v2186
    %v2188 = vpop.xlane.xlu0 %2187
    %v2189 = vsel %vm642, %v2047, 0.0
    %2190 = vadd.xlane.f32.xlu0 %v2189
    %v2191 = vpop.xlane.xlu0 %2190
    %v2192 = vsel %vm642, %v2048, 0.0
    %2193 = vadd.xlane.f32.xlu0 %v2192
    %v2194 = vpop.xlane.xlu0 %2193
    %v2195 = vsel %vm642, %v2049, 0.0
    %2196 = vadd.xlane.f32.xlu0 %v2195
    %v2197 = vpop.xlane.xlu0 %2196
    %v2198 = vsel %vm642, %v2050, 0.0
    %2199 = vadd.xlane.f32.xlu0 %v2198
    %v2200 = vpop.xlane.xlu0 %2199
    %v2201 = vsel %vm642, %v2051, 0.0
    %2202 = vadd.xlane.f32.xlu0 %v2201
    %v2203 = vpop.xlane.xlu0 %2202
    %v2204 = vsel %vm642, %v2052, 0.0
    %2205 = vadd.xlane.f32.xlu0 %v2204
    %v2206 = vpop.xlane.xlu0 %2205
    %v2207 = vsel %vm642, %v2053, 0.0
    %2208 = vadd.xlane.f32.xlu0 %v2207
    %v2209 = vpop.xlane.xlu0 %2208
    %v2210 = vsel %vm642, %v2054, 0.0
    %2211 = vadd.xlane.f32.xlu0 %v2210
    %v2212 = vpop.xlane.xlu0 %2211
    %v2213 = vsel %vm642, %v2055, 0.0
    %2214 = vadd.xlane.f32.xlu0 %v2213
    %v2215 = vpop.xlane.xlu0 %2214
    %v2216 = vsel %vm642, %v2056, 0.0
    %2217 = vadd.xlane.f32.xlu0 %v2216
    %v2218 = vpop.xlane.xlu0 %2217
    %v2219 = vsel %vm642, %v2057, 0.0
    %2220 = vadd.xlane.f32.xlu0 %v2219
    %v2221 = vpop.xlane.xlu0 %2220
    %v2222 = vsel %vm642, %v2058, 0.0
    %2223 = vadd.xlane.f32.xlu0 %v2222
    %v2224 = vpop.xlane.xlu0 %2223
    %v2225 = vsel %vm642, %v2059, 0.0
    %2226 = vadd.xlane.f32.xlu0 %v2225
    %v2227 = vpop.xlane.xlu0 %2226
    %v2228 = vsel %vm642, %v2060, 0.0
    %2229 = vadd.xlane.f32.xlu0 %v2228
    %v2230 = vpop.xlane.xlu0 %2229
    %v2231 = vsel %vm642, %v2061, 0.0
    %2232 = vadd.xlane.f32.xlu0 %v2231
    %v2233 = vpop.xlane.xlu0 %2232
    %v2234 = vsel %vm642, %v2062, 0.0
    %2235 = vadd.xlane.f32.xlu0 %v2234
    %v2236 = vpop.xlane.xlu0 %2235
    %v2237 = vsel %vm642, %v2063, 0.0
    %2238 = vadd.xlane.f32.xlu0 %v2237
    %v2239 = vpop.xlane.xlu0 %2238
    %v2240 = vsel %vm642, %v2064, 0.0
    %2241 = vadd.xlane.f32.xlu0 %v2240
    %v2242 = vpop.xlane.xlu0 %2241
    %v2243 = vsel %vm642, %v2065, 0.0
    %2244 = vadd.xlane.f32.xlu0 %v2243
    %v2245 = vpop.xlane.xlu0 %2244
    %v2246 = vsel %vm642, %v2066, 0.0
    %2247 = vadd.xlane.f32.xlu0 %v2246
    %v2248 = vpop.xlane.xlu0 %2247
    %v2249 = vsel %vm642, %v2067, 0.0
    %2250 = vadd.xlane.f32.xlu0 %v2249
    %v2251 = vpop.xlane.xlu0 %2250
    %v2252 = vsel %vm642, %v2068, 0.0
    %2253 = vadd.xlane.f32.xlu0 %v2252
    %v2254 = vpop.xlane.xlu0 %2253
    %v2255 = vsel %vm642, %v2069, 0.0
    %2256 = vadd.xlane.f32.xlu0 %v2255
    %v2257 = vpop.xlane.xlu0 %2256
    %v2258 = vsel %vm642, %v2070, 0.0
    %2259 = vadd.xlane.f32.xlu0 %v2258
    %v2260 = vpop.xlane.xlu0 %2259
    %v2261 = vsel %vm642, %v2071, 0.0
    %2262 = vadd.xlane.f32.xlu0 %v2261
    %v2263 = vpop.xlane.xlu0 %2262
    %v2264 = vsel %vm642, %v2072, 0.0
    %2265 = vadd.xlane.f32.xlu0 %v2264
    %v2266 = vpop.xlane.xlu0 %2265
    %v2267 = vsel %vm642, %v2073, 0.0
    %2268 = vadd.xlane.f32.xlu0 %v2267
    %v2269 = vpop.xlane.xlu0 %2268
    %v2270 = vsel %vm642, %v2074, 0.0
    %2271 = vadd.xlane.f32.xlu0 %v2270
    %v2272 = vpop.xlane.xlu0 %2271
    %v2273 = vsel %vm642, %v2075, 0.0
    %2274 = vadd.xlane.f32.xlu0 %v2273
    %v2275 = vpop.xlane.xlu0 %2274
    %v2276 = vsel %vm642, %v2076, 0.0
    %2277 = vadd.xlane.f32.xlu0 %v2276
    %v2278 = vpop.xlane.xlu0 %2277
    %v2279 = vsel %vm642, %v2077, 0.0
    %2280 = vadd.xlane.f32.xlu0 %v2279
    %v2281 = vpop.xlane.xlu0 %2280
    %v2282 = vsel %vm642, %v2078, 0.0
    %2283 = vadd.xlane.f32.xlu0 %v2282
    %v2284 = vpop.xlane.xlu0 %2283
    %v2285 = vsel %vm642, %v2079, 0.0
    %2286 = vadd.xlane.f32.xlu0 %v2285
    %v2287 = vpop.xlane.xlu0 %2286
    %v2288 = vsel %vm642, %v2080, 0.0
    %2289 = vadd.xlane.f32.xlu0 %v2288
    %v2290 = vpop.xlane.xlu0 %2289
    %v2291 = vsel %vm642, %v2081, 0.0
    %2292 = vadd.xlane.f32.xlu0 %v2291
    %v2293 = vpop.xlane.xlu0 %2292
    %v2294 = vsel %vm642, %v2082, 0.0
    %2295 = vadd.xlane.f32.xlu0 %v2294
    %v2296 = vpop.xlane.xlu0 %2295
    %v2297 = vsel %vm642, %v2083, 0.0
    %2298 = vadd.xlane.f32.xlu0 %v2297
    %v2299 = vpop.xlane.xlu0 %2298
    %v2300 = vsel %vm642, %v2084, 0.0
    %2301 = vadd.xlane.f32.xlu0 %v2300
    %v2302 = vpop.xlane.xlu0 %2301
    %v2303 = vsel %vm642, %v2085, 0.0
    %2304 = vadd.xlane.f32.xlu0 %v2303
    %v2305 = vpop.xlane.xlu0 %2304
    %v2306 = vsel %vm642, %v2086, 0.0
    %2307 = vadd.xlane.f32.xlu0 %v2306
    %v2308 = vpop.xlane.xlu0 %2307
    %v2309 = vsel %vm642, %v2087, 0.0
    %2310 = vadd.xlane.f32.xlu0 %v2309
    %v2311 = vpop.xlane.xlu0 %2310
    %v2312 = vsel %vm642, %v2088, 0.0
    %2313 = vadd.xlane.f32.xlu0 %v2312
    %v2314 = vpop.xlane.xlu0 %2313
    %v2315 = vsel %vm642, %v2089, 0.0
    %2316 = vadd.xlane.f32.xlu0 %v2315
    %v2317 = vpop.xlane.xlu0 %2316
    %v2318 = vsel %vm642, %v2090, 0.0
    %2319 = vadd.xlane.f32.xlu0 %v2318
    %v2320 = vpop.xlane.xlu0 %2319
    %v2321 = vsel %vm642, %v2091, 0.0
    %2322 = vadd.xlane.f32.xlu0 %v2321
    %v2323 = vpop.xlane.xlu0 %2322
    %v2324 = vsel %vm642, %v2092, 0.0
    %2325 = vadd.xlane.f32.xlu0 %v2324
    %v2326 = vpop.xlane.xlu0 %2325
    %v2327 = vsel %vm642, %v2093, 0.0
    %2328 = vadd.xlane.f32.xlu0 %v2327
    %v2329 = vpop.xlane.xlu0 %2328
    %v2330 = vsel %vm642, %v2094, 0.0
    %2331 = vadd.xlane.f32.xlu0 %v2330
    %v2332 = vpop.xlane.xlu0 %2331
    %v2333 = vsel %vm642, %v2095, 0.0
    %2334 = vadd.xlane.f32.xlu0 %v2333
    %v2335 = vpop.xlane.xlu0 %2334
    %vm2336 = vcmp.lt.f32.partialorder %v1218, %v2098
    %vm2337 = vcmp.lt.f32.partialorder %v1223, %v2101
    %vm2338 = vcmp.lt.f32.partialorder %v1228, %v2104
    %vm2339 = vcmp.lt.f32.partialorder %v1233, %v2107
    %vm2340 = vcmp.lt.f32.partialorder %v1238, %v2110
    %vm2341 = vcmp.lt.f32.partialorder %v1243, %v2113
    %vm2342 = vcmp.lt.f32.partialorder %v1248, %v2116
    %vm2343 = vcmp.lt.f32.partialorder %v1253, %v2119
    %vm2344 = vcmp.lt.f32.partialorder %v1258, %v2122
    %vm2345 = vcmp.lt.f32.partialorder %v1263, %v2125
    %vm2346 = vcmp.lt.f32.partialorder %v1268, %v2128
    %vm2347 = vcmp.lt.f32.partialorder %v1273, %v2131
    %vm2348 = vcmp.lt.f32.partialorder %v1278, %v2134
    %vm2349 = vcmp.lt.f32.partialorder %v1283, %v2137
    %vm2350 = vcmp.lt.f32.partialorder %v1288, %v2140
    %vm2351 = vcmp.lt.f32.partialorder %v1293, %v2143
    %vm2352 = vcmp.lt.f32.partialorder %v1298, %v2146
    %vm2353 = vcmp.lt.f32.partialorder %v1303, %v2149
    %vm2354 = vcmp.lt.f32.partialorder %v1308, %v2152
    %vm2355 = vcmp.lt.f32.partialorder %v1313, %v2155
    %vm2356 = vcmp.lt.f32.partialorder %v1318, %v2158
    %vm2357 = vcmp.lt.f32.partialorder %v1323, %v2161
    %vm2358 = vcmp.lt.f32.partialorder %v1328, %v2164
    %vm2359 = vcmp.lt.f32.partialorder %v1333, %v2167
    %vm2360 = vcmp.lt.f32.partialorder %v1338, %v2170
    %vm2361 = vcmp.lt.f32.partialorder %v1343, %v2173
    %vm2362 = vcmp.lt.f32.partialorder %v1348, %v2176
    %vm2363 = vcmp.lt.f32.partialorder %v1353, %v2179
    %vm2364 = vcmp.lt.f32.partialorder %v1358, %v2182
    %vm2365 = vcmp.lt.f32.partialorder %v1363, %v2185
    %vm2366 = vcmp.lt.f32.partialorder %v1368, %v2188
    %vm2367 = vcmp.lt.f32.partialorder %v1373, %v2191
    %vm2368 = vcmp.lt.f32.partialorder %v1378, %v2194
    %vm2369 = vcmp.lt.f32.partialorder %v1383, %v2197
    %vm2370 = vcmp.lt.f32.partialorder %v1388, %v2200
    %vm2371 = vcmp.lt.f32.partialorder %v1393, %v2203
    %vm2372 = vcmp.lt.f32.partialorder %v1398, %v2206
    %vm2373 = vcmp.lt.f32.partialorder %v1403, %v2209
    %vm2374 = vcmp.lt.f32.partialorder %v1408, %v2212
    %vm2375 = vcmp.lt.f32.partialorder %v1413, %v2215
    %vm2376 = vcmp.lt.f32.partialorder %v1418, %v2218
    %vm2377 = vcmp.lt.f32.partialorder %v1423, %v2221
    %vm2378 = vcmp.lt.f32.partialorder %v1428, %v2224
    %vm2379 = vcmp.lt.f32.partialorder %v1433, %v2227
    %vm2380 = vcmp.lt.f32.partialorder %v1438, %v2230
    %vm2381 = vcmp.lt.f32.partialorder %v1443, %v2233
    %vm2382 = vcmp.lt.f32.partialorder %v1448, %v2236
    %vm2383 = vcmp.lt.f32.partialorder %v1453, %v2239
    %vm2384 = vcmp.lt.f32.partialorder %v1458, %v2242
    %vm2385 = vcmp.lt.f32.partialorder %v1463, %v2245
    %vm2386 = vcmp.lt.f32.partialorder %v1468, %v2248
    %vm2387 = vcmp.lt.f32.partialorder %v1473, %v2251
    %vm2388 = vcmp.lt.f32.partialorder %v1478, %v2254
    %vm2389 = vcmp.lt.f32.partialorder %v1483, %v2257
    %vm2390 = vcmp.lt.f32.partialorder %v1488, %v2260
    %vm2391 = vcmp.lt.f32.partialorder %v1493, %v2263
    %vm2392 = vcmp.lt.f32.partialorder %v1498, %v2266
    %vm2393 = vcmp.lt.f32.partialorder %v1503, %v2269
    %vm2394 = vcmp.lt.f32.partialorder %v1508, %v2272
    %vm2395 = vcmp.lt.f32.partialorder %v1513, %v2275
    %vm2396 = vcmp.lt.f32.partialorder %v1518, %v2278
    %vm2397 = vcmp.lt.f32.partialorder %v1523, %v2281
    %vm2398 = vcmp.lt.f32.partialorder %v1528, %v2284
    %vm2399 = vcmp.lt.f32.partialorder %v1533, %v2287
    %vm2400 = vcmp.lt.f32.partialorder %v1538, %v2290
    %vm2401 = vcmp.lt.f32.partialorder %v1543, %v2293
    %vm2402 = vcmp.lt.f32.partialorder %v1548, %v2296
    %vm2403 = vcmp.lt.f32.partialorder %v1553, %v2299
    %vm2404 = vcmp.lt.f32.partialorder %v1558, %v2302
    %vm2405 = vcmp.lt.f32.partialorder %v1563, %v2305
    %vm2406 = vcmp.lt.f32.partialorder %v1568, %v2308
    %vm2407 = vcmp.lt.f32.partialorder %v1573, %v2311
    %vm2408 = vcmp.lt.f32.partialorder %v1578, %v2314
    %vm2409 = vcmp.lt.f32.partialorder %v1583, %v2317
    %vm2410 = vcmp.lt.f32.partialorder %v1588, %v2320
    %vm2411 = vcmp.lt.f32.partialorder %v1593, %v2323
    %vm2412 = vcmp.lt.f32.partialorder %v1598, %v2326
    %vm2413 = vcmp.lt.f32.partialorder %v1603, %v2329
    %vm2414 = vcmp.lt.f32.partialorder %v1608, %v2332
    %vm2415 = vcmp.lt.f32.partialorder %v1613, %v2335
    %vm2416 = vcmp.eq.f32.partialorder %v1218, %v2098
    %vm2417 = vcmp.eq.f32.partialorder %v1223, %v2101
    %vm2418 = vcmp.eq.f32.partialorder %v1228, %v2104
    %vm2419 = vcmp.eq.f32.partialorder %v1233, %v2107
    %vm2420 = vcmp.eq.f32.partialorder %v1238, %v2110
    %vm2421 = vcmp.eq.f32.partialorder %v1243, %v2113
    %vm2422 = vcmp.eq.f32.partialorder %v1248, %v2116
    %vm2423 = vcmp.eq.f32.partialorder %v1253, %v2119
    %vm2424 = vcmp.eq.f32.partialorder %v1258, %v2122
    %vm2425 = vcmp.eq.f32.partialorder %v1263, %v2125
    %vm2426 = vcmp.eq.f32.partialorder %v1268, %v2128
    %vm2427 = vcmp.eq.f32.partialorder %v1273, %v2131
    %vm2428 = vcmp.eq.f32.partialorder %v1278, %v2134
    %vm2429 = vcmp.eq.f32.partialorder %v1283, %v2137
    %vm2430 = vcmp.eq.f32.partialorder %v1288, %v2140
    %vm2431 = vcmp.eq.f32.partialorder %v1293, %v2143
    %vm2432 = vcmp.eq.f32.partialorder %v1298, %v2146
    %vm2433 = vcmp.eq.f32.partialorder %v1303, %v2149
    %vm2434 = vcmp.eq.f32.partialorder %v1308, %v2152
    %vm2435 = vcmp.eq.f32.partialorder %v1313, %v2155
    %vm2436 = vcmp.eq.f32.partialorder %v1318, %v2158
    %vm2437 = vcmp.eq.f32.partialorder %v1323, %v2161
    %vm2438 = vcmp.eq.f32.partialorder %v1328, %v2164
    %vm2439 = vcmp.eq.f32.partialorder %v1333, %v2167
    %vm2440 = vcmp.eq.f32.partialorder %v1338, %v2170
    %vm2441 = vcmp.eq.f32.partialorder %v1343, %v2173
    %vm2442 = vcmp.eq.f32.partialorder %v1348, %v2176
    %vm2443 = vcmp.eq.f32.partialorder %v1353, %v2179
    %vm2444 = vcmp.eq.f32.partialorder %v1358, %v2182
    %vm2445 = vcmp.eq.f32.partialorder %v1363, %v2185
    %vm2446 = vcmp.eq.f32.partialorder %v1368, %v2188
    %vm2447 = vcmp.eq.f32.partialorder %v1373, %v2191
    %vm2448 = vcmp.eq.f32.partialorder %v1378, %v2194
    %vm2449 = vcmp.eq.f32.partialorder %v1383, %v2197
    %vm2450 = vcmp.eq.f32.partialorder %v1388, %v2200
    %vm2451 = vcmp.eq.f32.partialorder %v1393, %v2203
    %vm2452 = vcmp.eq.f32.partialorder %v1398, %v2206
    %vm2453 = vcmp.eq.f32.partialorder %v1403, %v2209
    %vm2454 = vcmp.eq.f32.partialorder %v1408, %v2212
    %vm2455 = vcmp.eq.f32.partialorder %v1413, %v2215
    %vm2456 = vcmp.eq.f32.partialorder %v1418, %v2218
    %vm2457 = vcmp.eq.f32.partialorder %v1423, %v2221
    %vm2458 = vcmp.eq.f32.partialorder %v1428, %v2224
    %vm2459 = vcmp.eq.f32.partialorder %v1433, %v2227
    %vm2460 = vcmp.eq.f32.partialorder %v1438, %v2230
    %vm2461 = vcmp.eq.f32.partialorder %v1443, %v2233
    %vm2462 = vcmp.eq.f32.partialorder %v1448, %v2236
    %vm2463 = vcmp.eq.f32.partialorder %v1453, %v2239
    %vm2464 = vcmp.eq.f32.partialorder %v1458, %v2242
    %vm2465 = vcmp.eq.f32.partialorder %v1463, %v2245
    %vm2466 = vcmp.eq.f32.partialorder %v1468, %v2248
    %vm2467 = vcmp.eq.f32.partialorder %v1473, %v2251
    %vm2468 = vcmp.eq.f32.partialorder %v1478, %v2254
    %vm2469 = vcmp.eq.f32.partialorder %v1483, %v2257
    %vm2470 = vcmp.eq.f32.partialorder %v1488, %v2260
    %vm2471 = vcmp.eq.f32.partialorder %v1493, %v2263
    %vm2472 = vcmp.eq.f32.partialorder %v1498, %v2266
    %vm2473 = vcmp.eq.f32.partialorder %v1503, %v2269
    %vm2474 = vcmp.eq.f32.partialorder %v1508, %v2272
    %vm2475 = vcmp.eq.f32.partialorder %v1513, %v2275
    %vm2476 = vcmp.eq.f32.partialorder %v1518, %v2278
    %vm2477 = vcmp.eq.f32.partialorder %v1523, %v2281
    %vm2478 = vcmp.eq.f32.partialorder %v1528, %v2284
    %vm2479 = vcmp.eq.f32.partialorder %v1533, %v2287
    %vm2480 = vcmp.eq.f32.partialorder %v1538, %v2290
    %vm2481 = vcmp.eq.f32.partialorder %v1543, %v2293
    %vm2482 = vcmp.eq.f32.partialorder %v1548, %v2296
    %vm2483 = vcmp.eq.f32.partialorder %v1553, %v2299
    %vm2484 = vcmp.eq.f32.partialorder %v1558, %v2302
    %vm2485 = vcmp.eq.f32.partialorder %v1563, %v2305
    %vm2486 = vcmp.eq.f32.partialorder %v1568, %v2308
    %vm2487 = vcmp.eq.f32.partialorder %v1573, %v2311
    %vm2488 = vcmp.eq.f32.partialorder %v1578, %v2314
    %vm2489 = vcmp.eq.f32.partialorder %v1583, %v2317
    %vm2490 = vcmp.eq.f32.partialorder %v1588, %v2320
    %vm2491 = vcmp.eq.f32.partialorder %v1593, %v2323
    %vm2492 = vcmp.eq.f32.partialorder %v1598, %v2326
    %vm2493 = vcmp.eq.f32.partialorder %v1603, %v2329
    %vm2494 = vcmp.eq.f32.partialorder %v1608, %v2332
    %vm2495 = vcmp.eq.f32.partialorder %v1613, %v2335
    %vm2496 = vcmp.lt.s32.totalorder %v658, %v1698
    %vm2497 = vcmp.lt.s32.totalorder %v658, %v1701
    %vm2498 = vcmp.lt.s32.totalorder %v658, %v1704
    %vm2499 = vcmp.lt.s32.totalorder %v658, %v1707
    %vm2500 = vcmp.lt.s32.totalorder %v658, %v1710
    %vm2501 = vcmp.lt.s32.totalorder %v658, %v1713
    %vm2502 = vcmp.lt.s32.totalorder %v658, %v1716
    %vm2503 = vcmp.lt.s32.totalorder %v658, %v1719
    %vm2504 = vcmp.lt.s32.totalorder %v658, %v1722
    %vm2505 = vcmp.lt.s32.totalorder %v658, %v1725
    %vm2506 = vcmp.lt.s32.totalorder %v658, %v1728
    %vm2507 = vcmp.lt.s32.totalorder %v658, %v1731
    %vm2508 = vcmp.lt.s32.totalorder %v658, %v1734
    %vm2509 = vcmp.lt.s32.totalorder %v658, %v1737
    %vm2510 = vcmp.lt.s32.totalorder %v658, %v1740
    %vm2511 = vcmp.lt.s32.totalorder %v658, %v1743
    %vm2512 = vcmp.lt.s32.totalorder %v658, %v1746
    %vm2513 = vcmp.lt.s32.totalorder %v658, %v1749
    %vm2514 = vcmp.lt.s32.totalorder %v658, %v1752
    %vm2515 = vcmp.lt.s32.totalorder %v658, %v1755
    %vm2516 = vcmp.lt.s32.totalorder %v658, %v1758
    %vm2517 = vcmp.lt.s32.totalorder %v658, %v1761
    %vm2518 = vcmp.lt.s32.totalorder %v658, %v1764
    %vm2519 = vcmp.lt.s32.totalorder %v658, %v1767
    %vm2520 = vcmp.lt.s32.totalorder %v658, %v1770
    %vm2521 = vcmp.lt.s32.totalorder %v658, %v1773
    %vm2522 = vcmp.lt.s32.totalorder %v658, %v1776
    %vm2523 = vcmp.lt.s32.totalorder %v658, %v1779
    %vm2524 = vcmp.lt.s32.totalorder %v658, %v1782
    %vm2525 = vcmp.lt.s32.totalorder %v658, %v1785
    %vm2526 = vcmp.lt.s32.totalorder %v658, %v1788
    %vm2527 = vcmp.lt.s32.totalorder %v658, %v1791
    %vm2528 = vcmp.lt.s32.totalorder %v658, %v1794
    %vm2529 = vcmp.lt.s32.totalorder %v658, %v1797
    %vm2530 = vcmp.lt.s32.totalorder %v658, %v1800
    %vm2531 = vcmp.lt.s32.totalorder %v658, %v1803
    %vm2532 = vcmp.lt.s32.totalorder %v658, %v1806
    %vm2533 = vcmp.lt.s32.totalorder %v658, %v1809
    %vm2534 = vcmp.lt.s32.totalorder %v658, %v1812
    %vm2535 = vcmp.lt.s32.totalorder %v658, %v1815
    %vm2536 = vcmp.lt.s32.totalorder %v658, %v1818
    %vm2537 = vcmp.lt.s32.totalorder %v658, %v1821
    %vm2538 = vcmp.lt.s32.totalorder %v658, %v1824
    %vm2539 = vcmp.lt.s32.totalorder %v658, %v1827
    %vm2540 = vcmp.lt.s32.totalorder %v658, %v1830
    %vm2541 = vcmp.lt.s32.totalorder %v658, %v1833
    %vm2542 = vcmp.lt.s32.totalorder %v658, %v1836
    %vm2543 = vcmp.lt.s32.totalorder %v658, %v1839
    %vm2544 = vcmp.lt.s32.totalorder %v658, %v1842
    %vm2545 = vcmp.lt.s32.totalorder %v658, %v1845
    %vm2546 = vcmp.lt.s32.totalorder %v658, %v1848
    %vm2547 = vcmp.lt.s32.totalorder %v658, %v1851
    %vm2548 = vcmp.lt.s32.totalorder %v658, %v1854
    %vm2549 = vcmp.lt.s32.totalorder %v658, %v1857
    %vm2550 = vcmp.lt.s32.totalorder %v658, %v1860
    %vm2551 = vcmp.lt.s32.totalorder %v658, %v1863
    %vm2552 = vcmp.lt.s32.totalorder %v658, %v1866
    %vm2553 = vcmp.lt.s32.totalorder %v658, %v1869
    %vm2554 = vcmp.lt.s32.totalorder %v658, %v1872
    %vm2555 = vcmp.lt.s32.totalorder %v658, %v1875
    %vm2556 = vcmp.lt.s32.totalorder %v658, %v1878
    %vm2557 = vcmp.lt.s32.totalorder %v658, %v1881
    %vm2558 = vcmp.lt.s32.totalorder %v658, %v1884
    %vm2559 = vcmp.lt.s32.totalorder %v658, %v1887
    %vm2560 = vcmp.lt.s32.totalorder %v658, %v1890
    %vm2561 = vcmp.lt.s32.totalorder %v658, %v1893
    %vm2562 = vcmp.lt.s32.totalorder %v658, %v1896
    %vm2563 = vcmp.lt.s32.totalorder %v658, %v1899
    %vm2564 = vcmp.lt.s32.totalorder %v658, %v1902
    %vm2565 = vcmp.lt.s32.totalorder %v658, %v1905
    %vm2566 = vcmp.lt.s32.totalorder %v658, %v1908
    %vm2567 = vcmp.lt.s32.totalorder %v658, %v1911
    %vm2568 = vcmp.lt.s32.totalorder %v658, %v1914
    %vm2569 = vcmp.lt.s32.totalorder %v658, %v1917
    %vm2570 = vcmp.lt.s32.totalorder %v658, %v1920
    %vm2571 = vcmp.lt.s32.totalorder %v658, %v1923
    %vm2572 = vcmp.lt.s32.totalorder %v658, %v1926
    %vm2573 = vcmp.lt.s32.totalorder %v658, %v1929
    %vm2574 = vcmp.lt.s32.totalorder %v658, %v1932
    %vm2575 = vcmp.lt.s32.totalorder %v658, %v1935
    %vm2576 = vmand %vm2416, %vm2496
    %vm2577 = vmand %vm2417, %vm2497
    %vm2578 = vmand %vm2418, %vm2498
    %vm2579 = vmand %vm2419, %vm2499
    %vm2580 = vmand %vm2420, %vm2500
    %vm2581 = vmand %vm2421, %vm2501
    %vm2582 = vmand %vm2422, %vm2502
    %vm2583 = vmand %vm2423, %vm2503
    %vm2584 = vmand %vm2424, %vm2504
    %vm2585 = vmand %vm2425, %vm2505
    %vm2586 = vmand %vm2426, %vm2506
    %vm2587 = vmand %vm2427, %vm2507
    %vm2588 = vmand %vm2428, %vm2508
    %vm2589 = vmand %vm2429, %vm2509
    %vm2590 = vmand %vm2430, %vm2510
    %vm2591 = vmand %vm2431, %vm2511
    %vm2592 = vmand %vm2432, %vm2512
    %vm2593 = vmand %vm2433, %vm2513
    %vm2594 = vmand %vm2434, %vm2514
    %vm2595 = vmand %vm2435, %vm2515
    %vm2596 = vmand %vm2436, %vm2516
    %vm2597 = vmand %vm2437, %vm2517
    %vm2598 = vmand %vm2438, %vm2518
    %vm2599 = vmand %vm2439, %vm2519
    %vm2600 = vmand %vm2440, %vm2520
    %vm2601 = vmand %vm2441, %vm2521
    %vm2602 = vmand %vm2442, %vm2522
    %vm2603 = vmand %vm2443, %vm2523
    %vm2604 = vmand %vm2444, %vm2524
    %vm2605 = vmand %vm2445, %vm2525
    %vm2606 = vmand %vm2446, %vm2526
    %vm2607 = vmand %vm2447, %vm2527
    %vm2608 = vmand %vm2448, %vm2528
    %vm2609 = vmand %vm2449, %vm2529
    %vm2610 = vmand %vm2450, %vm2530
    %vm2611 = vmand %vm2451, %vm2531
    %vm2612 = vmand %vm2452, %vm2532
    %vm2613 = vmand %vm2453, %vm2533
    %vm2614 = vmand %vm2454, %vm2534
    %vm2615 = vmand %vm2455, %vm2535
    %vm2616 = vmand %vm2456, %vm2536
    %vm2617 = vmand %vm2457, %vm2537
    %vm2618 = vmand %vm2458, %vm2538
    %vm2619 = vmand %vm2459, %vm2539
    %vm2620 = vmand %vm2460, %vm2540
    %vm2621 = vmand %vm2461, %vm2541
    %vm2622 = vmand %vm2462, %vm2542
    %vm2623 = vmand %vm2463, %vm2543
    %vm2624 = vmand %vm2464, %vm2544
    %vm2625 = vmand %vm2465, %vm2545
    %vm2626 = vmand %vm2466, %vm2546
    %vm2627 = vmand %vm2467, %vm2547
    %vm2628 = vmand %vm2468, %vm2548
    %vm2629 = vmand %vm2469, %vm2549
    %vm2630 = vmand %vm2470, %vm2550
    %vm2631 = vmand %vm2471, %vm2551
    %vm2632 = vmand %vm2472, %vm2552
    %vm2633 = vmand %vm2473, %vm2553
    %vm2634 = vmand %vm2474, %vm2554
    %vm2635 = vmand %vm2475, %vm2555
    %vm2636 = vmand %vm2476, %vm2556
    %vm2637 = vmand %vm2477, %vm2557
    %vm2638 = vmand %vm2478, %vm2558
    %vm2639 = vmand %vm2479, %vm2559
    %vm2640 = vmand %vm2480, %vm2560
    %vm2641 = vmand %vm2481, %vm2561
    %vm2642 = vmand %vm2482, %vm2562
    %vm2643 = vmand %vm2483, %vm2563
    %vm2644 = vmand %vm2484, %vm2564
    %vm2645 = vmand %vm2485, %vm2565
    %vm2646 = vmand %vm2486, %vm2566
    %vm2647 = vmand %vm2487, %vm2567
    %vm2648 = vmand %vm2488, %vm2568
    %vm2649 = vmand %vm2489, %vm2569
    %vm2650 = vmand %vm2490, %vm2570
    %vm2651 = vmand %vm2491, %vm2571
    %vm2652 = vmand %vm2492, %vm2572
    %vm2653 = vmand %vm2493, %vm2573
    %vm2654 = vmand %vm2494, %vm2574
    %vm2655 = vmand %vm2495, %vm2575
    %vm2656 = vmor %vm2336, %vm2576
    %vm2657 = vmor %vm2337, %vm2577
    %vm2658 = vmor %vm2338, %vm2578
    %vm2659 = vmor %vm2339, %vm2579
    %vm2660 = vmor %vm2340, %vm2580
    %vm2661 = vmor %vm2341, %vm2581
    %vm2662 = vmor %vm2342, %vm2582
    %vm2663 = vmor %vm2343, %vm2583
    %vm2664 = vmor %vm2344, %vm2584
    %vm2665 = vmor %vm2345, %vm2585
    %vm2666 = vmor %vm2346, %vm2586
    %vm2667 = vmor %vm2347, %vm2587
    %vm2668 = vmor %vm2348, %vm2588
    %vm2669 = vmor %vm2349, %vm2589
    %vm2670 = vmor %vm2350, %vm2590
    %vm2671 = vmor %vm2351, %vm2591
    %vm2672 = vmor %vm2352, %vm2592
    %vm2673 = vmor %vm2353, %vm2593
    %vm2674 = vmor %vm2354, %vm2594
    %vm2675 = vmor %vm2355, %vm2595
    %vm2676 = vmor %vm2356, %vm2596
    %vm2677 = vmor %vm2357, %vm2597
    %vm2678 = vmor %vm2358, %vm2598
    %vm2679 = vmor %vm2359, %vm2599
    %vm2680 = vmor %vm2360, %vm2600
    %vm2681 = vmor %vm2361, %vm2601
    %vm2682 = vmor %vm2362, %vm2602
    %vm2683 = vmor %vm2363, %vm2603
    %vm2684 = vmor %vm2364, %vm2604
    %vm2685 = vmor %vm2365, %vm2605
    %vm2686 = vmor %vm2366, %vm2606
    %vm2687 = vmor %vm2367, %vm2607
    %vm2688 = vmor %vm2368, %vm2608
    %vm2689 = vmor %vm2369, %vm2609
    %vm2690 = vmor %vm2370, %vm2610
    %vm2691 = vmor %vm2371, %vm2611
    %vm2692 = vmor %vm2372, %vm2612
    %vm2693 = vmor %vm2373, %vm2613
    %vm2694 = vmor %vm2374, %vm2614
    %vm2695 = vmor %vm2375, %vm2615
    %vm2696 = vmor %vm2376, %vm2616
    %vm2697 = vmor %vm2377, %vm2617
    %vm2698 = vmor %vm2378, %vm2618
    %vm2699 = vmor %vm2379, %vm2619
    %vm2700 = vmor %vm2380, %vm2620
    %vm2701 = vmor %vm2381, %vm2621
    %vm2702 = vmor %vm2382, %vm2622
    %vm2703 = vmor %vm2383, %vm2623
    %vm2704 = vmor %vm2384, %vm2624
    %vm2705 = vmor %vm2385, %vm2625
    %vm2706 = vmor %vm2386, %vm2626
    %vm2707 = vmor %vm2387, %vm2627
    %vm2708 = vmor %vm2388, %vm2628
    %vm2709 = vmor %vm2389, %vm2629
    %vm2710 = vmor %vm2390, %vm2630
    %vm2711 = vmor %vm2391, %vm2631
    %vm2712 = vmor %vm2392, %vm2632
    %vm2713 = vmor %vm2393, %vm2633
    %vm2714 = vmor %vm2394, %vm2634
    %vm2715 = vmor %vm2395, %vm2635
    %vm2716 = vmor %vm2396, %vm2636
    %vm2717 = vmor %vm2397, %vm2637
    %vm2718 = vmor %vm2398, %vm2638
    %vm2719 = vmor %vm2399, %vm2639
    %vm2720 = vmor %vm2400, %vm2640
    %vm2721 = vmor %vm2401, %vm2641
    %vm2722 = vmor %vm2402, %vm2642
    %vm2723 = vmor %vm2403, %vm2643
    %vm2724 = vmor %vm2404, %vm2644
    %vm2725 = vmor %vm2405, %vm2645
    %vm2726 = vmor %vm2406, %vm2646
    %vm2727 = vmor %vm2407, %vm2647
    %vm2728 = vmor %vm2408, %vm2648
    %vm2729 = vmor %vm2409, %vm2649
    %vm2730 = vmor %vm2410, %vm2650
    %vm2731 = vmor %vm2411, %vm2651
    %vm2732 = vmor %vm2412, %vm2652
    %vm2733 = vmor %vm2413, %vm2653
    %vm2734 = vmor %vm2414, %vm2654
    %vm2735 = vmor %vm2415, %vm2655
    %v2736 = vsel %vm2656, 1, 0
    %v2737 = vsel %vm2657, 1, 0
    %v2738 = vsel %vm2658, 1, 0
    %v2739 = vsel %vm2659, 1, 0
    %v2740 = vsel %vm2660, 1, 0
    %v2741 = vsel %vm2661, 1, 0
    %v2742 = vsel %vm2662, 1, 0
    %v2743 = vsel %vm2663, 1, 0
    %v2744 = vsel %vm2664, 1, 0
    %v2745 = vsel %vm2665, 1, 0
    %v2746 = vsel %vm2666, 1, 0
    %v2747 = vsel %vm2667, 1, 0
    %v2748 = vsel %vm2668, 1, 0
    %v2749 = vsel %vm2669, 1, 0
    %v2750 = vsel %vm2670, 1, 0
    %v2751 = vsel %vm2671, 1, 0
    %v2752 = vsel %vm2672, 1, 0
    %v2753 = vsel %vm2673, 1, 0
    %v2754 = vsel %vm2674, 1, 0
    %v2755 = vsel %vm2675, 1, 0
    %v2756 = vsel %vm2676, 1, 0
    %v2757 = vsel %vm2677, 1, 0
    %v2758 = vsel %vm2678, 1, 0
    %v2759 = vsel %vm2679, 1, 0
    %v2760 = vsel %vm2680, 1, 0
    %v2761 = vsel %vm2681, 1, 0
    %v2762 = vsel %vm2682, 1, 0
    %v2763 = vsel %vm2683, 1, 0
    %v2764 = vsel %vm2684, 1, 0
    %v2765 = vsel %vm2685, 1, 0
    %v2766 = vsel %vm2686, 1, 0
    %v2767 = vsel %vm2687, 1, 0
    %v2768 = vsel %vm2688, 1, 0
    %v2769 = vsel %vm2689, 1, 0
    %v2770 = vsel %vm2690, 1, 0
    %v2771 = vsel %vm2691, 1, 0
    %v2772 = vsel %vm2692, 1, 0
    %v2773 = vsel %vm2693, 1, 0
    %v2774 = vsel %vm2694, 1, 0
    %v2775 = vsel %vm2695, 1, 0
    %v2776 = vsel %vm2696, 1, 0
    %v2777 = vsel %vm2697, 1, 0
    %v2778 = vsel %vm2698, 1, 0
    %v2779 = vsel %vm2699, 1, 0
    %v2780 = vsel %vm2700, 1, 0
    %v2781 = vsel %vm2701, 1, 0
    %v2782 = vsel %vm2702, 1, 0
    %v2783 = vsel %vm2703, 1, 0
    %v2784 = vsel %vm2704, 1, 0
    %v2785 = vsel %vm2705, 1, 0
    %v2786 = vsel %vm2706, 1, 0
    %v2787 = vsel %vm2707, 1, 0
    %v2788 = vsel %vm2708, 1, 0
    %v2789 = vsel %vm2709, 1, 0
    %v2790 = vsel %vm2710, 1, 0
    %v2791 = vsel %vm2711, 1, 0
    %v2792 = vsel %vm2712, 1, 0
    %v2793 = vsel %vm2713, 1, 0
    %v2794 = vsel %vm2714, 1, 0
    %v2795 = vsel %vm2715, 1, 0
    %v2796 = vsel %vm2716, 1, 0
    %v2797 = vsel %vm2717, 1, 0
    %v2798 = vsel %vm2718, 1, 0
    %v2799 = vsel %vm2719, 1, 0
    %v2800 = vsel %vm2720, 1, 0
    %v2801 = vsel %vm2721, 1, 0
    %v2802 = vsel %vm2722, 1, 0
    %v2803 = vsel %vm2723, 1, 0
    %v2804 = vsel %vm2724, 1, 0
    %v2805 = vsel %vm2725, 1, 0
    %v2806 = vsel %vm2726, 1, 0
    %v2807 = vsel %vm2727, 1, 0
    %v2808 = vsel %vm2728, 1, 0
    %v2809 = vsel %vm2729, 1, 0
    %v2810 = vsel %vm2730, 1, 0
    %v2811 = vsel %vm2731, 1, 0
    %v2812 = vsel %vm2732, 1, 0
    %v2813 = vsel %vm2733, 1, 0
    %v2814 = vsel %vm2734, 1, 0
    %v2815 = vsel %vm2735, 1, 0
    %v2816 = vsel %vm642, %v2736, 0
    %v2817 = vand.u32 %v2816, 65535
    %v2818 = vshrl.u32 %v2816, 16
    %v2819 = vcvt.s32.f32 %v2817
    %v2820 = vcvt.s32.f32 %v2818
    %2821 = vadd.xlane.f32.xlu0 %v2819
    %v2822 = vpop.xlane.xlu0 %2821
    %2823 = vadd.xlane.f32.xlu0 %v2820
    %v2824 = vpop.xlane.xlu0 %2823
    %v2825 = vcvt.f32.s32 %v2822
    %v2826 = vcvt.f32.s32 %v2824
    %v2827 = vshll.u32 %v2826, 16
    %v2828 = vadd.s32 %v2827, %v2825
    %v2829 = vsel %vm642, %v2737, 0
    %v2830 = vand.u32 %v2829, 65535
    %v2831 = vshrl.u32 %v2829, 16
    %v2832 = vcvt.s32.f32 %v2830
    %v2833 = vcvt.s32.f32 %v2831
    %2834 = vadd.xlane.f32.xlu0 %v2832
    %v2835 = vpop.xlane.xlu0 %2834
    %2836 = vadd.xlane.f32.xlu0 %v2833
    %v2837 = vpop.xlane.xlu0 %2836
    %v2838 = vcvt.f32.s32 %v2835
    %v2839 = vcvt.f32.s32 %v2837
    %v2840 = vshll.u32 %v2839, 16
    %v2841 = vadd.s32 %v2840, %v2838
    %v2842 = vsel %vm642, %v2738, 0
    %v2843 = vand.u32 %v2842, 65535
    %v2844 = vshrl.u32 %v2842, 16
    %v2845 = vcvt.s32.f32 %v2843
    %v2846 = vcvt.s32.f32 %v2844
    %2847 = vadd.xlane.f32.xlu0 %v2845
    %v2848 = vpop.xlane.xlu0 %2847
    %2849 = vadd.xlane.f32.xlu0 %v2846
    %v2850 = vpop.xlane.xlu0 %2849
    %v2851 = vcvt.f32.s32 %v2848
    %v2852 = vcvt.f32.s32 %v2850
    %v2853 = vshll.u32 %v2852, 16
    %v2854 = vadd.s32 %v2853, %v2851
    %v2855 = vsel %vm642, %v2739, 0
    %v2856 = vand.u32 %v2855, 65535
    %v2857 = vshrl.u32 %v2855, 16
    %v2858 = vcvt.s32.f32 %v2856
    %v2859 = vcvt.s32.f32 %v2857
    %2860 = vadd.xlane.f32.xlu0 %v2858
    %v2861 = vpop.xlane.xlu0 %2860
    %2862 = vadd.xlane.f32.xlu0 %v2859
    %v2863 = vpop.xlane.xlu0 %2862
    %v2864 = vcvt.f32.s32 %v2861
    %v2865 = vcvt.f32.s32 %v2863
    %v2866 = vshll.u32 %v2865, 16
    %v2867 = vadd.s32 %v2866, %v2864
    %v2868 = vsel %vm642, %v2740, 0
    %v2869 = vand.u32 %v2868, 65535
    %v2870 = vshrl.u32 %v2868, 16
    %v2871 = vcvt.s32.f32 %v2869
    %v2872 = vcvt.s32.f32 %v2870
    %2873 = vadd.xlane.f32.xlu0 %v2871
    %v2874 = vpop.xlane.xlu0 %2873
    %2875 = vadd.xlane.f32.xlu0 %v2872
    %v2876 = vpop.xlane.xlu0 %2875
    %v2877 = vcvt.f32.s32 %v2874
    %v2878 = vcvt.f32.s32 %v2876
    %v2879 = vshll.u32 %v2878, 16
    %v2880 = vadd.s32 %v2879, %v2877
    %v2881 = vsel %vm642, %v2741, 0
    %v2882 = vand.u32 %v2881, 65535
    %v2883 = vshrl.u32 %v2881, 16
    %v2884 = vcvt.s32.f32 %v2882
    %v2885 = vcvt.s32.f32 %v2883
    %2886 = vadd.xlane.f32.xlu0 %v2884
    %v2887 = vpop.xlane.xlu0 %2886
    %2888 = vadd.xlane.f32.xlu0 %v2885
    %v2889 = vpop.xlane.xlu0 %2888
    %v2890 = vcvt.f32.s32 %v2887
    %v2891 = vcvt.f32.s32 %v2889
    %v2892 = vshll.u32 %v2891, 16
    %v2893 = vadd.s32 %v2892, %v2890
    %v2894 = vsel %vm642, %v2742, 0
    %v2895 = vand.u32 %v2894, 65535
    %v2896 = vshrl.u32 %v2894, 16
    %v2897 = vcvt.s32.f32 %v2895
    %v2898 = vcvt.s32.f32 %v2896
    %2899 = vadd.xlane.f32.xlu0 %v2897
    %v2900 = vpop.xlane.xlu0 %2899
    %2901 = vadd.xlane.f32.xlu0 %v2898
    %v2902 = vpop.xlane.xlu0 %2901
    %v2903 = vcvt.f32.s32 %v2900
    %v2904 = vcvt.f32.s32 %v2902
    %v2905 = vshll.u32 %v2904, 16
    %v2906 = vadd.s32 %v2905, %v2903
    %v2907 = vsel %vm642, %v2743, 0
    %v2908 = vand.u32 %v2907, 65535
    %v2909 = vshrl.u32 %v2907, 16
    %v2910 = vcvt.s32.f32 %v2908
    %v2911 = vcvt.s32.f32 %v2909
    %2912 = vadd.xlane.f32.xlu0 %v2910
    %v2913 = vpop.xlane.xlu0 %2912
    %2914 = vadd.xlane.f32.xlu0 %v2911
    %v2915 = vpop.xlane.xlu0 %2914
    %v2916 = vcvt.f32.s32 %v2913
    %v2917 = vcvt.f32.s32 %v2915
    %v2918 = vshll.u32 %v2917, 16
    %v2919 = vadd.s32 %v2918, %v2916
    %v2920 = vsel %vm642, %v2744, 0
    %v2921 = vand.u32 %v2920, 65535
    %v2922 = vshrl.u32 %v2920, 16
    %v2923 = vcvt.s32.f32 %v2921
    %v2924 = vcvt.s32.f32 %v2922
    %2925 = vadd.xlane.f32.xlu0 %v2923
    %v2926 = vpop.xlane.xlu0 %2925
    %2927 = vadd.xlane.f32.xlu0 %v2924
    %v2928 = vpop.xlane.xlu0 %2927
    %v2929 = vcvt.f32.s32 %v2926
    %v2930 = vcvt.f32.s32 %v2928
    %v2931 = vshll.u32 %v2930, 16
    %v2932 = vadd.s32 %v2931, %v2929
    %v2933 = vsel %vm642, %v2745, 0
    %v2934 = vand.u32 %v2933, 65535
    %v2935 = vshrl.u32 %v2933, 16
    %v2936 = vcvt.s32.f32 %v2934
    %v2937 = vcvt.s32.f32 %v2935
    %2938 = vadd.xlane.f32.xlu0 %v2936
    %v2939 = vpop.xlane.xlu0 %2938
    %2940 = vadd.xlane.f32.xlu0 %v2937
    %v2941 = vpop.xlane.xlu0 %2940
    %v2942 = vcvt.f32.s32 %v2939
    %v2943 = vcvt.f32.s32 %v2941
    %v2944 = vshll.u32 %v2943, 16
    %v2945 = vadd.s32 %v2944, %v2942
    %v2946 = vsel %vm642, %v2746, 0
    %v2947 = vand.u32 %v2946, 65535
    %v2948 = vshrl.u32 %v2946, 16
    %v2949 = vcvt.s32.f32 %v2947
    %v2950 = vcvt.s32.f32 %v2948
    %2951 = vadd.xlane.f32.xlu0 %v2949
    %v2952 = vpop.xlane.xlu0 %2951
    %2953 = vadd.xlane.f32.xlu0 %v2950
    %v2954 = vpop.xlane.xlu0 %2953
    %v2955 = vcvt.f32.s32 %v2952
    %v2956 = vcvt.f32.s32 %v2954
    %v2957 = vshll.u32 %v2956, 16
    %v2958 = vadd.s32 %v2957, %v2955
    %v2959 = vsel %vm642, %v2747, 0
    %v2960 = vand.u32 %v2959, 65535
    %v2961 = vshrl.u32 %v2959, 16
    %v2962 = vcvt.s32.f32 %v2960
    %v2963 = vcvt.s32.f32 %v2961
    %2964 = vadd.xlane.f32.xlu0 %v2962
    %v2965 = vpop.xlane.xlu0 %2964
    %2966 = vadd.xlane.f32.xlu0 %v2963
    %v2967 = vpop.xlane.xlu0 %2966
    %v2968 = vcvt.f32.s32 %v2965
    %v2969 = vcvt.f32.s32 %v2967
    %v2970 = vshll.u32 %v2969, 16
    %v2971 = vadd.s32 %v2970, %v2968
    %v2972 = vsel %vm642, %v2748, 0
    %v2973 = vand.u32 %v2972, 65535
    %v2974 = vshrl.u32 %v2972, 16
    %v2975 = vcvt.s32.f32 %v2973
    %v2976 = vcvt.s32.f32 %v2974
    %2977 = vadd.xlane.f32.xlu0 %v2975
    %v2978 = vpop.xlane.xlu0 %2977
    %2979 = vadd.xlane.f32.xlu0 %v2976
    %v2980 = vpop.xlane.xlu0 %2979
    %v2981 = vcvt.f32.s32 %v2978
    %v2982 = vcvt.f32.s32 %v2980
    %v2983 = vshll.u32 %v2982, 16
    %v2984 = vadd.s32 %v2983, %v2981
    %v2985 = vsel %vm642, %v2749, 0
    %v2986 = vand.u32 %v2985, 65535
    %v2987 = vshrl.u32 %v2985, 16
    %v2988 = vcvt.s32.f32 %v2986
    %v2989 = vcvt.s32.f32 %v2987
    %2990 = vadd.xlane.f32.xlu0 %v2988
    %v2991 = vpop.xlane.xlu0 %2990
    %2992 = vadd.xlane.f32.xlu0 %v2989
    %v2993 = vpop.xlane.xlu0 %2992
    %v2994 = vcvt.f32.s32 %v2991
    %v2995 = vcvt.f32.s32 %v2993
    %v2996 = vshll.u32 %v2995, 16
    %v2997 = vadd.s32 %v2996, %v2994
    %v2998 = vsel %vm642, %v2750, 0
    %v2999 = vand.u32 %v2998, 65535
    %v3000 = vshrl.u32 %v2998, 16
    %v3001 = vcvt.s32.f32 %v2999
    %v3002 = vcvt.s32.f32 %v3000
    %3003 = vadd.xlane.f32.xlu0 %v3001
    %v3004 = vpop.xlane.xlu0 %3003
    %3005 = vadd.xlane.f32.xlu0 %v3002
    %v3006 = vpop.xlane.xlu0 %3005
    %v3007 = vcvt.f32.s32 %v3004
    %v3008 = vcvt.f32.s32 %v3006
    %v3009 = vshll.u32 %v3008, 16
    %v3010 = vadd.s32 %v3009, %v3007
    %v3011 = vsel %vm642, %v2751, 0
    %v3012 = vand.u32 %v3011, 65535
    %v3013 = vshrl.u32 %v3011, 16
    %v3014 = vcvt.s32.f32 %v3012
    %v3015 = vcvt.s32.f32 %v3013
    %3016 = vadd.xlane.f32.xlu0 %v3014
    %v3017 = vpop.xlane.xlu0 %3016
    %3018 = vadd.xlane.f32.xlu0 %v3015
    %v3019 = vpop.xlane.xlu0 %3018
    %v3020 = vcvt.f32.s32 %v3017
    %v3021 = vcvt.f32.s32 %v3019
    %v3022 = vshll.u32 %v3021, 16
    %v3023 = vadd.s32 %v3022, %v3020
    %v3024 = vsel %vm642, %v2752, 0
    %v3025 = vand.u32 %v3024, 65535
    %v3026 = vshrl.u32 %v3024, 16
    %v3027 = vcvt.s32.f32 %v3025
    %v3028 = vcvt.s32.f32 %v3026
    %3029 = vadd.xlane.f32.xlu0 %v3027
    %v3030 = vpop.xlane.xlu0 %3029
    %3031 = vadd.xlane.f32.xlu0 %v3028
    %v3032 = vpop.xlane.xlu0 %3031
    %v3033 = vcvt.f32.s32 %v3030
    %v3034 = vcvt.f32.s32 %v3032
    %v3035 = vshll.u32 %v3034, 16
    %v3036 = vadd.s32 %v3035, %v3033
    %v3037 = vsel %vm642, %v2753, 0
    %v3038 = vand.u32 %v3037, 65535
    %v3039 = vshrl.u32 %v3037, 16
    %v3040 = vcvt.s32.f32 %v3038
    %v3041 = vcvt.s32.f32 %v3039
    %3042 = vadd.xlane.f32.xlu0 %v3040
    %v3043 = vpop.xlane.xlu0 %3042
    %3044 = vadd.xlane.f32.xlu0 %v3041
    %v3045 = vpop.xlane.xlu0 %3044
    %v3046 = vcvt.f32.s32 %v3043
    %v3047 = vcvt.f32.s32 %v3045
    %v3048 = vshll.u32 %v3047, 16
    %v3049 = vadd.s32 %v3048, %v3046
    %v3050 = vsel %vm642, %v2754, 0
    %v3051 = vand.u32 %v3050, 65535
    %v3052 = vshrl.u32 %v3050, 16
    %v3053 = vcvt.s32.f32 %v3051
    %v3054 = vcvt.s32.f32 %v3052
    %3055 = vadd.xlane.f32.xlu0 %v3053
    %v3056 = vpop.xlane.xlu0 %3055
    %3057 = vadd.xlane.f32.xlu0 %v3054
    %v3058 = vpop.xlane.xlu0 %3057
    %v3059 = vcvt.f32.s32 %v3056
    %v3060 = vcvt.f32.s32 %v3058
    %v3061 = vshll.u32 %v3060, 16
    %v3062 = vadd.s32 %v3061, %v3059
    %v3063 = vsel %vm642, %v2755, 0
    %v3064 = vand.u32 %v3063, 65535
    %v3065 = vshrl.u32 %v3063, 16
    %v3066 = vcvt.s32.f32 %v3064
    %v3067 = vcvt.s32.f32 %v3065
    %3068 = vadd.xlane.f32.xlu0 %v3066
    %v3069 = vpop.xlane.xlu0 %3068
    %3070 = vadd.xlane.f32.xlu0 %v3067
    %v3071 = vpop.xlane.xlu0 %3070
    %v3072 = vcvt.f32.s32 %v3069
    %v3073 = vcvt.f32.s32 %v3071
    %v3074 = vshll.u32 %v3073, 16
    %v3075 = vadd.s32 %v3074, %v3072
    %v3076 = vsel %vm642, %v2756, 0
    %v3077 = vand.u32 %v3076, 65535
    %v3078 = vshrl.u32 %v3076, 16
    %v3079 = vcvt.s32.f32 %v3077
    %v3080 = vcvt.s32.f32 %v3078
    %3081 = vadd.xlane.f32.xlu0 %v3079
    %v3082 = vpop.xlane.xlu0 %3081
    %3083 = vadd.xlane.f32.xlu0 %v3080
    %v3084 = vpop.xlane.xlu0 %3083
    %v3085 = vcvt.f32.s32 %v3082
    %v3086 = vcvt.f32.s32 %v3084
    %v3087 = vshll.u32 %v3086, 16
    %v3088 = vadd.s32 %v3087, %v3085
    %v3089 = vsel %vm642, %v2757, 0
    %v3090 = vand.u32 %v3089, 65535
    %v3091 = vshrl.u32 %v3089, 16
    %v3092 = vcvt.s32.f32 %v3090
    %v3093 = vcvt.s32.f32 %v3091
    %3094 = vadd.xlane.f32.xlu0 %v3092
    %v3095 = vpop.xlane.xlu0 %3094
    %3096 = vadd.xlane.f32.xlu0 %v3093
    %v3097 = vpop.xlane.xlu0 %3096
    %v3098 = vcvt.f32.s32 %v3095
    %v3099 = vcvt.f32.s32 %v3097
    %v3100 = vshll.u32 %v3099, 16
    %v3101 = vadd.s32 %v3100, %v3098
    %v3102 = vsel %vm642, %v2758, 0
    %v3103 = vand.u32 %v3102, 65535
    %v3104 = vshrl.u32 %v3102, 16
    %v3105 = vcvt.s32.f32 %v3103
    %v3106 = vcvt.s32.f32 %v3104
    %3107 = vadd.xlane.f32.xlu0 %v3105
    %v3108 = vpop.xlane.xlu0 %3107
    %3109 = vadd.xlane.f32.xlu0 %v3106
    %v3110 = vpop.xlane.xlu0 %3109
    %v3111 = vcvt.f32.s32 %v3108
    %v3112 = vcvt.f32.s32 %v3110
    %v3113 = vshll.u32 %v3112, 16
    %v3114 = vadd.s32 %v3113, %v3111
    %v3115 = vsel %vm642, %v2759, 0
    %v3116 = vand.u32 %v3115, 65535
    %v3117 = vshrl.u32 %v3115, 16
    %v3118 = vcvt.s32.f32 %v3116
    %v3119 = vcvt.s32.f32 %v3117
    %3120 = vadd.xlane.f32.xlu0 %v3118
    %v3121 = vpop.xlane.xlu0 %3120
    %3122 = vadd.xlane.f32.xlu0 %v3119
    %v3123 = vpop.xlane.xlu0 %3122
    %v3124 = vcvt.f32.s32 %v3121
    %v3125 = vcvt.f32.s32 %v3123
    %v3126 = vshll.u32 %v3125, 16
    %v3127 = vadd.s32 %v3126, %v3124
    %v3128 = vsel %vm642, %v2760, 0
    %v3129 = vand.u32 %v3128, 65535
    %v3130 = vshrl.u32 %v3128, 16
    %v3131 = vcvt.s32.f32 %v3129
    %v3132 = vcvt.s32.f32 %v3130
    %3133 = vadd.xlane.f32.xlu0 %v3131
    %v3134 = vpop.xlane.xlu0 %3133
    %3135 = vadd.xlane.f32.xlu0 %v3132
    %v3136 = vpop.xlane.xlu0 %3135
    %v3137 = vcvt.f32.s32 %v3134
    %v3138 = vcvt.f32.s32 %v3136
    %v3139 = vshll.u32 %v3138, 16
    %v3140 = vadd.s32 %v3139, %v3137
    %v3141 = vsel %vm642, %v2761, 0
    %v3142 = vand.u32 %v3141, 65535
    %v3143 = vshrl.u32 %v3141, 16
    %v3144 = vcvt.s32.f32 %v3142
    %v3145 = vcvt.s32.f32 %v3143
    %3146 = vadd.xlane.f32.xlu0 %v3144
    %v3147 = vpop.xlane.xlu0 %3146
    %3148 = vadd.xlane.f32.xlu0 %v3145
    %v3149 = vpop.xlane.xlu0 %3148
    %v3150 = vcvt.f32.s32 %v3147
    %v3151 = vcvt.f32.s32 %v3149
    %v3152 = vshll.u32 %v3151, 16
    %v3153 = vadd.s32 %v3152, %v3150
    %v3154 = vsel %vm642, %v2762, 0
    %v3155 = vand.u32 %v3154, 65535
    %v3156 = vshrl.u32 %v3154, 16
    %v3157 = vcvt.s32.f32 %v3155
    %v3158 = vcvt.s32.f32 %v3156
    %3159 = vadd.xlane.f32.xlu0 %v3157
    %v3160 = vpop.xlane.xlu0 %3159
    %3161 = vadd.xlane.f32.xlu0 %v3158
    %v3162 = vpop.xlane.xlu0 %3161
    %v3163 = vcvt.f32.s32 %v3160
    %v3164 = vcvt.f32.s32 %v3162
    %v3165 = vshll.u32 %v3164, 16
    %v3166 = vadd.s32 %v3165, %v3163
    %v3167 = vsel %vm642, %v2763, 0
    %v3168 = vand.u32 %v3167, 65535
    %v3169 = vshrl.u32 %v3167, 16
    %v3170 = vcvt.s32.f32 %v3168
    %v3171 = vcvt.s32.f32 %v3169
    %3172 = vadd.xlane.f32.xlu0 %v3170
    %v3173 = vpop.xlane.xlu0 %3172
    %3174 = vadd.xlane.f32.xlu0 %v3171
    %v3175 = vpop.xlane.xlu0 %3174
    %v3176 = vcvt.f32.s32 %v3173
    %v3177 = vcvt.f32.s32 %v3175
    %v3178 = vshll.u32 %v3177, 16
    %v3179 = vadd.s32 %v3178, %v3176
    %v3180 = vsel %vm642, %v2764, 0
    %v3181 = vand.u32 %v3180, 65535
    %v3182 = vshrl.u32 %v3180, 16
    %v3183 = vcvt.s32.f32 %v3181
    %v3184 = vcvt.s32.f32 %v3182
    %3185 = vadd.xlane.f32.xlu0 %v3183
    %v3186 = vpop.xlane.xlu0 %3185
    %3187 = vadd.xlane.f32.xlu0 %v3184
    %v3188 = vpop.xlane.xlu0 %3187
    %v3189 = vcvt.f32.s32 %v3186
    %v3190 = vcvt.f32.s32 %v3188
    %v3191 = vshll.u32 %v3190, 16
    %v3192 = vadd.s32 %v3191, %v3189
    %v3193 = vsel %vm642, %v2765, 0
    %v3194 = vand.u32 %v3193, 65535
    %v3195 = vshrl.u32 %v3193, 16
    %v3196 = vcvt.s32.f32 %v3194
    %v3197 = vcvt.s32.f32 %v3195
    %3198 = vadd.xlane.f32.xlu0 %v3196
    %v3199 = vpop.xlane.xlu0 %3198
    %3200 = vadd.xlane.f32.xlu0 %v3197
    %v3201 = vpop.xlane.xlu0 %3200
    %v3202 = vcvt.f32.s32 %v3199
    %v3203 = vcvt.f32.s32 %v3201
    %v3204 = vshll.u32 %v3203, 16
    %v3205 = vadd.s32 %v3204, %v3202
    %v3206 = vsel %vm642, %v2766, 0
    %v3207 = vand.u32 %v3206, 65535
    %v3208 = vshrl.u32 %v3206, 16
    %v3209 = vcvt.s32.f32 %v3207
    %v3210 = vcvt.s32.f32 %v3208
    %3211 = vadd.xlane.f32.xlu0 %v3209
    %v3212 = vpop.xlane.xlu0 %3211
    %3213 = vadd.xlane.f32.xlu0 %v3210
    %v3214 = vpop.xlane.xlu0 %3213
    %v3215 = vcvt.f32.s32 %v3212
    %v3216 = vcvt.f32.s32 %v3214
    %v3217 = vshll.u32 %v3216, 16
    %v3218 = vadd.s32 %v3217, %v3215
    %v3219 = vsel %vm642, %v2767, 0
    %v3220 = vand.u32 %v3219, 65535
    %v3221 = vshrl.u32 %v3219, 16
    %v3222 = vcvt.s32.f32 %v3220
    %v3223 = vcvt.s32.f32 %v3221
    %3224 = vadd.xlane.f32.xlu0 %v3222
    %v3225 = vpop.xlane.xlu0 %3224
    %3226 = vadd.xlane.f32.xlu0 %v3223
    %v3227 = vpop.xlane.xlu0 %3226
    %v3228 = vcvt.f32.s32 %v3225
    %v3229 = vcvt.f32.s32 %v3227
    %v3230 = vshll.u32 %v3229, 16
    %v3231 = vadd.s32 %v3230, %v3228
    %v3232 = vsel %vm642, %v2768, 0
    %v3233 = vand.u32 %v3232, 65535
    %v3234 = vshrl.u32 %v3232, 16
    %v3235 = vcvt.s32.f32 %v3233
    %v3236 = vcvt.s32.f32 %v3234
    %3237 = vadd.xlane.f32.xlu0 %v3235
    %v3238 = vpop.xlane.xlu0 %3237
    %3239 = vadd.xlane.f32.xlu0 %v3236
    %v3240 = vpop.xlane.xlu0 %3239
    %v3241 = vcvt.f32.s32 %v3238
    %v3242 = vcvt.f32.s32 %v3240
    %v3243 = vshll.u32 %v3242, 16
    %v3244 = vadd.s32 %v3243, %v3241
    %v3245 = vsel %vm642, %v2769, 0
    %v3246 = vand.u32 %v3245, 65535
    %v3247 = vshrl.u32 %v3245, 16
    %v3248 = vcvt.s32.f32 %v3246
    %v3249 = vcvt.s32.f32 %v3247
    %3250 = vadd.xlane.f32.xlu0 %v3248
    %v3251 = vpop.xlane.xlu0 %3250
    %3252 = vadd.xlane.f32.xlu0 %v3249
    %v3253 = vpop.xlane.xlu0 %3252
    %v3254 = vcvt.f32.s32 %v3251
    %v3255 = vcvt.f32.s32 %v3253
    %v3256 = vshll.u32 %v3255, 16
    %v3257 = vadd.s32 %v3256, %v3254
    %v3258 = vsel %vm642, %v2770, 0
    %v3259 = vand.u32 %v3258, 65535
    %v3260 = vshrl.u32 %v3258, 16
    %v3261 = vcvt.s32.f32 %v3259
    %v3262 = vcvt.s32.f32 %v3260
    %3263 = vadd.xlane.f32.xlu0 %v3261
    %v3264 = vpop.xlane.xlu0 %3263
    %3265 = vadd.xlane.f32.xlu0 %v3262
    %v3266 = vpop.xlane.xlu0 %3265
    %v3267 = vcvt.f32.s32 %v3264
    %v3268 = vcvt.f32.s32 %v3266
    %v3269 = vshll.u32 %v3268, 16
    %v3270 = vadd.s32 %v3269, %v3267
    %v3271 = vsel %vm642, %v2771, 0
    %v3272 = vand.u32 %v3271, 65535
    %v3273 = vshrl.u32 %v3271, 16
    %v3274 = vcvt.s32.f32 %v3272
    %v3275 = vcvt.s32.f32 %v3273
    %3276 = vadd.xlane.f32.xlu0 %v3274
    %v3277 = vpop.xlane.xlu0 %3276
    %3278 = vadd.xlane.f32.xlu0 %v3275
    %v3279 = vpop.xlane.xlu0 %3278
    %v3280 = vcvt.f32.s32 %v3277
    %v3281 = vcvt.f32.s32 %v3279
    %v3282 = vshll.u32 %v3281, 16
    %v3283 = vadd.s32 %v3282, %v3280
    %v3284 = vsel %vm642, %v2772, 0
    %v3285 = vand.u32 %v3284, 65535
    %v3286 = vshrl.u32 %v3284, 16
    %v3287 = vcvt.s32.f32 %v3285
    %v3288 = vcvt.s32.f32 %v3286
    %3289 = vadd.xlane.f32.xlu0 %v3287
    %v3290 = vpop.xlane.xlu0 %3289
    %3291 = vadd.xlane.f32.xlu0 %v3288
    %v3292 = vpop.xlane.xlu0 %3291
    %v3293 = vcvt.f32.s32 %v3290
    %v3294 = vcvt.f32.s32 %v3292
    %v3295 = vshll.u32 %v3294, 16
    %v3296 = vadd.s32 %v3295, %v3293
    %v3297 = vsel %vm642, %v2773, 0
    %v3298 = vand.u32 %v3297, 65535
    %v3299 = vshrl.u32 %v3297, 16
    %v3300 = vcvt.s32.f32 %v3298
    %v3301 = vcvt.s32.f32 %v3299
    %3302 = vadd.xlane.f32.xlu0 %v3300
    %v3303 = vpop.xlane.xlu0 %3302
    %3304 = vadd.xlane.f32.xlu0 %v3301
    %v3305 = vpop.xlane.xlu0 %3304
    %v3306 = vcvt.f32.s32 %v3303
    %v3307 = vcvt.f32.s32 %v3305
    %v3308 = vshll.u32 %v3307, 16
    %v3309 = vadd.s32 %v3308, %v3306
    %v3310 = vsel %vm642, %v2774, 0
    %v3311 = vand.u32 %v3310, 65535
    %v3312 = vshrl.u32 %v3310, 16
    %v3313 = vcvt.s32.f32 %v3311
    %v3314 = vcvt.s32.f32 %v3312
    %3315 = vadd.xlane.f32.xlu0 %v3313
    %v3316 = vpop.xlane.xlu0 %3315
    %3317 = vadd.xlane.f32.xlu0 %v3314
    %v3318 = vpop.xlane.xlu0 %3317
    %v3319 = vcvt.f32.s32 %v3316
    %v3320 = vcvt.f32.s32 %v3318
    %v3321 = vshll.u32 %v3320, 16
    %v3322 = vadd.s32 %v3321, %v3319
    %v3323 = vsel %vm642, %v2775, 0
    %v3324 = vand.u32 %v3323, 65535
    %v3325 = vshrl.u32 %v3323, 16
    %v3326 = vcvt.s32.f32 %v3324
    %v3327 = vcvt.s32.f32 %v3325
    %3328 = vadd.xlane.f32.xlu0 %v3326
    %v3329 = vpop.xlane.xlu0 %3328
    %3330 = vadd.xlane.f32.xlu0 %v3327
    %v3331 = vpop.xlane.xlu0 %3330
    %v3332 = vcvt.f32.s32 %v3329
    %v3333 = vcvt.f32.s32 %v3331
    %v3334 = vshll.u32 %v3333, 16
    %v3335 = vadd.s32 %v3334, %v3332
    %v3336 = vsel %vm642, %v2776, 0
    %v3337 = vand.u32 %v3336, 65535
    %v3338 = vshrl.u32 %v3336, 16
    %v3339 = vcvt.s32.f32 %v3337
    %v3340 = vcvt.s32.f32 %v3338
    %3341 = vadd.xlane.f32.xlu0 %v3339
    %v3342 = vpop.xlane.xlu0 %3341
    %3343 = vadd.xlane.f32.xlu0 %v3340
    %v3344 = vpop.xlane.xlu0 %3343
    %v3345 = vcvt.f32.s32 %v3342
    %v3346 = vcvt.f32.s32 %v3344
    %v3347 = vshll.u32 %v3346, 16
    %v3348 = vadd.s32 %v3347, %v3345
    %v3349 = vsel %vm642, %v2777, 0
    %v3350 = vand.u32 %v3349, 65535
    %v3351 = vshrl.u32 %v3349, 16
    %v3352 = vcvt.s32.f32 %v3350
    %v3353 = vcvt.s32.f32 %v3351
    %3354 = vadd.xlane.f32.xlu0 %v3352
    %v3355 = vpop.xlane.xlu0 %3354
    %3356 = vadd.xlane.f32.xlu0 %v3353
    %v3357 = vpop.xlane.xlu0 %3356
    %v3358 = vcvt.f32.s32 %v3355
    %v3359 = vcvt.f32.s32 %v3357
    %v3360 = vshll.u32 %v3359, 16
    %v3361 = vadd.s32 %v3360, %v3358
    %v3362 = vsel %vm642, %v2778, 0
    %v3363 = vand.u32 %v3362, 65535
    %v3364 = vshrl.u32 %v3362, 16
    %v3365 = vcvt.s32.f32 %v3363
    %v3366 = vcvt.s32.f32 %v3364
    %3367 = vadd.xlane.f32.xlu0 %v3365
    %v3368 = vpop.xlane.xlu0 %3367
    %3369 = vadd.xlane.f32.xlu0 %v3366
    %v3370 = vpop.xlane.xlu0 %3369
    %v3371 = vcvt.f32.s32 %v3368
    %v3372 = vcvt.f32.s32 %v3370
    %v3373 = vshll.u32 %v3372, 16
    %v3374 = vadd.s32 %v3373, %v3371
    %v3375 = vsel %vm642, %v2779, 0
    %v3376 = vand.u32 %v3375, 65535
    %v3377 = vshrl.u32 %v3375, 16
    %v3378 = vcvt.s32.f32 %v3376
    %v3379 = vcvt.s32.f32 %v3377
    %3380 = vadd.xlane.f32.xlu0 %v3378
    %v3381 = vpop.xlane.xlu0 %3380
    %3382 = vadd.xlane.f32.xlu0 %v3379
    %v3383 = vpop.xlane.xlu0 %3382
    %v3384 = vcvt.f32.s32 %v3381
    %v3385 = vcvt.f32.s32 %v3383
    %v3386 = vshll.u32 %v3385, 16
    %v3387 = vadd.s32 %v3386, %v3384
    %v3388 = vsel %vm642, %v2780, 0
    %v3389 = vand.u32 %v3388, 65535
    %v3390 = vshrl.u32 %v3388, 16
    %v3391 = vcvt.s32.f32 %v3389
    %v3392 = vcvt.s32.f32 %v3390
    %3393 = vadd.xlane.f32.xlu0 %v3391
    %v3394 = vpop.xlane.xlu0 %3393
    %3395 = vadd.xlane.f32.xlu0 %v3392
    %v3396 = vpop.xlane.xlu0 %3395
    %v3397 = vcvt.f32.s32 %v3394
    %v3398 = vcvt.f32.s32 %v3396
    %v3399 = vshll.u32 %v3398, 16
    %v3400 = vadd.s32 %v3399, %v3397
    %v3401 = vsel %vm642, %v2781, 0
    %v3402 = vand.u32 %v3401, 65535
    %v3403 = vshrl.u32 %v3401, 16
    %v3404 = vcvt.s32.f32 %v3402
    %v3405 = vcvt.s32.f32 %v3403
    %3406 = vadd.xlane.f32.xlu0 %v3404
    %v3407 = vpop.xlane.xlu0 %3406
    %3408 = vadd.xlane.f32.xlu0 %v3405
    %v3409 = vpop.xlane.xlu0 %3408
    %v3410 = vcvt.f32.s32 %v3407
    %v3411 = vcvt.f32.s32 %v3409
    %v3412 = vshll.u32 %v3411, 16
    %v3413 = vadd.s32 %v3412, %v3410
    %v3414 = vsel %vm642, %v2782, 0
    %v3415 = vand.u32 %v3414, 65535
    %v3416 = vshrl.u32 %v3414, 16
    %v3417 = vcvt.s32.f32 %v3415
    %v3418 = vcvt.s32.f32 %v3416
    %3419 = vadd.xlane.f32.xlu0 %v3417
    %v3420 = vpop.xlane.xlu0 %3419
    %3421 = vadd.xlane.f32.xlu0 %v3418
    %v3422 = vpop.xlane.xlu0 %3421
    %v3423 = vcvt.f32.s32 %v3420
    %v3424 = vcvt.f32.s32 %v3422
    %v3425 = vshll.u32 %v3424, 16
    %v3426 = vadd.s32 %v3425, %v3423
    %v3427 = vsel %vm642, %v2783, 0
    %v3428 = vand.u32 %v3427, 65535
    %v3429 = vshrl.u32 %v3427, 16
    %v3430 = vcvt.s32.f32 %v3428
    %v3431 = vcvt.s32.f32 %v3429
    %3432 = vadd.xlane.f32.xlu0 %v3430
    %v3433 = vpop.xlane.xlu0 %3432
    %3434 = vadd.xlane.f32.xlu0 %v3431
    %v3435 = vpop.xlane.xlu0 %3434
    %v3436 = vcvt.f32.s32 %v3433
    %v3437 = vcvt.f32.s32 %v3435
    %v3438 = vshll.u32 %v3437, 16
    %v3439 = vadd.s32 %v3438, %v3436
    %v3440 = vsel %vm642, %v2784, 0
    %v3441 = vand.u32 %v3440, 65535
    %v3442 = vshrl.u32 %v3440, 16
    %v3443 = vcvt.s32.f32 %v3441
    %v3444 = vcvt.s32.f32 %v3442
    %3445 = vadd.xlane.f32.xlu0 %v3443
    %v3446 = vpop.xlane.xlu0 %3445
    %3447 = vadd.xlane.f32.xlu0 %v3444
    %v3448 = vpop.xlane.xlu0 %3447
    %v3449 = vcvt.f32.s32 %v3446
    %v3450 = vcvt.f32.s32 %v3448
    %v3451 = vshll.u32 %v3450, 16
    %v3452 = vadd.s32 %v3451, %v3449
    %v3453 = vsel %vm642, %v2785, 0
    %v3454 = vand.u32 %v3453, 65535
    %v3455 = vshrl.u32 %v3453, 16
    %v3456 = vcvt.s32.f32 %v3454
    %v3457 = vcvt.s32.f32 %v3455
    %3458 = vadd.xlane.f32.xlu0 %v3456
    %v3459 = vpop.xlane.xlu0 %3458
    %3460 = vadd.xlane.f32.xlu0 %v3457
    %v3461 = vpop.xlane.xlu0 %3460
    %v3462 = vcvt.f32.s32 %v3459
    %v3463 = vcvt.f32.s32 %v3461
    %v3464 = vshll.u32 %v3463, 16
    %v3465 = vadd.s32 %v3464, %v3462
    %v3466 = vsel %vm642, %v2786, 0
    %v3467 = vand.u32 %v3466, 65535
    %v3468 = vshrl.u32 %v3466, 16
    %v3469 = vcvt.s32.f32 %v3467
    %v3470 = vcvt.s32.f32 %v3468
    %3471 = vadd.xlane.f32.xlu0 %v3469
    %v3472 = vpop.xlane.xlu0 %3471
    %3473 = vadd.xlane.f32.xlu0 %v3470
    %v3474 = vpop.xlane.xlu0 %3473
    %v3475 = vcvt.f32.s32 %v3472
    %v3476 = vcvt.f32.s32 %v3474
    %v3477 = vshll.u32 %v3476, 16
    %v3478 = vadd.s32 %v3477, %v3475
    %v3479 = vsel %vm642, %v2787, 0
    %v3480 = vand.u32 %v3479, 65535
    %v3481 = vshrl.u32 %v3479, 16
    %v3482 = vcvt.s32.f32 %v3480
    %v3483 = vcvt.s32.f32 %v3481
    %3484 = vadd.xlane.f32.xlu0 %v3482
    %v3485 = vpop.xlane.xlu0 %3484
    %3486 = vadd.xlane.f32.xlu0 %v3483
    %v3487 = vpop.xlane.xlu0 %3486
    %v3488 = vcvt.f32.s32 %v3485
    %v3489 = vcvt.f32.s32 %v3487
    %v3490 = vshll.u32 %v3489, 16
    %v3491 = vadd.s32 %v3490, %v3488
    %v3492 = vsel %vm642, %v2788, 0
    %v3493 = vand.u32 %v3492, 65535
    %v3494 = vshrl.u32 %v3492, 16
    %v3495 = vcvt.s32.f32 %v3493
    %v3496 = vcvt.s32.f32 %v3494
    %3497 = vadd.xlane.f32.xlu0 %v3495
    %v3498 = vpop.xlane.xlu0 %3497
    %3499 = vadd.xlane.f32.xlu0 %v3496
    %v3500 = vpop.xlane.xlu0 %3499
    %v3501 = vcvt.f32.s32 %v3498
    %v3502 = vcvt.f32.s32 %v3500
    %v3503 = vshll.u32 %v3502, 16
    %v3504 = vadd.s32 %v3503, %v3501
    %v3505 = vsel %vm642, %v2789, 0
    %v3506 = vand.u32 %v3505, 65535
    %v3507 = vshrl.u32 %v3505, 16
    %v3508 = vcvt.s32.f32 %v3506
    %v3509 = vcvt.s32.f32 %v3507
    %3510 = vadd.xlane.f32.xlu0 %v3508
    %v3511 = vpop.xlane.xlu0 %3510
    %3512 = vadd.xlane.f32.xlu0 %v3509
    %v3513 = vpop.xlane.xlu0 %3512
    %v3514 = vcvt.f32.s32 %v3511
    %v3515 = vcvt.f32.s32 %v3513
    %v3516 = vshll.u32 %v3515, 16
    %v3517 = vadd.s32 %v3516, %v3514
    %v3518 = vsel %vm642, %v2790, 0
    %v3519 = vand.u32 %v3518, 65535
    %v3520 = vshrl.u32 %v3518, 16
    %v3521 = vcvt.s32.f32 %v3519
    %v3522 = vcvt.s32.f32 %v3520
    %3523 = vadd.xlane.f32.xlu0 %v3521
    %v3524 = vpop.xlane.xlu0 %3523
    %3525 = vadd.xlane.f32.xlu0 %v3522
    %v3526 = vpop.xlane.xlu0 %3525
    %v3527 = vcvt.f32.s32 %v3524
    %v3528 = vcvt.f32.s32 %v3526
    %v3529 = vshll.u32 %v3528, 16
    %v3530 = vadd.s32 %v3529, %v3527
    %v3531 = vsel %vm642, %v2791, 0
    %v3532 = vand.u32 %v3531, 65535
    %v3533 = vshrl.u32 %v3531, 16
    %v3534 = vcvt.s32.f32 %v3532
    %v3535 = vcvt.s32.f32 %v3533
    %3536 = vadd.xlane.f32.xlu0 %v3534
    %v3537 = vpop.xlane.xlu0 %3536
    %3538 = vadd.xlane.f32.xlu0 %v3535
    %v3539 = vpop.xlane.xlu0 %3538
    %v3540 = vcvt.f32.s32 %v3537
    %v3541 = vcvt.f32.s32 %v3539
    %v3542 = vshll.u32 %v3541, 16
    %v3543 = vadd.s32 %v3542, %v3540
    %v3544 = vsel %vm642, %v2792, 0
    %v3545 = vand.u32 %v3544, 65535
    %v3546 = vshrl.u32 %v3544, 16
    %v3547 = vcvt.s32.f32 %v3545
    %v3548 = vcvt.s32.f32 %v3546
    %3549 = vadd.xlane.f32.xlu0 %v3547
    %v3550 = vpop.xlane.xlu0 %3549
    %3551 = vadd.xlane.f32.xlu0 %v3548
    %v3552 = vpop.xlane.xlu0 %3551
    %v3553 = vcvt.f32.s32 %v3550
    %v3554 = vcvt.f32.s32 %v3552
    %v3555 = vshll.u32 %v3554, 16
    %v3556 = vadd.s32 %v3555, %v3553
    %v3557 = vsel %vm642, %v2793, 0
    %v3558 = vand.u32 %v3557, 65535
    %v3559 = vshrl.u32 %v3557, 16
    %v3560 = vcvt.s32.f32 %v3558
    %v3561 = vcvt.s32.f32 %v3559
    %3562 = vadd.xlane.f32.xlu0 %v3560
    %v3563 = vpop.xlane.xlu0 %3562
    %3564 = vadd.xlane.f32.xlu0 %v3561
    %v3565 = vpop.xlane.xlu0 %3564
    %v3566 = vcvt.f32.s32 %v3563
    %v3567 = vcvt.f32.s32 %v3565
    %v3568 = vshll.u32 %v3567, 16
    %v3569 = vadd.s32 %v3568, %v3566
    %v3570 = vsel %vm642, %v2794, 0
    %v3571 = vand.u32 %v3570, 65535
    %v3572 = vshrl.u32 %v3570, 16
    %v3573 = vcvt.s32.f32 %v3571
    %v3574 = vcvt.s32.f32 %v3572
    %3575 = vadd.xlane.f32.xlu0 %v3573
    %v3576 = vpop.xlane.xlu0 %3575
    %3577 = vadd.xlane.f32.xlu0 %v3574
    %v3578 = vpop.xlane.xlu0 %3577
    %v3579 = vcvt.f32.s32 %v3576
    %v3580 = vcvt.f32.s32 %v3578
    %v3581 = vshll.u32 %v3580, 16
    %v3582 = vadd.s32 %v3581, %v3579
    %v3583 = vsel %vm642, %v2795, 0
    %v3584 = vand.u32 %v3583, 65535
    %v3585 = vshrl.u32 %v3583, 16
    %v3586 = vcvt.s32.f32 %v3584
    %v3587 = vcvt.s32.f32 %v3585
    %3588 = vadd.xlane.f32.xlu0 %v3586
    %v3589 = vpop.xlane.xlu0 %3588
    %3590 = vadd.xlane.f32.xlu0 %v3587
    %v3591 = vpop.xlane.xlu0 %3590
    %v3592 = vcvt.f32.s32 %v3589
    %v3593 = vcvt.f32.s32 %v3591
    %v3594 = vshll.u32 %v3593, 16
    %v3595 = vadd.s32 %v3594, %v3592
    %v3596 = vsel %vm642, %v2796, 0
    %v3597 = vand.u32 %v3596, 65535
    %v3598 = vshrl.u32 %v3596, 16
    %v3599 = vcvt.s32.f32 %v3597
    %v3600 = vcvt.s32.f32 %v3598
    %3601 = vadd.xlane.f32.xlu0 %v3599
    %v3602 = vpop.xlane.xlu0 %3601
    %3603 = vadd.xlane.f32.xlu0 %v3600
    %v3604 = vpop.xlane.xlu0 %3603
    %v3605 = vcvt.f32.s32 %v3602
    %v3606 = vcvt.f32.s32 %v3604
    %v3607 = vshll.u32 %v3606, 16
    %v3608 = vadd.s32 %v3607, %v3605
    %v3609 = vsel %vm642, %v2797, 0
    %v3610 = vand.u32 %v3609, 65535
    %v3611 = vshrl.u32 %v3609, 16
    %v3612 = vcvt.s32.f32 %v3610
    %v3613 = vcvt.s32.f32 %v3611
    %3614 = vadd.xlane.f32.xlu0 %v3612
    %v3615 = vpop.xlane.xlu0 %3614
    %3616 = vadd.xlane.f32.xlu0 %v3613
    %v3617 = vpop.xlane.xlu0 %3616
    %v3618 = vcvt.f32.s32 %v3615
    %v3619 = vcvt.f32.s32 %v3617
    %v3620 = vshll.u32 %v3619, 16
    %v3621 = vadd.s32 %v3620, %v3618
    %v3622 = vsel %vm642, %v2798, 0
    %v3623 = vand.u32 %v3622, 65535
    %v3624 = vshrl.u32 %v3622, 16
    %v3625 = vcvt.s32.f32 %v3623
    %v3626 = vcvt.s32.f32 %v3624
    %3627 = vadd.xlane.f32.xlu0 %v3625
    %v3628 = vpop.xlane.xlu0 %3627
    %3629 = vadd.xlane.f32.xlu0 %v3626
    %v3630 = vpop.xlane.xlu0 %3629
    %v3631 = vcvt.f32.s32 %v3628
    %v3632 = vcvt.f32.s32 %v3630
    %v3633 = vshll.u32 %v3632, 16
    %v3634 = vadd.s32 %v3633, %v3631
    %v3635 = vsel %vm642, %v2799, 0
    %v3636 = vand.u32 %v3635, 65535
    %v3637 = vshrl.u32 %v3635, 16
    %v3638 = vcvt.s32.f32 %v3636
    %v3639 = vcvt.s32.f32 %v3637
    %3640 = vadd.xlane.f32.xlu0 %v3638
    %v3641 = vpop.xlane.xlu0 %3640
    %3642 = vadd.xlane.f32.xlu0 %v3639
    %v3643 = vpop.xlane.xlu0 %3642
    %v3644 = vcvt.f32.s32 %v3641
    %v3645 = vcvt.f32.s32 %v3643
    %v3646 = vshll.u32 %v3645, 16
    %v3647 = vadd.s32 %v3646, %v3644
    %v3648 = vsel %vm642, %v2800, 0
    %v3649 = vand.u32 %v3648, 65535
    %v3650 = vshrl.u32 %v3648, 16
    %v3651 = vcvt.s32.f32 %v3649
    %v3652 = vcvt.s32.f32 %v3650
    %3653 = vadd.xlane.f32.xlu0 %v3651
    %v3654 = vpop.xlane.xlu0 %3653
    %3655 = vadd.xlane.f32.xlu0 %v3652
    %v3656 = vpop.xlane.xlu0 %3655
    %v3657 = vcvt.f32.s32 %v3654
    %v3658 = vcvt.f32.s32 %v3656
    %v3659 = vshll.u32 %v3658, 16
    %v3660 = vadd.s32 %v3659, %v3657
    %v3661 = vsel %vm642, %v2801, 0
    %v3662 = vand.u32 %v3661, 65535
    %v3663 = vshrl.u32 %v3661, 16
    %v3664 = vcvt.s32.f32 %v3662
    %v3665 = vcvt.s32.f32 %v3663
    %3666 = vadd.xlane.f32.xlu0 %v3664
    %v3667 = vpop.xlane.xlu0 %3666
    %3668 = vadd.xlane.f32.xlu0 %v3665
    %v3669 = vpop.xlane.xlu0 %3668
    %v3670 = vcvt.f32.s32 %v3667
    %v3671 = vcvt.f32.s32 %v3669
    %v3672 = vshll.u32 %v3671, 16
    %v3673 = vadd.s32 %v3672, %v3670
    %v3674 = vsel %vm642, %v2802, 0
    %v3675 = vand.u32 %v3674, 65535
    %v3676 = vshrl.u32 %v3674, 16
    %v3677 = vcvt.s32.f32 %v3675
    %v3678 = vcvt.s32.f32 %v3676
    %3679 = vadd.xlane.f32.xlu0 %v3677
    %v3680 = vpop.xlane.xlu0 %3679
    %3681 = vadd.xlane.f32.xlu0 %v3678
    %v3682 = vpop.xlane.xlu0 %3681
    %v3683 = vcvt.f32.s32 %v3680
    %v3684 = vcvt.f32.s32 %v3682
    %v3685 = vshll.u32 %v3684, 16
    %v3686 = vadd.s32 %v3685, %v3683
    %v3687 = vsel %vm642, %v2803, 0
    %v3688 = vand.u32 %v3687, 65535
    %v3689 = vshrl.u32 %v3687, 16
    %v3690 = vcvt.s32.f32 %v3688
    %v3691 = vcvt.s32.f32 %v3689
    %3692 = vadd.xlane.f32.xlu0 %v3690
    %v3693 = vpop.xlane.xlu0 %3692
    %3694 = vadd.xlane.f32.xlu0 %v3691
    %v3695 = vpop.xlane.xlu0 %3694
    %v3696 = vcvt.f32.s32 %v3693
    %v3697 = vcvt.f32.s32 %v3695
    %v3698 = vshll.u32 %v3697, 16
    %v3699 = vadd.s32 %v3698, %v3696
    %v3700 = vsel %vm642, %v2804, 0
    %v3701 = vand.u32 %v3700, 65535
    %v3702 = vshrl.u32 %v3700, 16
    %v3703 = vcvt.s32.f32 %v3701
    %v3704 = vcvt.s32.f32 %v3702
    %3705 = vadd.xlane.f32.xlu0 %v3703
    %v3706 = vpop.xlane.xlu0 %3705
    %3707 = vadd.xlane.f32.xlu0 %v3704
    %v3708 = vpop.xlane.xlu0 %3707
    %v3709 = vcvt.f32.s32 %v3706
    %v3710 = vcvt.f32.s32 %v3708
    %v3711 = vshll.u32 %v3710, 16
    %v3712 = vadd.s32 %v3711, %v3709
    %v3713 = vsel %vm642, %v2805, 0
    %v3714 = vand.u32 %v3713, 65535
    %v3715 = vshrl.u32 %v3713, 16
    %v3716 = vcvt.s32.f32 %v3714
    %v3717 = vcvt.s32.f32 %v3715
    %3718 = vadd.xlane.f32.xlu0 %v3716
    %v3719 = vpop.xlane.xlu0 %3718
    %3720 = vadd.xlane.f32.xlu0 %v3717
    %v3721 = vpop.xlane.xlu0 %3720
    %v3722 = vcvt.f32.s32 %v3719
    %v3723 = vcvt.f32.s32 %v3721
    %v3724 = vshll.u32 %v3723, 16
    %v3725 = vadd.s32 %v3724, %v3722
    %v3726 = vsel %vm642, %v2806, 0
    %v3727 = vand.u32 %v3726, 65535
    %v3728 = vshrl.u32 %v3726, 16
    %v3729 = vcvt.s32.f32 %v3727
    %v3730 = vcvt.s32.f32 %v3728
    %3731 = vadd.xlane.f32.xlu0 %v3729
    %v3732 = vpop.xlane.xlu0 %3731
    %3733 = vadd.xlane.f32.xlu0 %v3730
    %v3734 = vpop.xlane.xlu0 %3733
    %v3735 = vcvt.f32.s32 %v3732
    %v3736 = vcvt.f32.s32 %v3734
    %v3737 = vshll.u32 %v3736, 16
    %v3738 = vadd.s32 %v3737, %v3735
    %v3739 = vsel %vm642, %v2807, 0
    %v3740 = vand.u32 %v3739, 65535
    %v3741 = vshrl.u32 %v3739, 16
    %v3742 = vcvt.s32.f32 %v3740
    %v3743 = vcvt.s32.f32 %v3741
    %3744 = vadd.xlane.f32.xlu0 %v3742
    %v3745 = vpop.xlane.xlu0 %3744
    %3746 = vadd.xlane.f32.xlu0 %v3743
    %v3747 = vpop.xlane.xlu0 %3746
    %v3748 = vcvt.f32.s32 %v3745
    %v3749 = vcvt.f32.s32 %v3747
    %v3750 = vshll.u32 %v3749, 16
    %v3751 = vadd.s32 %v3750, %v3748
    %v3752 = vsel %vm642, %v2808, 0
    %v3753 = vand.u32 %v3752, 65535
    %v3754 = vshrl.u32 %v3752, 16
    %v3755 = vcvt.s32.f32 %v3753
    %v3756 = vcvt.s32.f32 %v3754
    %3757 = vadd.xlane.f32.xlu0 %v3755
    %v3758 = vpop.xlane.xlu0 %3757
    %3759 = vadd.xlane.f32.xlu0 %v3756
    %v3760 = vpop.xlane.xlu0 %3759
    %v3761 = vcvt.f32.s32 %v3758
    %v3762 = vcvt.f32.s32 %v3760
    %v3763 = vshll.u32 %v3762, 16
    %v3764 = vadd.s32 %v3763, %v3761
    %v3765 = vsel %vm642, %v2809, 0
    %v3766 = vand.u32 %v3765, 65535
    %v3767 = vshrl.u32 %v3765, 16
    %v3768 = vcvt.s32.f32 %v3766
    %v3769 = vcvt.s32.f32 %v3767
    %3770 = vadd.xlane.f32.xlu0 %v3768
    %v3771 = vpop.xlane.xlu0 %3770
    %3772 = vadd.xlane.f32.xlu0 %v3769
    %v3773 = vpop.xlane.xlu0 %3772
    %v3774 = vcvt.f32.s32 %v3771
    %v3775 = vcvt.f32.s32 %v3773
    %v3776 = vshll.u32 %v3775, 16
    %v3777 = vadd.s32 %v3776, %v3774
    %v3778 = vsel %vm642, %v2810, 0
    %v3779 = vand.u32 %v3778, 65535
    %v3780 = vshrl.u32 %v3778, 16
    %v3781 = vcvt.s32.f32 %v3779
    %v3782 = vcvt.s32.f32 %v3780
    %3783 = vadd.xlane.f32.xlu0 %v3781
    %v3784 = vpop.xlane.xlu0 %3783
    %3785 = vadd.xlane.f32.xlu0 %v3782
    %v3786 = vpop.xlane.xlu0 %3785
    %v3787 = vcvt.f32.s32 %v3784
    %v3788 = vcvt.f32.s32 %v3786
    %v3789 = vshll.u32 %v3788, 16
    %v3790 = vadd.s32 %v3789, %v3787
    %v3791 = vsel %vm642, %v2811, 0
    %v3792 = vand.u32 %v3791, 65535
    %v3793 = vshrl.u32 %v3791, 16
    %v3794 = vcvt.s32.f32 %v3792
    %v3795 = vcvt.s32.f32 %v3793
    %3796 = vadd.xlane.f32.xlu0 %v3794
    %v3797 = vpop.xlane.xlu0 %3796
    %3798 = vadd.xlane.f32.xlu0 %v3795
    %v3799 = vpop.xlane.xlu0 %3798
    %v3800 = vcvt.f32.s32 %v3797
    %v3801 = vcvt.f32.s32 %v3799
    %v3802 = vshll.u32 %v3801, 16
    %v3803 = vadd.s32 %v3802, %v3800
    %v3804 = vsel %vm642, %v2812, 0
    %v3805 = vand.u32 %v3804, 65535
    %v3806 = vshrl.u32 %v3804, 16
    %v3807 = vcvt.s32.f32 %v3805
    %v3808 = vcvt.s32.f32 %v3806
    %3809 = vadd.xlane.f32.xlu0 %v3807
    %v3810 = vpop.xlane.xlu0 %3809
    %3811 = vadd.xlane.f32.xlu0 %v3808
    %v3812 = vpop.xlane.xlu0 %3811
    %v3813 = vcvt.f32.s32 %v3810
    %v3814 = vcvt.f32.s32 %v3812
    %v3815 = vshll.u32 %v3814, 16
    %v3816 = vadd.s32 %v3815, %v3813
    %v3817 = vsel %vm642, %v2813, 0
    %v3818 = vand.u32 %v3817, 65535
    %v3819 = vshrl.u32 %v3817, 16
    %v3820 = vcvt.s32.f32 %v3818
    %v3821 = vcvt.s32.f32 %v3819
    %3822 = vadd.xlane.f32.xlu0 %v3820
    %v3823 = vpop.xlane.xlu0 %3822
    %3824 = vadd.xlane.f32.xlu0 %v3821
    %v3825 = vpop.xlane.xlu0 %3824
    %v3826 = vcvt.f32.s32 %v3823
    %v3827 = vcvt.f32.s32 %v3825
    %v3828 = vshll.u32 %v3827, 16
    %v3829 = vadd.s32 %v3828, %v3826
    %v3830 = vsel %vm642, %v2814, 0
    %v3831 = vand.u32 %v3830, 65535
    %v3832 = vshrl.u32 %v3830, 16
    %v3833 = vcvt.s32.f32 %v3831
    %v3834 = vcvt.s32.f32 %v3832
    %3835 = vadd.xlane.f32.xlu0 %v3833
    %v3836 = vpop.xlane.xlu0 %3835
    %3837 = vadd.xlane.f32.xlu0 %v3834
    %v3838 = vpop.xlane.xlu0 %3837
    %v3839 = vcvt.f32.s32 %v3836
    %v3840 = vcvt.f32.s32 %v3838
    %v3841 = vshll.u32 %v3840, 16
    %v3842 = vadd.s32 %v3841, %v3839
    %v3843 = vsel %vm642, %v2815, 0
    %v3844 = vand.u32 %v3843, 65535
    %v3845 = vshrl.u32 %v3843, 16
    %v3846 = vcvt.s32.f32 %v3844
    %v3847 = vcvt.s32.f32 %v3845
    %3848 = vadd.xlane.f32.xlu0 %v3846
    %v3849 = vpop.xlane.xlu0 %3848
    %3850 = vadd.xlane.f32.xlu0 %v3847
    %v3851 = vpop.xlane.xlu0 %3850
    %v3852 = vcvt.f32.s32 %v3849
    %v3853 = vcvt.f32.s32 %v3851
    %v3854 = vshll.u32 %v3853, 16
    %v3855 = vadd.s32 %v3854, %v3852
    %vm3856 = vcmp.eq.s32.totalorder %v2828, %v658
    %vm3857 = vcmp.eq.s32.totalorder %v2841, %v658
    %vm3858 = vcmp.eq.s32.totalorder %v2854, %v658
    %vm3859 = vcmp.eq.s32.totalorder %v2867, %v658
    %vm3860 = vcmp.eq.s32.totalorder %v2880, %v658
    %vm3861 = vcmp.eq.s32.totalorder %v2893, %v658
    %vm3862 = vcmp.eq.s32.totalorder %v2906, %v658
    %vm3863 = vcmp.eq.s32.totalorder %v2919, %v658
    %vm3864 = vcmp.eq.s32.totalorder %v2932, %v658
    %vm3865 = vcmp.eq.s32.totalorder %v2945, %v658
    %vm3866 = vcmp.eq.s32.totalorder %v2958, %v658
    %vm3867 = vcmp.eq.s32.totalorder %v2971, %v658
    %vm3868 = vcmp.eq.s32.totalorder %v2984, %v658
    %vm3869 = vcmp.eq.s32.totalorder %v2997, %v658
    %vm3870 = vcmp.eq.s32.totalorder %v3010, %v658
    %vm3871 = vcmp.eq.s32.totalorder %v3023, %v658
    %vm3872 = vcmp.eq.s32.totalorder %v3036, %v658
    %vm3873 = vcmp.eq.s32.totalorder %v3049, %v658
    %vm3874 = vcmp.eq.s32.totalorder %v3062, %v658
    %vm3875 = vcmp.eq.s32.totalorder %v3075, %v658
    %vm3876 = vcmp.eq.s32.totalorder %v3088, %v658
    %vm3877 = vcmp.eq.s32.totalorder %v3101, %v658
    %vm3878 = vcmp.eq.s32.totalorder %v3114, %v658
    %vm3879 = vcmp.eq.s32.totalorder %v3127, %v658
    %vm3880 = vcmp.eq.s32.totalorder %v3140, %v658
    %vm3881 = vcmp.eq.s32.totalorder %v3153, %v658
    %vm3882 = vcmp.eq.s32.totalorder %v3166, %v658
    %vm3883 = vcmp.eq.s32.totalorder %v3179, %v658
    %vm3884 = vcmp.eq.s32.totalorder %v3192, %v658
    %vm3885 = vcmp.eq.s32.totalorder %v3205, %v658
    %vm3886 = vcmp.eq.s32.totalorder %v3218, %v658
    %vm3887 = vcmp.eq.s32.totalorder %v3231, %v658
    %vm3888 = vcmp.eq.s32.totalorder %v3244, %v658
    %vm3889 = vcmp.eq.s32.totalorder %v3257, %v658
    %vm3890 = vcmp.eq.s32.totalorder %v3270, %v658
    %vm3891 = vcmp.eq.s32.totalorder %v3283, %v658
    %vm3892 = vcmp.eq.s32.totalorder %v3296, %v658
    %vm3893 = vcmp.eq.s32.totalorder %v3309, %v658
    %vm3894 = vcmp.eq.s32.totalorder %v3322, %v658
    %vm3895 = vcmp.eq.s32.totalorder %v3335, %v658
    %vm3896 = vcmp.eq.s32.totalorder %v3348, %v658
    %vm3897 = vcmp.eq.s32.totalorder %v3361, %v658
    %vm3898 = vcmp.eq.s32.totalorder %v3374, %v658
    %vm3899 = vcmp.eq.s32.totalorder %v3387, %v658
    %vm3900 = vcmp.eq.s32.totalorder %v3400, %v658
    %vm3901 = vcmp.eq.s32.totalorder %v3413, %v658
    %vm3902 = vcmp.eq.s32.totalorder %v3426, %v658
    %vm3903 = vcmp.eq.s32.totalorder %v3439, %v658
    %vm3904 = vcmp.eq.s32.totalorder %v3452, %v658
    %vm3905 = vcmp.eq.s32.totalorder %v3465, %v658
    %vm3906 = vcmp.eq.s32.totalorder %v3478, %v658
    %vm3907 = vcmp.eq.s32.totalorder %v3491, %v658
    %vm3908 = vcmp.eq.s32.totalorder %v3504, %v658
    %vm3909 = vcmp.eq.s32.totalorder %v3517, %v658
    %vm3910 = vcmp.eq.s32.totalorder %v3530, %v658
    %vm3911 = vcmp.eq.s32.totalorder %v3543, %v658
    %vm3912 = vcmp.eq.s32.totalorder %v3556, %v658
    %vm3913 = vcmp.eq.s32.totalorder %v3569, %v658
    %vm3914 = vcmp.eq.s32.totalorder %v3582, %v658
    %vm3915 = vcmp.eq.s32.totalorder %v3595, %v658
    %vm3916 = vcmp.eq.s32.totalorder %v3608, %v658
    %vm3917 = vcmp.eq.s32.totalorder %v3621, %v658
    %vm3918 = vcmp.eq.s32.totalorder %v3634, %v658
    %vm3919 = vcmp.eq.s32.totalorder %v3647, %v658
    %vm3920 = vcmp.eq.s32.totalorder %v3660, %v658
    %vm3921 = vcmp.eq.s32.totalorder %v3673, %v658
    %vm3922 = vcmp.eq.s32.totalorder %v3686, %v658
    %vm3923 = vcmp.eq.s32.totalorder %v3699, %v658
    %vm3924 = vcmp.eq.s32.totalorder %v3712, %v658
    %vm3925 = vcmp.eq.s32.totalorder %v3725, %v658
    %vm3926 = vcmp.eq.s32.totalorder %v3738, %v658
    %vm3927 = vcmp.eq.s32.totalorder %v3751, %v658
    %vm3928 = vcmp.eq.s32.totalorder %v3764, %v658
    %vm3929 = vcmp.eq.s32.totalorder %v3777, %v658
    %vm3930 = vcmp.eq.s32.totalorder %v3790, %v658
    %vm3931 = vcmp.eq.s32.totalorder %v3803, %v658
    %vm3932 = vcmp.eq.s32.totalorder %v3816, %v658
    %vm3933 = vcmp.eq.s32.totalorder %v3829, %v658
    %vm3934 = vcmp.eq.s32.totalorder %v3842, %v658
    %vm3935 = vcmp.eq.s32.totalorder %v3855, %v658
    %v3936 = vsel %vm3856, %v2098, 0.0
    %v3937 = vsel %vm3857, %v2101, 0.0
    %v3938 = vsel %vm3858, %v2104, 0.0
    %v3939 = vsel %vm3859, %v2107, 0.0
    %v3940 = vsel %vm3860, %v2110, 0.0
    %v3941 = vsel %vm3861, %v2113, 0.0
    %v3942 = vsel %vm3862, %v2116, 0.0
    %v3943 = vsel %vm3863, %v2119, 0.0
    %v3944 = vsel %vm3864, %v2122, 0.0
    %v3945 = vsel %vm3865, %v2125, 0.0
    %v3946 = vsel %vm3866, %v2128, 0.0
    %v3947 = vsel %vm3867, %v2131, 0.0
    %v3948 = vsel %vm3868, %v2134, 0.0
    %v3949 = vsel %vm3869, %v2137, 0.0
    %v3950 = vsel %vm3870, %v2140, 0.0
    %v3951 = vsel %vm3871, %v2143, 0.0
    %v3952 = vsel %vm3872, %v2146, 0.0
    %v3953 = vsel %vm3873, %v2149, 0.0
    %v3954 = vsel %vm3874, %v2152, 0.0
    %v3955 = vsel %vm3875, %v2155, 0.0
    %v3956 = vsel %vm3876, %v2158, 0.0
    %v3957 = vsel %vm3877, %v2161, 0.0
    %v3958 = vsel %vm3878, %v2164, 0.0
    %v3959 = vsel %vm3879, %v2167, 0.0
    %v3960 = vsel %vm3880, %v2170, 0.0
    %v3961 = vsel %vm3881, %v2173, 0.0
    %v3962 = vsel %vm3882, %v2176, 0.0
    %v3963 = vsel %vm3883, %v2179, 0.0
    %v3964 = vsel %vm3884, %v2182, 0.0
    %v3965 = vsel %vm3885, %v2185, 0.0
    %v3966 = vsel %vm3886, %v2188, 0.0
    %v3967 = vsel %vm3887, %v2191, 0.0
    %v3968 = vsel %vm3888, %v2194, 0.0
    %v3969 = vsel %vm3889, %v2197, 0.0
    %v3970 = vsel %vm3890, %v2200, 0.0
    %v3971 = vsel %vm3891, %v2203, 0.0
    %v3972 = vsel %vm3892, %v2206, 0.0
    %v3973 = vsel %vm3893, %v2209, 0.0
    %v3974 = vsel %vm3894, %v2212, 0.0
    %v3975 = vsel %vm3895, %v2215, 0.0
    %v3976 = vsel %vm3896, %v2218, 0.0
    %v3977 = vsel %vm3897, %v2221, 0.0
    %v3978 = vsel %vm3898, %v2224, 0.0
    %v3979 = vsel %vm3899, %v2227, 0.0
    %v3980 = vsel %vm3900, %v2230, 0.0
    %v3981 = vsel %vm3901, %v2233, 0.0
    %v3982 = vsel %vm3902, %v2236, 0.0
    %v3983 = vsel %vm3903, %v2239, 0.0
    %v3984 = vsel %vm3904, %v2242, 0.0
    %v3985 = vsel %vm3905, %v2245, 0.0
    %v3986 = vsel %vm3906, %v2248, 0.0
    %v3987 = vsel %vm3907, %v2251, 0.0
    %v3988 = vsel %vm3908, %v2254, 0.0
    %v3989 = vsel %vm3909, %v2257, 0.0
    %v3990 = vsel %vm3910, %v2260, 0.0
    %v3991 = vsel %vm3911, %v2263, 0.0
    %v3992 = vsel %vm3912, %v2266, 0.0
    %v3993 = vsel %vm3913, %v2269, 0.0
    %v3994 = vsel %vm3914, %v2272, 0.0
    %v3995 = vsel %vm3915, %v2275, 0.0
    %v3996 = vsel %vm3916, %v2278, 0.0
    %v3997 = vsel %vm3917, %v2281, 0.0
    %v3998 = vsel %vm3918, %v2284, 0.0
    %v3999 = vsel %vm3919, %v2287, 0.0
    %v4000 = vsel %vm3920, %v2290, 0.0
    %v4001 = vsel %vm3921, %v2293, 0.0
    %v4002 = vsel %vm3922, %v2296, 0.0
    %v4003 = vsel %vm3923, %v2299, 0.0
    %v4004 = vsel %vm3924, %v2302, 0.0
    %v4005 = vsel %vm3925, %v2305, 0.0
    %v4006 = vsel %vm3926, %v2308, 0.0
    %v4007 = vsel %vm3927, %v2311, 0.0
    %v4008 = vsel %vm3928, %v2314, 0.0
    %v4009 = vsel %vm3929, %v2317, 0.0
    %v4010 = vsel %vm3930, %v2320, 0.0
    %v4011 = vsel %vm3931, %v2323, 0.0
    %v4012 = vsel %vm3932, %v2326, 0.0
    %v4013 = vsel %vm3933, %v2329, 0.0
    %v4014 = vsel %vm3934, %v2332, 0.0
    %v4015 = vsel %vm3935, %v2335, 0.0
    %v4016 = vld [vmem:[%s12] sm:$0xff]
    %v4017 = vld [vmem:[%s12 + $0x8] sm:$0xff]
    %v4018 = vld [vmem:[%s12 + $0x10] sm:$0xff]
    %v4019 = vld [vmem:[%s12 + $0x18] sm:$0xff]
    %v4020 = vld [vmem:[%s12 + $0x20] sm:$0xff]
    %v4021 = vld [vmem:[%s12 + $0x28] sm:$0xff]
    %v4022 = vld [vmem:[%s12 + $0x30] sm:$0xff]
    %v4023 = vld [vmem:[%s12 + $0x38] sm:$0xff]
    %v4024 = vld [vmem:[%s12 + $0x40] sm:$0xff]
    %v4025 = vld [vmem:[%s12 + $0x48] sm:$0xff]
    %v4026 = vld [vmem:[%s12 + $0x50] sm:$0xf]
    %v4027 = vld [vmem:[%s12 + $0x58] sm:$0xf]
    %v4028 = vld [vmem:[%s12 + $0x60] sm:$0xf]
    %v4029 = vld [vmem:[%s12 + $0x68] sm:$0xf]
    %v4030 = vld [vmem:[%s12 + $0x70] sm:$0xf]
    %4031 = vmatprep.subr.mxu0 0.0
    %4032 = vmatpush1.msra.mxu0 %v3951
    %4033 = vmatprep.subr.mxu0 0.0
    %4034 = vmatpush1.msra.mxu0 %v3950
    %4035 = vmatprep.subr.mxu0 0.0
    %4036 = vmatpush1.msra.mxu0 %v3949
    %4037 = vmatprep.subr.mxu0 0.0
    %4038 = vmatpush1.msra.mxu0 %v3948
    %4039 = vmatprep.subr.mxu0 0.0
    %4040 = vmatpush1.msra.mxu0 %v3947
    %4041 = vmatprep.subr.mxu0 0.0
    %4042 = vmatpush1.msra.mxu0 %v3946
    %4043 = vmatprep.subr.mxu0 0.0
    %4044 = vmatpush1.msra.mxu0 %v3945
    %4045 = vmatprep.subr.mxu0 0.0
    %4046 = vmatpush1.msra.mxu0 %v3944
    %4047 = vmatprep.subr.mxu0 0.0
    %4048 = vmatpush1.msra.mxu0 %v3943
    %4049 = vmatprep.subr.mxu0 0.0
    %4050 = vmatpush1.msra.mxu0 %v3942
    %4051 = vmatprep.subr.mxu0 0.0
    %4052 = vmatpush1.msra.mxu0 %v3941
    %4053 = vmatprep.subr.mxu0 0.0
    %4054 = vmatpush1.msra.mxu0 %v3940
    %4055 = vmatprep.subr.mxu0 0.0
    %4056 = vmatpush1.msra.mxu0 %v3939
    %4057 = vmatprep.subr.mxu0 0.0
    %4058 = vmatpush1.msra.mxu0 %v3938
    %4059 = vmatprep.subr.mxu0 0.0
    %4060 = vmatpush1.msra.mxu0 %v3937
    %4061 = vmatprep.subr.mxu0 0.0
    %4062 = vmatpush1.msra.mxu0 %v3936
    %4063 = vmatprep.subr.mxu0 0.0
    %4064 = vmatpush2.msra.mxu0 %v3967
    %4065 = vmatprep.subr.mxu0 0.0
    %4066 = vmatpush2.msra.mxu0 %v3966
    %4067 = vmatprep.subr.mxu0 0.0
    %4068 = vmatpush2.msra.mxu0 %v3965
    %4069 = vmatprep.subr.mxu0 0.0
    %4070 = vmatpush2.msra.mxu0 %v3964
    %4071 = vmatprep.subr.mxu0 0.0
    %4072 = vmatpush2.msra.mxu0 %v3963
    %4073 = vmatprep.subr.mxu0 0.0
    %4074 = vmatpush2.msra.mxu0 %v3962
    %4075 = vmatprep.subr.mxu0 0.0
    %4076 = vmatpush2.msra.mxu0 %v3961
    %4077 = vmatprep.subr.mxu0 0.0
    %4078 = vmatpush2.msra.mxu0 %v3960
    %4079 = vmatprep.subr.mxu0 0.0
    %4080 = vmatpush2.msra.mxu0 %v3959
    %4081 = vmatprep.subr.mxu0 0.0
    %4082 = vmatpush2.msra.mxu0 %v3958
    %4083 = vmatprep.subr.mxu0 0.0
    %4084 = vmatpush2.msra.mxu0 %v3957
    %4085 = vmatprep.subr.mxu0 0.0
    %4086 = vmatpush2.msra.mxu0 %v3956
    %4087 = vmatprep.subr.mxu0 0.0
    %4088 = vmatpush2.msra.mxu0 %v3955
    %4089 = vmatprep.subr.mxu0 0.0
    %4090 = vmatpush2.msra.mxu0 %v3954
    %4091 = vmatprep.subr.mxu0 0.0
    %4092 = vmatpush2.msra.mxu0 %v3953
    %4093 = vmatprep.subr.mxu0 0.0
    %4094 = vmatpush2.msra.mxu0 %v3952
    %4095 = vmatprep.mubr.f32.mxu0 %v4017
    %4096 = vmatmul.mubr.f32.gmra.mxu0 %v4016
    %v4097 = vpop.f32.mrf.mxu0
    %v4098 = vadd.f32 0.0, %v4097
    %v4099 = vpop.f32.mrf.mxu0
    %4100 = vmatprep.mubr.f32.mxu0 %v4022
    %4101 = vmatmul.mubr.f32.gmra.mxu0 %v4021
    %v4102 = vpop.f32.mrf.mxu0
    %v4103 = vadd.f32 0.0, %v4102
    %v4104 = vpop.f32.mrf.mxu0
    %4105 = vmatprep.mubr.f32.mxu0 %v4027
    %4106 = vmatmul.mubr.f32.gmra.mxu0 %v4026
    %v4107 = vpop.f32.mrf.mxu0
    %v4108 = vadd.f32 0.0, %v4107
    %v4109 = vpop.f32.mrf.mxu0
    %4110 = vdwg.mxu0
    %4111 = vmatprep.subr.mxu0 0.0
    %4112 = vmatpush1.msra.mxu0 %v3983
    %4113 = vmatprep.subr.mxu0 0.0
    %4114 = vmatpush1.msra.mxu0 %v3982
    %4115 = vmatprep.subr.mxu0 0.0
    %4116 = vmatpush1.msra.mxu0 %v3981
    %4117 = vmatprep.subr.mxu0 0.0
    %4118 = vmatpush1.msra.mxu0 %v3980
    %4119 = vmatprep.subr.mxu0 0.0
    %4120 = vmatpush1.msra.mxu0 %v3979
    %4121 = vmatprep.subr.mxu0 0.0
    %4122 = vmatpush1.msra.mxu0 %v3978
    %4123 = vmatprep.subr.mxu0 0.0
    %4124 = vmatpush1.msra.mxu0 %v3977
    %4125 = vmatprep.subr.mxu0 0.0
    %4126 = vmatpush1.msra.mxu0 %v3976
    %4127 = vmatprep.subr.mxu0 0.0
    %4128 = vmatpush1.msra.mxu0 %v3975
    %4129 = vmatprep.subr.mxu0 0.0
    %4130 = vmatpush1.msra.mxu0 %v3974
    %4131 = vmatprep.subr.mxu0 0.0
    %4132 = vmatpush1.msra.mxu0 %v3973
    %4133 = vmatprep.subr.mxu0 0.0
    %4134 = vmatpush1.msra.mxu0 %v3972
    %4135 = vmatprep.subr.mxu0 0.0
    %4136 = vmatpush1.msra.mxu0 %v3971
    %4137 = vmatprep.subr.mxu0 0.0
    %4138 = vmatpush1.msra.mxu0 %v3970
    %4139 = vmatprep.subr.mxu0 0.0
    %4140 = vmatpush1.msra.mxu0 %v3969
    %4141 = vmatprep.subr.mxu0 0.0
    %4142 = vmatpush1.msra.mxu0 %v3968
    %4143 = vmatprep.subr.mxu0 0.0
    %4144 = vmatpush2.msra.mxu0 %v3999
    %4145 = vmatprep.subr.mxu0 0.0
    %4146 = vmatpush2.msra.mxu0 %v3998
    %4147 = vmatprep.subr.mxu0 0.0
    %4148 = vmatpush2.msra.mxu0 %v3997
    %4149 = vmatprep.subr.mxu0 0.0
    %4150 = vmatpush2.msra.mxu0 %v3996
    %4151 = vmatprep.subr.mxu0 0.0
    %4152 = vmatpush2.msra.mxu0 %v3995
    %4153 = vmatprep.subr.mxu0 0.0
    %4154 = vmatpush2.msra.mxu0 %v3994
    %4155 = vmatprep.subr.mxu0 0.0
    %4156 = vmatpush2.msra.mxu0 %v3993
    %4157 = vmatprep.subr.mxu0 0.0
    %4158 = vmatpush2.msra.mxu0 %v3992
    %4159 = vmatprep.subr.mxu0 0.0
    %4160 = vmatpush2.msra.mxu0 %v3991
    %4161 = vmatprep.subr.mxu0 0.0
    %4162 = vmatpush2.msra.mxu0 %v3990
    %4163 = vmatprep.subr.mxu0 0.0
    %4164 = vmatpush2.msra.mxu0 %v3989
    %4165 = vmatprep.subr.mxu0 0.0
    %4166 = vmatpush2.msra.mxu0 %v3988
    %4167 = vmatprep.subr.mxu0 0.0
    %4168 = vmatpush2.msra.mxu0 %v3987
    %4169 = vmatprep.subr.mxu0 0.0
    %4170 = vmatpush2.msra.mxu0 %v3986
    %4171 = vmatprep.subr.mxu0 0.0
    %4172 = vmatpush2.msra.mxu0 %v3985
    %4173 = vmatprep.subr.mxu0 0.0
    %4174 = vmatpush2.msra.mxu0 %v3984
    %4175 = vmatprep.mubr.f32.mxu0 %v4019
    %4176 = vmatmul.mubr.f32.gmra.mxu0 %v4018
    %v4177 = vpop.f32.mrf.mxu0
    %v4178 = vadd.f32 %v4098, %v4177
    %v4179 = vpop.f32.mrf.mxu0
    %4180 = vmatprep.mubr.f32.mxu0 %v4024
    %4181 = vmatmul.mubr.f32.gmra.mxu0 %v4023
    %v4182 = vpop.f32.mrf.mxu0
    %v4183 = vadd.f32 %v4103, %v4182
    %v4184 = vpop.f32.mrf.mxu0
    %4185 = vmatprep.mubr.f32.mxu0 %v4029
    %4186 = vmatmul.mubr.f32.gmra.mxu0 %v4028
    %v4187 = vpop.f32.mrf.mxu0
    %v4188 = vadd.f32 %v4108, %v4187
    %v4189 = vpop.f32.mrf.mxu0
    %4190 = vdwg.mxu0
    %4191 = vmatprep.subr.mxu0 0.0
    %4192 = vmatpush1.msra.mxu0 %v4015
    %4193 = vmatprep.subr.mxu0 0.0
    %4194 = vmatpush1.msra.mxu0 %v4014
    %4195 = vmatprep.subr.mxu0 0.0
    %4196 = vmatpush1.msra.mxu0 %v4013
    %4197 = vmatprep.subr.mxu0 0.0
    %4198 = vmatpush1.msra.mxu0 %v4012
    %4199 = vmatprep.subr.mxu0 0.0
    %4200 = vmatpush1.msra.mxu0 %v4011
    %4201 = vmatprep.subr.mxu0 0.0
    %4202 = vmatpush1.msra.mxu0 %v4010
    %4203 = vmatprep.subr.mxu0 0.0
    %4204 = vmatpush1.msra.mxu0 %v4009
    %4205 = vmatprep.subr.mxu0 0.0
    %4206 = vmatpush1.msra.mxu0 %v4008
    %4207 = vmatprep.subr.mxu0 0.0
    %4208 = vmatpush1.msra.mxu0 %v4007
    %4209 = vmatprep.subr.mxu0 0.0
    %4210 = vmatpush1.msra.mxu0 %v4006
    %4211 = vmatprep.subr.mxu0 0.0
    %4212 = vmatpush1.msra.mxu0 %v4005
    %4213 = vmatprep.subr.mxu0 0.0
    %4214 = vmatpush1.msra.mxu0 %v4004
    %4215 = vmatprep.subr.mxu0 0.0
    %4216 = vmatpush1.msra.mxu0 %v4003
    %4217 = vmatprep.subr.mxu0 0.0
    %4218 = vmatpush1.msra.mxu0 %v4002
    %4219 = vmatprep.subr.mxu0 0.0
    %4220 = vmatpush1.msra.mxu0 %v4001
    %4221 = vmatprep.subr.mxu0 0.0
    %4222 = vmatpush1.msra.mxu0 %v4000
    %4223 = vmatprep.subr.mxu0 0.0
    %4224 = vmatpush2.msra.mxu0 0.0
    %4225 = vmatprep.subr.mxu0 0.0
    %4226 = vmatpush2.msra.mxu0 0.0
    %4227 = vmatprep.subr.mxu0 0.0
    %4228 = vmatpush2.msra.mxu0 0.0
    %4229 = vmatprep.subr.mxu0 0.0
    %4230 = vmatpush2.msra.mxu0 0.0
    %4231 = vmatprep.subr.mxu0 0.0
    %4232 = vmatpush2.msra.mxu0 0.0
    %4233 = vmatprep.subr.mxu0 0.0
    %4234 = vmatpush2.msra.mxu0 0.0
    %4235 = vmatprep.subr.mxu0 0.0
    %4236 = vmatpush2.msra.mxu0 0.0
    %4237 = vmatprep.subr.mxu0 0.0
    %4238 = vmatpush2.msra.mxu0 0.0
    %4239 = vmatprep.subr.mxu0 0.0
    %4240 = vmatpush2.msra.mxu0 0.0
    %4241 = vmatprep.subr.mxu0 0.0
    %4242 = vmatpush2.msra.mxu0 0.0
    %4243 = vmatprep.subr.mxu0 0.0
    %4244 = vmatpush2.msra.mxu0 0.0
    %4245 = vmatprep.subr.mxu0 0.0
    %4246 = vmatpush2.msra.mxu0 0.0
    %4247 = vmatprep.subr.mxu0 0.0
    %4248 = vmatpush2.msra.mxu0 0.0
    %4249 = vmatprep.subr.mxu0 0.0
    %4250 = vmatpush2.msra.mxu0 0.0
    %4251 = vmatprep.subr.mxu0 0.0
    %4252 = vmatpush2.msra.mxu0 0.0
    %4253 = vmatprep.subr.mxu0 0.0
    %4254 = vmatpush2.msra.mxu0 0.0
    %4255 = vmatprep.mubr.f32.mxu0 0.0
    %4256 = vmatmul.mubr.f32.gmra.mxu0 %v4020
    %v4257 = vpop.f32.mrf.mxu0
    %v4258 = vadd.f32 %v4178, %v4257
    %v4259 = vpop.f32.mrf.mxu0
    %4260 = vmatprep.mubr.f32.mxu0 0.0
    %4261 = vmatmul.mubr.f32.gmra.mxu0 %v4025
    %v4262 = vpop.f32.mrf.mxu0
    %v4263 = vadd.f32 %v4183, %v4262
    %v4264 = vpop.f32.mrf.mxu0
    %4265 = vmatprep.mubr.f32.mxu0 0.0
    %4266 = vmatmul.mubr.f32.gmra.mxu0 %v4030
    %v4267 = vpop.f32.mrf.mxu0
    %v4268 = vadd.f32 %v4188, %v4267
    %v4269 = vpop.f32.mrf.mxu0
    %4270 = vdwg.mxu0
    %v4271 = vld [vmem:[%s14] sm:$0xff]
    %v4272 = vld [vmem:[%s14 + $0x8] sm:$0xff]
    %v4273 = vld [vmem:[%s14 + $0x10] sm:$0xff]
    %v4274 = vld [vmem:[%s14 + $0x18] sm:$0xff]
    %v4275 = vld [vmem:[%s15] sm:$0x1]
    %v4277 = vlaneseq
    %v4278 = vshrl.u32 %v4277, 7
    %v4279 = vsub.s32 0, %v4278
    %v4280 = vrot.slane %v4275, %v4279
    %v4283 = vsel %vm642, %v4258, 0
    %v4286 = vsel %vm642, %v4263, 0
    %v4289 = vsel %vm642, %v4268, 0
    %4291 = vmatprep.subr.mxu0 0.0
    %4292 = vmatpush1.msra.mxu0 0.0
    %4293 = vmatprep.subr.mxu0 0.0
    %4294 = vmatpush1.msra.mxu0 0.0
    %4295 = vmatprep.subr.mxu0 0.0
    %4296 = vmatpush1.msra.mxu0 0.0
    %4297 = vmatprep.subr.mxu0 0.0
    %4298 = vmatpush1.msra.mxu0 0.0
    %4299 = vmatprep.subr.mxu0 0.0
    %4300 = vmatpush1.msra.mxu0 0.0
    %4301 = vmatprep.subr.mxu0 0.0
    %4302 = vmatpush1.msra.mxu0 0.0
    %4303 = vmatprep.subr.mxu0 0.0
    %4304 = vmatpush1.msra.mxu0 0.0
    %4305 = vmatprep.subr.mxu0 0.0
    %4306 = vmatpush1.msra.mxu0 0.0
    %4307 = vmatprep.subr.mxu0 0.0
    %4308 = vmatpush1.msra.mxu0 0.0
    %4309 = vmatprep.subr.mxu0 0.0
    %4310 = vmatpush1.msra.mxu0 0.0
    %4311 = vmatprep.subr.mxu0 0.0
    %4312 = vmatpush1.msra.mxu0 0.0
    %4313 = vmatprep.subr.mxu0 0.0
    %4314 = vmatpush1.msra.mxu0 0.0
    %4315 = vmatprep.subr.mxu0 0.0
    %4316 = vmatpush1.msra.mxu0 %v4274
    %4317 = vmatprep.subr.mxu0 0.0
    %4318 = vmatpush1.msra.mxu0 %v4273
    %4319 = vmatprep.subr.mxu0 0.0
    %4320 = vmatpush1.msra.mxu0 %v4272
    %4321 = vmatprep.subr.mxu0 0.0
    %4322 = vmatpush1.msra.mxu0 %v4271
    %4323 = vmatprep.subr.mxu0 0.0
    %4324 = vmatpush2.msra.mxu0 0.0
    %4325 = vmatprep.subr.mxu0 0.0
    %4326 = vmatpush2.msra.mxu0 0.0
    %4327 = vmatprep.subr.mxu0 0.0
    %4328 = vmatpush2.msra.mxu0 0.0
    %4329 = vmatprep.subr.mxu0 0.0
    %4330 = vmatpush2.msra.mxu0 0.0
    %4331 = vmatprep.subr.mxu0 0.0
    %4332 = vmatpush2.msra.mxu0 0.0
    %4333 = vmatprep.subr.mxu0 0.0
    %4334 = vmatpush2.msra.mxu0 0.0
    %4335 = vmatprep.subr.mxu0 0.0
    %4336 = vmatpush2.msra.mxu0 0.0
    %4337 = vmatprep.subr.mxu0 0.0
    %4338 = vmatpush2.msra.mxu0 0.0
    %4339 = vmatprep.subr.mxu0 0.0
    %4340 = vmatpush2.msra.mxu0 0.0
    %4341 = vmatprep.subr.mxu0 0.0
    %4342 = vmatpush2.msra.mxu0 0.0
    %4343 = vmatprep.subr.mxu0 0.0
    %4344 = vmatpush2.msra.mxu0 0.0
    %4345 = vmatprep.subr.mxu0 0.0
    %4346 = vmatpush2.msra.mxu0 0.0
    %4347 = vmatprep.subr.mxu0 0.0
    %4348 = vmatpush2.msra.mxu0 0.0
    %4349 = vmatprep.subr.mxu0 0.0
    %4350 = vmatpush2.msra.mxu0 0.0
    %4351 = vmatprep.subr.mxu0 0.0
    %4352 = vmatpush2.msra.mxu0 0.0
    %4353 = vmatprep.subr.mxu0 0.0
    %4354 = vmatpush2.msra.mxu0 0.0
    %4355 = vmatprep.mubr.f32.mxu0 0.0
    %4356 = vmatmul.mubr.f32.gmra.mxu0 %v4283
    %v4357 = vpop.f32.mrf.mxu0
    %v4358 = vadd.f32 %v4280, %v4357
    %v4359 = vpop.f32.mrf.mxu0
    %4360 = vmatprep.mubr.f32.mxu0 0.0
    %4361 = vmatmul.mubr.f32.gmra.mxu0 %v4286
    %v4362 = vpop.f32.mrf.mxu0
    %v4363 = vadd.f32 %v4280, %v4362
    %v4364 = vpop.f32.mrf.mxu0
    %4365 = vmatprep.mubr.f32.mxu0 0.0
    %4366 = vmatmul.mubr.f32.gmra.mxu0 %v4289
    %v4367 = vpop.f32.mrf.mxu0
    %v4368 = vadd.f32 %v4280, %v4367
    %v4369 = vpop.f32.mrf.mxu0
    %4370 = vdwg.mxu0
    %v4371 = vmax.f32 %v4358, 0.0
    %v4372 = vmax.f32 %v4363, 0.0
    %v4373 = vmax.f32 %v4368, 0.0
    %v4374 = vld [vmem:[%s16] sm:$0x3]
    %v4376 = vsel %vm180, %v4374, 0
    %v4379 = vsel %vm89, %v4373, 0
    %4381 = vmatprep.subr.mxu0 0.0
    %4382 = vmatpush1.msra.mxu0 0.0
    %4383 = vmatprep.subr.mxu0 0.0
    %4384 = vmatpush1.msra.mxu0 0.0
    %4385 = vmatprep.subr.mxu0 0.0
    %4386 = vmatpush1.msra.mxu0 0.0
    %4387 = vmatprep.subr.mxu0 0.0
    %4388 = vmatpush1.msra.mxu0 0.0
    %4389 = vmatprep.subr.mxu0 0.0
    %4390 = vmatpush1.msra.mxu0 0.0
    %4391 = vmatprep.subr.mxu0 0.0
    %4392 = vmatpush1.msra.mxu0 0.0
    %4393 = vmatprep.subr.mxu0 0.0
    %4394 = vmatpush1.msra.mxu0 0.0
    %4395 = vmatprep.subr.mxu0 0.0
    %4396 = vmatpush1.msra.mxu0 0.0
    %4397 = vmatprep.subr.mxu0 0.0
    %4398 = vmatpush1.msra.mxu0 0.0
    %4399 = vmatprep.subr.mxu0 0.0
    %4400 = vmatpush1.msra.mxu0 0.0
    %4401 = vmatprep.subr.mxu0 0.0
    %4402 = vmatpush1.msra.mxu0 0.0
    %4403 = vmatprep.subr.mxu0 0.0
    %4404 = vmatpush1.msra.mxu0 0.0
    %4405 = vmatprep.subr.mxu0 0.0
    %4406 = vmatpush1.msra.mxu0 0.0
    %4407 = vmatprep.subr.mxu0 0.0
    %4408 = vmatpush1.msra.mxu0 %v4379
    %4409 = vmatprep.subr.mxu0 0.0
    %4410 = vmatpush1.msra.mxu0 %v4372
    %4411 = vmatprep.subr.mxu0 0.0
    %4412 = vmatpush1.msra.mxu0 %v4371
    %4413 = vmatprep.subr.mxu0 0.0
    %4414 = vmatpush2.msra.mxu0 0.0
    %4415 = vmatprep.subr.mxu0 0.0
    %4416 = vmatpush2.msra.mxu0 0.0
    %4417 = vmatprep.subr.mxu0 0.0
    %4418 = vmatpush2.msra.mxu0 0.0
    %4419 = vmatprep.subr.mxu0 0.0
    %4420 = vmatpush2.msra.mxu0 0.0
    %4421 = vmatprep.subr.mxu0 0.0
    %4422 = vmatpush2.msra.mxu0 0.0
    %4423 = vmatprep.subr.mxu0 0.0
    %4424 = vmatpush2.msra.mxu0 0.0
    %4425 = vmatprep.subr.mxu0 0.0
    %4426 = vmatpush2.msra.mxu0 0.0
    %4427 = vmatprep.subr.mxu0 0.0
    %4428 = vmatpush2.msra.mxu0 0.0
    %4429 = vmatprep.subr.mxu0 0.0
    %4430 = vmatpush2.msra.mxu0 0.0
    %4431 = vmatprep.subr.mxu0 0.0
    %4432 = vmatpush2.msra.mxu0 0.0
    %4433 = vmatprep.subr.mxu0 0.0
    %4434 = vmatpush2.msra.mxu0 0.0
    %4435 = vmatprep.subr.mxu0 0.0
    %4436 = vmatpush2.msra.mxu0 0.0
    %4437 = vmatprep.subr.mxu0 0.0
    %4438 = vmatpush2.msra.mxu0 0.0
    %4439 = vmatprep.subr.mxu0 0.0
    %4440 = vmatpush2.msra.mxu0 0.0
    %4441 = vmatprep.subr.mxu0 0.0
    %4442 = vmatpush2.msra.mxu0 0.0
    %4443 = vmatprep.subr.mxu0 0.0
    %4444 = vmatpush2.msra.mxu0 0.0
    %4445 = vmatprep.mubr.f32.mxu0 0.0
    %4446 = vmatmul.mubr.f32.gmra.mxu0 %v4376
    %v4447 = vpop.f32.mrf.mxu0
    %v4448 = vadd.f32 0.0, %v4447
    %v4449 = vpop.f32.mrf.mxu0
    %4450 = vdwg.mxu0
    %v4451 = vld [vmem:[%s17] sm:$0x3]
    %v4453 = vsel %vm180, %v4451, 0
    %4455 = vmatprep.subr.mxu0 0.0
    %4456 = vmatpush1.msra.mxu0 0.0
    %4457 = vmatprep.subr.mxu0 0.0
    %4458 = vmatpush1.msra.mxu0 0.0
    %4459 = vmatprep.subr.mxu0 0.0
    %4460 = vmatpush1.msra.mxu0 0.0
    %4461 = vmatprep.subr.mxu0 0.0
    %4462 = vmatpush1.msra.mxu0 0.0
    %4463 = vmatprep.subr.mxu0 0.0
    %4464 = vmatpush1.msra.mxu0 0.0
    %4465 = vmatprep.subr.mxu0 0.0
    %4466 = vmatpush1.msra.mxu0 0.0
    %4467 = vmatprep.subr.mxu0 0.0
    %4468 = vmatpush1.msra.mxu0 0.0
    %4469 = vmatprep.subr.mxu0 0.0
    %4470 = vmatpush1.msra.mxu0 0.0
    %4471 = vmatprep.subr.mxu0 0.0
    %4472 = vmatpush1.msra.mxu0 0.0
    %4473 = vmatprep.subr.mxu0 0.0
    %4474 = vmatpush1.msra.mxu0 0.0
    %4475 = vmatprep.subr.mxu0 0.0
    %4476 = vmatpush1.msra.mxu0 0.0
    %4477 = vmatprep.subr.mxu0 0.0
    %4478 = vmatpush1.msra.mxu0 0.0
    %4479 = vmatprep.subr.mxu0 0.0
    %4480 = vmatpush1.msra.mxu0 0.0
    %4481 = vmatprep.subr.mxu0 0.0
    %4482 = vmatpush1.msra.mxu0 %v4379
    %4483 = vmatprep.subr.mxu0 0.0
    %4484 = vmatpush1.msra.mxu0 %v4372
    %4485 = vmatprep.subr.mxu0 0.0
    %4486 = vmatpush1.msra.mxu0 %v4371
    %4487 = vmatprep.subr.mxu0 0.0
    %4488 = vmatpush2.msra.mxu0 0.0
    %4489 = vmatprep.subr.mxu0 0.0
    %4490 = vmatpush2.msra.mxu0 0.0
    %4491 = vmatprep.subr.mxu0 0.0
    %4492 = vmatpush2.msra.mxu0 0.0
    %4493 = vmatprep.subr.mxu0 0.0
    %4494 = vmatpush2.msra.mxu0 0.0
    %4495 = vmatprep.subr.mxu0 0.0
    %4496 = vmatpush2.msra.mxu0 0.0
    %4497 = vmatprep.subr.mxu0 0.0
    %4498 = vmatpush2.msra.mxu0 0.0
    %4499 = vmatprep.subr.mxu0 0.0
    %4500 = vmatpush2.msra.mxu0 0.0
    %4501 = vmatprep.subr.mxu0 0.0
    %4502 = vmatpush2.msra.mxu0 0.0
    %4503 = vmatprep.subr.mxu0 0.0
    %4504 = vmatpush2.msra.mxu0 0.0
    %4505 = vmatprep.subr.mxu0 0.0
    %4506 = vmatpush2.msra.mxu0 0.0
    %4507 = vmatprep.subr.mxu0 0.0
    %4508 = vmatpush2.msra.mxu0 0.0
    %4509 = vmatprep.subr.mxu0 0.0
    %4510 = vmatpush2.msra.mxu0 0.0
    %4511 = vmatprep.subr.mxu0 0.0
    %4512 = vmatpush2.msra.mxu0 0.0
    %4513 = vmatprep.subr.mxu0 0.0
    %4514 = vmatpush2.msra.mxu0 0.0
    %4515 = vmatprep.subr.mxu0 0.0
    %4516 = vmatpush2.msra.mxu0 0.0
    %4517 = vmatprep.subr.mxu0 0.0
    %4518 = vmatpush2.msra.mxu0 0.0
    %4519 = vmatprep.mubr.f32.mxu0 0.0
    %4520 = vmatmul.mubr.f32.gmra.mxu0 %v4453
    %v4521 = vpop.f32.mrf.mxu0
    %v4522 = vadd.f32 0.0, %v4521
    %v4523 = vpop.f32.mrf.mxu0
    %4524 = vdwg.mxu0
    %v4525 = vmax.f32 %v4448, %v4522
    %v4526 = vld [vmem:[%s18] sm:$0xff]
    %v4527 = vld [vmem:[%s18 + $0x8] sm:$0xff]
    %s4528 = scalar_lea.vmem %s16, 2
    %v4529 = vld [vmem:[%s4528] sm:$0x3]
    %v4531 = vsel %vm180, %v4529, 0
    %4533 = vmatprep.subr.mxu0 0.0
    %4534 = vmatpush1.msra.mxu0 0.0
    %4535 = vmatprep.subr.mxu0 0.0
    %4536 = vmatpush1.msra.mxu0 0.0
    %4537 = vmatprep.subr.mxu0 0.0
    %4538 = vmatpush1.msra.mxu0 0.0
    %4539 = vmatprep.subr.mxu0 0.0
    %4540 = vmatpush1.msra.mxu0 0.0
    %4541 = vmatprep.subr.mxu0 0.0
    %4542 = vmatpush1.msra.mxu0 0.0
    %4543 = vmatprep.subr.mxu0 0.0
    %4544 = vmatpush1.msra.mxu0 0.0
    %4545 = vmatprep.subr.mxu0 0.0
    %4546 = vmatpush1.msra.mxu0 0.0
    %4547 = vmatprep.subr.mxu0 0.0
    %4548 = vmatpush1.msra.mxu0 0.0
    %4549 = vmatprep.subr.mxu0 0.0
    %4550 = vmatpush1.msra.mxu0 0.0
    %4551 = vmatprep.subr.mxu0 0.0
    %4552 = vmatpush1.msra.mxu0 0.0
    %4553 = vmatprep.subr.mxu0 0.0
    %4554 = vmatpush1.msra.mxu0 0.0
    %4555 = vmatprep.subr.mxu0 0.0
    %4556 = vmatpush1.msra.mxu0 0.0
    %4557 = vmatprep.subr.mxu0 0.0
    %4558 = vmatpush1.msra.mxu0 0.0
    %4559 = vmatprep.subr.mxu0 0.0
    %4560 = vmatpush1.msra.mxu0 %v4379
    %4561 = vmatprep.subr.mxu0 0.0
    %4562 = vmatpush1.msra.mxu0 %v4372
    %4563 = vmatprep.subr.mxu0 0.0
    %4564 = vmatpush1.msra.mxu0 %v4371
    %4565 = vmatprep.subr.mxu0 0.0
    %4566 = vmatpush2.msra.mxu0 0.0
    %4567 = vmatprep.subr.mxu0 0.0
    %4568 = vmatpush2.msra.mxu0 0.0
    %4569 = vmatprep.subr.mxu0 0.0
    %4570 = vmatpush2.msra.mxu0 0.0
    %4571 = vmatprep.subr.mxu0 0.0
    %4572 = vmatpush2.msra.mxu0 0.0
    %4573 = vmatprep.subr.mxu0 0.0
    %4574 = vmatpush2.msra.mxu0 0.0
    %4575 = vmatprep.subr.mxu0 0.0
    %4576 = vmatpush2.msra.mxu0 0.0
    %4577 = vmatprep.subr.mxu0 0.0
    %4578 = vmatpush2.msra.mxu0 0.0
    %4579 = vmatprep.subr.mxu0 0.0
    %4580 = vmatpush2.msra.mxu0 0.0
    %4581 = vmatprep.subr.mxu0 0.0
    %4582 = vmatpush2.msra.mxu0 0.0
    %4583 = vmatprep.subr.mxu0 0.0
    %4584 = vmatpush2.msra.mxu0 0.0
    %4585 = vmatprep.subr.mxu0 0.0
    %4586 = vmatpush2.msra.mxu0 0.0
    %4587 = vmatprep.subr.mxu0 0.0
    %4588 = vmatpush2.msra.mxu0 0.0
    %4589 = vmatprep.subr.mxu0 0.0
    %4590 = vmatpush2.msra.mxu0 0.0
    %4591 = vmatprep.subr.mxu0 0.0
    %4592 = vmatpush2.msra.mxu0 0.0
    %4593 = vmatprep.subr.mxu0 0.0
    %4594 = vmatpush2.msra.mxu0 0.0
    %4595 = vmatprep.subr.mxu0 0.0
    %4596 = vmatpush2.msra.mxu0 0.0
    %4597 = vmatprep.mubr.f32.mxu0 0.0
    %4598 = vmatmul.mubr.f32.gmra.mxu0 %v4531
    %v4599 = vpop.f32.mrf.mxu0
    %v4600 = vadd.f32 0.0, %v4599
    %v4601 = vpop.f32.mrf.mxu0
    %4602 = vdwg.mxu0
    %s4603 = scalar_lea.vmem %s17, 2
    %v4604 = vld [vmem:[%s4603] sm:$0x3]
    %v4606 = vsel %vm180, %v4604, 0
    %4608 = vmatprep.subr.mxu0 0.0
    %4609 = vmatpush1.msra.mxu0 0.0
    %4610 = vmatprep.subr.mxu0 0.0
    %4611 = vmatpush1.msra.mxu0 0.0
    %4612 = vmatprep.subr.mxu0 0.0
    %4613 = vmatpush1.msra.mxu0 0.0
    %4614 = vmatprep.subr.mxu0 0.0
    %4615 = vmatpush1.msra.mxu0 0.0
    %4616 = vmatprep.subr.mxu0 0.0
    %4617 = vmatpush1.msra.mxu0 0.0
    %4618 = vmatprep.subr.mxu0 0.0
    %4619 = vmatpush1.msra.mxu0 0.0
    %4620 = vmatprep.subr.mxu0 0.0
    %4621 = vmatpush1.msra.mxu0 0.0
    %4622 = vmatprep.subr.mxu0 0.0
    %4623 = vmatpush1.msra.mxu0 0.0
    %4624 = vmatprep.subr.mxu0 0.0
    %4625 = vmatpush1.msra.mxu0 0.0
    %4626 = vmatprep.subr.mxu0 0.0
    %4627 = vmatpush1.msra.mxu0 0.0
    %4628 = vmatprep.subr.mxu0 0.0
    %4629 = vmatpush1.msra.mxu0 0.0
    %4630 = vmatprep.subr.mxu0 0.0
    %4631 = vmatpush1.msra.mxu0 0.0
    %4632 = vmatprep.subr.mxu0 0.0
    %4633 = vmatpush1.msra.mxu0 0.0
    %4634 = vmatprep.subr.mxu0 0.0
    %4635 = vmatpush1.msra.mxu0 %v4379
    %4636 = vmatprep.subr.mxu0 0.0
    %4637 = vmatpush1.msra.mxu0 %v4372
    %4638 = vmatprep.subr.mxu0 0.0
    %4639 = vmatpush1.msra.mxu0 %v4371
    %4640 = vmatprep.subr.mxu0 0.0
    %4641 = vmatpush2.msra.mxu0 0.0
    %4642 = vmatprep.subr.mxu0 0.0
    %4643 = vmatpush2.msra.mxu0 0.0
    %4644 = vmatprep.subr.mxu0 0.0
    %4645 = vmatpush2.msra.mxu0 0.0
    %4646 = vmatprep.subr.mxu0 0.0
    %4647 = vmatpush2.msra.mxu0 0.0
    %4648 = vmatprep.subr.mxu0 0.0
    %4649 = vmatpush2.msra.mxu0 0.0
    %4650 = vmatprep.subr.mxu0 0.0
    %4651 = vmatpush2.msra.mxu0 0.0
    %4652 = vmatprep.subr.mxu0 0.0
    %4653 = vmatpush2.msra.mxu0 0.0
    %4654 = vmatprep.subr.mxu0 0.0
    %4655 = vmatpush2.msra.mxu0 0.0
    %4656 = vmatprep.subr.mxu0 0.0
    %4657 = vmatpush2.msra.mxu0 0.0
    %4658 = vmatprep.subr.mxu0 0.0
    %4659 = vmatpush2.msra.mxu0 0.0
    %4660 = vmatprep.subr.mxu0 0.0
    %4661 = vmatpush2.msra.mxu0 0.0
    %4662 = vmatprep.subr.mxu0 0.0
    %4663 = vmatpush2.msra.mxu0 0.0
    %4664 = vmatprep.subr.mxu0 0.0
    %4665 = vmatpush2.msra.mxu0 0.0
    %4666 = vmatprep.subr.mxu0 0.0
    %4667 = vmatpush2.msra.mxu0 0.0
    %4668 = vmatprep.subr.mxu0 0.0
    %4669 = vmatpush2.msra.mxu0 0.0
    %4670 = vmatprep.subr.mxu0 0.0
    %4671 = vmatpush2.msra.mxu0 0.0
    %4672 = vmatprep.mubr.f32.mxu0 0.0
    %4673 = vmatmul.mubr.f32.gmra.mxu0 %v4606
    %v4674 = vpop.f32.mrf.mxu0
    %v4675 = vadd.f32 0.0, %v4674
    %v4676 = vpop.f32.mrf.mxu0
    %4677 = vdwg.mxu0
    %v4678 = vmax.f32 %v4600, %v4675
    %s4679 = scalar_lea.vmem %s18, 16
    %v4680 = vld [vmem:[%s4679] sm:$0xff]
    %v4681 = vld [vmem:[%s4679 + $0x8] sm:$0xff]
    %v4683 = vsel %vm278, %v4678, 0
    %4685 = vmatprep.subr.mxu0 0.0
    %4686 = vmatpush1.msra.mxu0 0.0
    %4687 = vmatprep.subr.mxu0 0.0
    %4688 = vmatpush1.msra.mxu0 0.0
    %4689 = vmatprep.subr.mxu0 0.0
    %4690 = vmatpush1.msra.mxu0 0.0
    %4691 = vmatprep.subr.mxu0 0.0
    %4692 = vmatpush1.msra.mxu0 0.0
    %4693 = vmatprep.subr.mxu0 0.0
    %4694 = vmatpush1.msra.mxu0 0.0
    %4695 = vmatprep.subr.mxu0 0.0
    %4696 = vmatpush1.msra.mxu0 0.0
    %4697 = vmatprep.subr.mxu0 0.0
    %4698 = vmatpush1.msra.mxu0 0.0
    %4699 = vmatprep.subr.mxu0 0.0
    %4700 = vmatpush1.msra.mxu0 0.0
    %4701 = vmatprep.subr.mxu0 0.0
    %4702 = vmatpush1.msra.mxu0 0.0
    %4703 = vmatprep.subr.mxu0 0.0
    %4704 = vmatpush1.msra.mxu0 0.0
    %4705 = vmatprep.subr.mxu0 0.0
    %4706 = vmatpush1.msra.mxu0 0.0
    %4707 = vmatprep.subr.mxu0 0.0
    %4708 = vmatpush1.msra.mxu0 0.0
    %4709 = vmatprep.subr.mxu0 0.0
    %4710 = vmatpush1.msra.mxu0 0.0
    %4711 = vmatprep.subr.mxu0 0.0
    %4712 = vmatpush1.msra.mxu0 0.0
    %4713 = vmatprep.subr.mxu0 0.0
    %4714 = vmatpush1.msra.mxu0 %v4681
    %4715 = vmatprep.subr.mxu0 0.0
    %4716 = vmatpush1.msra.mxu0 %v4680
    %4717 = vmatprep.subr.mxu0 0.0
    %4718 = vmatpush2.msra.mxu0 0.0
    %4719 = vmatprep.subr.mxu0 0.0
    %4720 = vmatpush2.msra.mxu0 0.0
    %4721 = vmatprep.subr.mxu0 0.0
    %4722 = vmatpush2.msra.mxu0 0.0
    %4723 = vmatprep.subr.mxu0 0.0
    %4724 = vmatpush2.msra.mxu0 0.0
    %4725 = vmatprep.subr.mxu0 0.0
    %4726 = vmatpush2.msra.mxu0 0.0
    %4727 = vmatprep.subr.mxu0 0.0
    %4728 = vmatpush2.msra.mxu0 0.0
    %4729 = vmatprep.subr.mxu0 0.0
    %4730 = vmatpush2.msra.mxu0 0.0
    %4731 = vmatprep.subr.mxu0 0.0
    %4732 = vmatpush2.msra.mxu0 0.0
    %4733 = vmatprep.subr.mxu0 0.0
    %4734 = vmatpush2.msra.mxu0 0.0
    %4735 = vmatprep.subr.mxu0 0.0
    %4736 = vmatpush2.msra.mxu0 0.0
    %4737 = vmatprep.subr.mxu0 0.0
    %4738 = vmatpush2.msra.mxu0 0.0
    %4739 = vmatprep.subr.mxu0 0.0
    %4740 = vmatpush2.msra.mxu0 0.0
    %4741 = vmatprep.subr.mxu0 0.0
    %4742 = vmatpush2.msra.mxu0 0.0
    %4743 = vmatprep.subr.mxu0 0.0
    %4744 = vmatpush2.msra.mxu0 0.0
    %4745 = vmatprep.subr.mxu0 0.0
    %4746 = vmatpush2.msra.mxu0 0.0
    %4747 = vmatprep.subr.mxu0 0.0
    %4748 = vmatpush2.msra.mxu0 0.0
    %4749 = vmatprep.mubr.f32.mxu0 0.0
    %4750 = vmatmul.mubr.f32.gmra.mxu0 %v4683
    %v4751 = vpop.f32.mrf.mxu0
    %v4752 = vadd.f32 0.0, %v4751
    %v4753 = vpop.f32.mrf.mxu0
    %4754 = vdwg.mxu0
    %v4756 = vsel %vm278, %v4525, 0
    %4758 = vmatprep.subr.mxu0 0.0
    %4759 = vmatpush1.msra.mxu0 0.0
    %4760 = vmatprep.subr.mxu0 0.0
    %4761 = vmatpush1.msra.mxu0 0.0
    %4762 = vmatprep.subr.mxu0 0.0
    %4763 = vmatpush1.msra.mxu0 0.0
    %4764 = vmatprep.subr.mxu0 0.0
    %4765 = vmatpush1.msra.mxu0 0.0
    %4766 = vmatprep.subr.mxu0 0.0
    %4767 = vmatpush1.msra.mxu0 0.0
    %4768 = vmatprep.subr.mxu0 0.0
    %4769 = vmatpush1.msra.mxu0 0.0
    %4770 = vmatprep.subr.mxu0 0.0
    %4771 = vmatpush1.msra.mxu0 0.0
    %4772 = vmatprep.subr.mxu0 0.0
    %4773 = vmatpush1.msra.mxu0 0.0
    %4774 = vmatprep.subr.mxu0 0.0
    %4775 = vmatpush1.msra.mxu0 0.0
    %4776 = vmatprep.subr.mxu0 0.0
    %4777 = vmatpush1.msra.mxu0 0.0
    %4778 = vmatprep.subr.mxu0 0.0
    %4779 = vmatpush1.msra.mxu0 0.0
    %4780 = vmatprep.subr.mxu0 0.0
    %4781 = vmatpush1.msra.mxu0 0.0
    %4782 = vmatprep.subr.mxu0 0.0
    %4783 = vmatpush1.msra.mxu0 0.0
    %4784 = vmatprep.subr.mxu0 0.0
    %4785 = vmatpush1.msra.mxu0 0.0
    %4786 = vmatprep.subr.mxu0 0.0
    %4787 = vmatpush1.msra.mxu0 %v4527
    %4788 = vmatprep.subr.mxu0 0.0
    %4789 = vmatpush1.msra.mxu0 %v4526
    %4790 = vmatprep.subr.mxu0 0.0
    %4791 = vmatpush2.msra.mxu0 0.0
    %4792 = vmatprep.subr.mxu0 0.0
    %4793 = vmatpush2.msra.mxu0 0.0
    %4794 = vmatprep.subr.mxu0 0.0
    %4795 = vmatpush2.msra.mxu0 0.0
    %4796 = vmatprep.subr.mxu0 0.0
    %4797 = vmatpush2.msra.mxu0 0.0
    %4798 = vmatprep.subr.mxu0 0.0
    %4799 = vmatpush2.msra.mxu0 0.0
    %4800 = vmatprep.subr.mxu0 0.0
    %4801 = vmatpush2.msra.mxu0 0.0
    %4802 = vmatprep.subr.mxu0 0.0
    %4803 = vmatpush2.msra.mxu0 0.0
    %4804 = vmatprep.subr.mxu0 0.0
    %4805 = vmatpush2.msra.mxu0 0.0
    %4806 = vmatprep.subr.mxu0 0.0
    %4807 = vmatpush2.msra.mxu0 0.0
    %4808 = vmatprep.subr.mxu0 0.0
    %4809 = vmatpush2.msra.mxu0 0.0
    %4810 = vmatprep.subr.mxu0 0.0
    %4811 = vmatpush2.msra.mxu0 0.0
    %4812 = vmatprep.subr.mxu0 0.0
    %4813 = vmatpush2.msra.mxu0 0.0
    %4814 = vmatprep.subr.mxu0 0.0
    %4815 = vmatpush2.msra.mxu0 0.0
    %4816 = vmatprep.subr.mxu0 0.0
    %4817 = vmatpush2.msra.mxu0 0.0
    %4818 = vmatprep.subr.mxu0 0.0
    %4819 = vmatpush2.msra.mxu0 0.0
    %4820 = vmatprep.subr.mxu0 0.0
    %4821 = vmatpush2.msra.mxu0 0.0
    %4822 = vmatprep.mubr.f32.mxu0 0.0
    %4823 = vmatmul.mubr.f32.gmra.mxu0 %v4756
    %v4824 = vpop.f32.mrf.mxu0
    %v4825 = vadd.f32 %v4752, %v4824
    %v4826 = vpop.f32.mrf.mxu0
    %4827 = vdwg.mxu0
    %s4828 = scalar_lea.vmem %s16, 4
    %v4829 = vld [vmem:[%s4828] sm:$0x3]
    %v4831 = vsel %vm180, %v4829, 0
    %4833 = vmatprep.subr.mxu0 0.0
    %4834 = vmatpush1.msra.mxu0 0.0
    %4835 = vmatprep.subr.mxu0 0.0
    %4836 = vmatpush1.msra.mxu0 0.0
    %4837 = vmatprep.subr.mxu0 0.0
    %4838 = vmatpush1.msra.mxu0 0.0
    %4839 = vmatprep.subr.mxu0 0.0
    %4840 = vmatpush1.msra.mxu0 0.0
    %4841 = vmatprep.subr.mxu0 0.0
    %4842 = vmatpush1.msra.mxu0 0.0
    %4843 = vmatprep.subr.mxu0 0.0
    %4844 = vmatpush1.msra.mxu0 0.0
    %4845 = vmatprep.subr.mxu0 0.0
    %4846 = vmatpush1.msra.mxu0 0.0
    %4847 = vmatprep.subr.mxu0 0.0
    %4848 = vmatpush1.msra.mxu0 0.0
    %4849 = vmatprep.subr.mxu0 0.0
    %4850 = vmatpush1.msra.mxu0 0.0
    %4851 = vmatprep.subr.mxu0 0.0
    %4852 = vmatpush1.msra.mxu0 0.0
    %4853 = vmatprep.subr.mxu0 0.0
    %4854 = vmatpush1.msra.mxu0 0.0
    %4855 = vmatprep.subr.mxu0 0.0
    %4856 = vmatpush1.msra.mxu0 0.0
    %4857 = vmatprep.subr.mxu0 0.0
    %4858 = vmatpush1.msra.mxu0 0.0
    %4859 = vmatprep.subr.mxu0 0.0
    %4860 = vmatpush1.msra.mxu0 %v4379
    %4861 = vmatprep.subr.mxu0 0.0
    %4862 = vmatpush1.msra.mxu0 %v4372
    %4863 = vmatprep.subr.mxu0 0.0
    %4864 = vmatpush1.msra.mxu0 %v4371
    %4865 = vmatprep.subr.mxu0 0.0
    %4866 = vmatpush2.msra.mxu0 0.0
    %4867 = vmatprep.subr.mxu0 0.0
    %4868 = vmatpush2.msra.mxu0 0.0
    %4869 = vmatprep.subr.mxu0 0.0
    %4870 = vmatpush2.msra.mxu0 0.0
    %4871 = vmatprep.subr.mxu0 0.0
    %4872 = vmatpush2.msra.mxu0 0.0
    %4873 = vmatprep.subr.mxu0 0.0
    %4874 = vmatpush2.msra.mxu0 0.0
    %4875 = vmatprep.subr.mxu0 0.0
    %4876 = vmatpush2.msra.mxu0 0.0
    %4877 = vmatprep.subr.mxu0 0.0
    %4878 = vmatpush2.msra.mxu0 0.0
    %4879 = vmatprep.subr.mxu0 0.0
    %4880 = vmatpush2.msra.mxu0 0.0
    %4881 = vmatprep.subr.mxu0 0.0
    %4882 = vmatpush2.msra.mxu0 0.0
    %4883 = vmatprep.subr.mxu0 0.0
    %4884 = vmatpush2.msra.mxu0 0.0
    %4885 = vmatprep.subr.mxu0 0.0
    %4886 = vmatpush2.msra.mxu0 0.0
    %4887 = vmatprep.subr.mxu0 0.0
    %4888 = vmatpush2.msra.mxu0 0.0
    %4889 = vmatprep.subr.mxu0 0.0
    %4890 = vmatpush2.msra.mxu0 0.0
    %4891 = vmatprep.subr.mxu0 0.0
    %4892 = vmatpush2.msra.mxu0 0.0
    %4893 = vmatprep.subr.mxu0 0.0
    %4894 = vmatpush2.msra.mxu0 0.0
    %4895 = vmatprep.subr.mxu0 0.0
    %4896 = vmatpush2.msra.mxu0 0.0
    %4897 = vmatprep.mubr.f32.mxu0 0.0
    %4898 = vmatmul.mubr.f32.gmra.mxu0 %v4831
    %v4899 = vpop.f32.mrf.mxu0
    %v4900 = vadd.f32 0.0, %v4899
    %v4901 = vpop.f32.mrf.mxu0
    %4902 = vdwg.mxu0
    %s4903 = scalar_lea.vmem %s17, 4
    %v4904 = vld [vmem:[%s4903] sm:$0x3]
    %v4906 = vsel %vm180, %v4904, 0
    %4908 = vmatprep.subr.mxu0 0.0
    %4909 = vmatpush1.msra.mxu0 0.0
    %4910 = vmatprep.subr.mxu0 0.0
    %4911 = vmatpush1.msra.mxu0 0.0
    %4912 = vmatprep.subr.mxu0 0.0
    %4913 = vmatpush1.msra.mxu0 0.0
    %4914 = vmatprep.subr.mxu0 0.0
    %4915 = vmatpush1.msra.mxu0 0.0
    %4916 = vmatprep.subr.mxu0 0.0
    %4917 = vmatpush1.msra.mxu0 0.0
    %4918 = vmatprep.subr.mxu0 0.0
    %4919 = vmatpush1.msra.mxu0 0.0
    %4920 = vmatprep.subr.mxu0 0.0
    %4921 = vmatpush1.msra.mxu0 0.0
    %4922 = vmatprep.subr.mxu0 0.0
    %4923 = vmatpush1.msra.mxu0 0.0
    %4924 = vmatprep.subr.mxu0 0.0
    %4925 = vmatpush1.msra.mxu0 0.0
    %4926 = vmatprep.subr.mxu0 0.0
    %4927 = vmatpush1.msra.mxu0 0.0
    %4928 = vmatprep.subr.mxu0 0.0
    %4929 = vmatpush1.msra.mxu0 0.0
    %4930 = vmatprep.subr.mxu0 0.0
    %4931 = vmatpush1.msra.mxu0 0.0
    %4932 = vmatprep.subr.mxu0 0.0
    %4933 = vmatpush1.msra.mxu0 0.0
    %4934 = vmatprep.subr.mxu0 0.0
    %4935 = vmatpush1.msra.mxu0 %v4379
    %4936 = vmatprep.subr.mxu0 0.0
    %4937 = vmatpush1.msra.mxu0 %v4372
    %4938 = vmatprep.subr.mxu0 0.0
    %4939 = vmatpush1.msra.mxu0 %v4371
    %4940 = vmatprep.subr.mxu0 0.0
    %4941 = vmatpush2.msra.mxu0 0.0
    %4942 = vmatprep.subr.mxu0 0.0
    %4943 = vmatpush2.msra.mxu0 0.0
    %4944 = vmatprep.subr.mxu0 0.0
    %4945 = vmatpush2.msra.mxu0 0.0
    %4946 = vmatprep.subr.mxu0 0.0
    %4947 = vmatpush2.msra.mxu0 0.0
    %4948 = vmatprep.subr.mxu0 0.0
    %4949 = vmatpush2.msra.mxu0 0.0
    %4950 = vmatprep.subr.mxu0 0.0
    %4951 = vmatpush2.msra.mxu0 0.0
    %4952 = vmatprep.subr.mxu0 0.0
    %4953 = vmatpush2.msra.mxu0 0.0
    %4954 = vmatprep.subr.mxu0 0.0
    %4955 = vmatpush2.msra.mxu0 0.0
    %4956 = vmatprep.subr.mxu0 0.0
    %4957 = vmatpush2.msra.mxu0 0.0
    %4958 = vmatprep.subr.mxu0 0.0
    %4959 = vmatpush2.msra.mxu0 0.0
    %4960 = vmatprep.subr.mxu0 0.0
    %4961 = vmatpush2.msra.mxu0 0.0
    %4962 = vmatprep.subr.mxu0 0.0
    %4963 = vmatpush2.msra.mxu0 0.0
    %4964 = vmatprep.subr.mxu0 0.0
    %4965 = vmatpush2.msra.mxu0 0.0
    %4966 = vmatprep.subr.mxu0 0.0
    %4967 = vmatpush2.msra.mxu0 0.0
    %4968 = vmatprep.subr.mxu0 0.0
    %4969 = vmatpush2.msra.mxu0 0.0
    %4970 = vmatprep.subr.mxu0 0.0
    %4971 = vmatpush2.msra.mxu0 0.0
    %4972 = vmatprep.mubr.f32.mxu0 0.0
    %4973 = vmatmul.mubr.f32.gmra.mxu0 %v4906
    %v4974 = vpop.f32.mrf.mxu0
    %v4975 = vadd.f32 0.0, %v4974
    %v4976 = vpop.f32.mrf.mxu0
    %4977 = vdwg.mxu0
    %v4978 = vmax.f32 %v4900, %v4975
    %s4979 = scalar_lea.vmem %s18, 32
    %v4980 = vld [vmem:[%s4979] sm:$0xff]
    %v4981 = vld [vmem:[%s4979 + $0x8] sm:$0xff]
    %v4983 = vsel %vm278, %v4978, 0
    %4985 = vmatprep.subr.mxu0 0.0
    %4986 = vmatpush1.msra.mxu0 0.0
    %4987 = vmatprep.subr.mxu0 0.0
    %4988 = vmatpush1.msra.mxu0 0.0
    %4989 = vmatprep.subr.mxu0 0.0
    %4990 = vmatpush1.msra.mxu0 0.0
    %4991 = vmatprep.subr.mxu0 0.0
    %4992 = vmatpush1.msra.mxu0 0.0
    %4993 = vmatprep.subr.mxu0 0.0
    %4994 = vmatpush1.msra.mxu0 0.0
    %4995 = vmatprep.subr.mxu0 0.0
    %4996 = vmatpush1.msra.mxu0 0.0
    %4997 = vmatprep.subr.mxu0 0.0
    %4998 = vmatpush1.msra.mxu0 0.0
    %4999 = vmatprep.subr.mxu0 0.0
    %5000 = vmatpush1.msra.mxu0 0.0
    %5001 = vmatprep.subr.mxu0 0.0
    %5002 = vmatpush1.msra.mxu0 0.0
    %5003 = vmatprep.subr.mxu0 0.0
    %5004 = vmatpush1.msra.mxu0 0.0
    %5005 = vmatprep.subr.mxu0 0.0
    %5006 = vmatpush1.msra.mxu0 0.0
    %5007 = vmatprep.subr.mxu0 0.0
    %5008 = vmatpush1.msra.mxu0 0.0
    %5009 = vmatprep.subr.mxu0 0.0
    %5010 = vmatpush1.msra.mxu0 0.0
    %5011 = vmatprep.subr.mxu0 0.0
    %5012 = vmatpush1.msra.mxu0 0.0
    %5013 = vmatprep.subr.mxu0 0.0
    %5014 = vmatpush1.msra.mxu0 %v4981
    %5015 = vmatprep.subr.mxu0 0.0
    %5016 = vmatpush1.msra.mxu0 %v4980
    %5017 = vmatprep.subr.mxu0 0.0
    %5018 = vmatpush2.msra.mxu0 0.0
    %5019 = vmatprep.subr.mxu0 0.0
    %5020 = vmatpush2.msra.mxu0 0.0
    %5021 = vmatprep.subr.mxu0 0.0
    %5022 = vmatpush2.msra.mxu0 0.0
    %5023 = vmatprep.subr.mxu0 0.0
    %5024 = vmatpush2.msra.mxu0 0.0
    %5025 = vmatprep.subr.mxu0 0.0
    %5026 = vmatpush2.msra.mxu0 0.0
    %5027 = vmatprep.subr.mxu0 0.0
    %5028 = vmatpush2.msra.mxu0 0.0
    %5029 = vmatprep.subr.mxu0 0.0
    %5030 = vmatpush2.msra.mxu0 0.0
    %5031 = vmatprep.subr.mxu0 0.0
    %5032 = vmatpush2.msra.mxu0 0.0
    %5033 = vmatprep.subr.mxu0 0.0
    %5034 = vmatpush2.msra.mxu0 0.0
    %5035 = vmatprep.subr.mxu0 0.0
    %5036 = vmatpush2.msra.mxu0 0.0
    %5037 = vmatprep.subr.mxu0 0.0
    %5038 = vmatpush2.msra.mxu0 0.0
    %5039 = vmatprep.subr.mxu0 0.0
    %5040 = vmatpush2.msra.mxu0 0.0
    %5041 = vmatprep.subr.mxu0 0.0
    %5042 = vmatpush2.msra.mxu0 0.0
    %5043 = vmatprep.subr.mxu0 0.0
    %5044 = vmatpush2.msra.mxu0 0.0
    %5045 = vmatprep.subr.mxu0 0.0
    %5046 = vmatpush2.msra.mxu0 0.0
    %5047 = vmatprep.subr.mxu0 0.0
    %5048 = vmatpush2.msra.mxu0 0.0
    %5049 = vmatprep.mubr.f32.mxu0 0.0
    %5050 = vmatmul.mubr.f32.gmra.mxu0 %v4983
    %v5051 = vpop.f32.mrf.mxu0
    %v5052 = vadd.f32 0.0, %v5051
    %v5053 = vpop.f32.mrf.mxu0
    %5054 = vdwg.mxu0
    %v5055 = vadd.f32 %v4825, %v5052
    %s5056 = scalar_lea.vmem %s16, 6
    %v5057 = vld [vmem:[%s5056] sm:$0x3]
    %v5059 = vsel %vm180, %v5057, 0
    %5061 = vmatprep.subr.mxu0 0.0
    %5062 = vmatpush1.msra.mxu0 0.0
    %5063 = vmatprep.subr.mxu0 0.0
    %5064 = vmatpush1.msra.mxu0 0.0
    %5065 = vmatprep.subr.mxu0 0.0
    %5066 = vmatpush1.msra.mxu0 0.0
    %5067 = vmatprep.subr.mxu0 0.0
    %5068 = vmatpush1.msra.mxu0 0.0
    %5069 = vmatprep.subr.mxu0 0.0
    %5070 = vmatpush1.msra.mxu0 0.0
    %5071 = vmatprep.subr.mxu0 0.0
    %5072 = vmatpush1.msra.mxu0 0.0
    %5073 = vmatprep.subr.mxu0 0.0
    %5074 = vmatpush1.msra.mxu0 0.0
    %5075 = vmatprep.subr.mxu0 0.0
    %5076 = vmatpush1.msra.mxu0 0.0
    %5077 = vmatprep.subr.mxu0 0.0
    %5078 = vmatpush1.msra.mxu0 0.0
    %5079 = vmatprep.subr.mxu0 0.0
    %5080 = vmatpush1.msra.mxu0 0.0
    %5081 = vmatprep.subr.mxu0 0.0
    %5082 = vmatpush1.msra.mxu0 0.0
    %5083 = vmatprep.subr.mxu0 0.0
    %5084 = vmatpush1.msra.mxu0 0.0
    %5085 = vmatprep.subr.mxu0 0.0
    %5086 = vmatpush1.msra.mxu0 0.0
    %5087 = vmatprep.subr.mxu0 0.0
    %5088 = vmatpush1.msra.mxu0 %v4379
    %5089 = vmatprep.subr.mxu0 0.0
    %5090 = vmatpush1.msra.mxu0 %v4372
    %5091 = vmatprep.subr.mxu0 0.0
    %5092 = vmatpush1.msra.mxu0 %v4371
    %5093 = vmatprep.subr.mxu0 0.0
    %5094 = vmatpush2.msra.mxu0 0.0
    %5095 = vmatprep.subr.mxu0 0.0
    %5096 = vmatpush2.msra.mxu0 0.0
    %5097 = vmatprep.subr.mxu0 0.0
    %5098 = vmatpush2.msra.mxu0 0.0
    %5099 = vmatprep.subr.mxu0 0.0
    %5100 = vmatpush2.msra.mxu0 0.0
    %5101 = vmatprep.subr.mxu0 0.0
    %5102 = vmatpush2.msra.mxu0 0.0
    %5103 = vmatprep.subr.mxu0 0.0
    %5104 = vmatpush2.msra.mxu0 0.0
    %5105 = vmatprep.subr.mxu0 0.0
    %5106 = vmatpush2.msra.mxu0 0.0
    %5107 = vmatprep.subr.mxu0 0.0
    %5108 = vmatpush2.msra.mxu0 0.0
    %5109 = vmatprep.subr.mxu0 0.0
    %5110 = vmatpush2.msra.mxu0 0.0
    %5111 = vmatprep.subr.mxu0 0.0
    %5112 = vmatpush2.msra.mxu0 0.0
    %5113 = vmatprep.subr.mxu0 0.0
    %5114 = vmatpush2.msra.mxu0 0.0
    %5115 = vmatprep.subr.mxu0 0.0
    %5116 = vmatpush2.msra.mxu0 0.0
    %5117 = vmatprep.subr.mxu0 0.0
    %5118 = vmatpush2.msra.mxu0 0.0
    %5119 = vmatprep.subr.mxu0 0.0
    %5120 = vmatpush2.msra.mxu0 0.0
    %5121 = vmatprep.subr.mxu0 0.0
    %5122 = vmatpush2.msra.mxu0 0.0
    %5123 = vmatprep.subr.mxu0 0.0
    %5124 = vmatpush2.msra.mxu0 0.0
    %5125 = vmatprep.mubr.f32.mxu0 0.0
    %5126 = vmatmul.mubr.f32.gmra.mxu0 %v5059
    %v5127 = vpop.f32.mrf.mxu0
    %v5128 = vadd.f32 0.0, %v5127
    %v5129 = vpop.f32.mrf.mxu0
    %5130 = vdwg.mxu0
    %s5131 = scalar_lea.vmem %s17, 6
    %v5132 = vld [vmem:[%s5131] sm:$0x3]
    %v5134 = vsel %vm180, %v5132, 0
    %5136 = vmatprep.subr.mxu0 0.0
    %5137 = vmatpush1.msra.mxu0 0.0
    %5138 = vmatprep.subr.mxu0 0.0
    %5139 = vmatpush1.msra.mxu0 0.0
    %5140 = vmatprep.subr.mxu0 0.0
    %5141 = vmatpush1.msra.mxu0 0.0
    %5142 = vmatprep.subr.mxu0 0.0
    %5143 = vmatpush1.msra.mxu0 0.0
    %5144 = vmatprep.subr.mxu0 0.0
    %5145 = vmatpush1.msra.mxu0 0.0
    %5146 = vmatprep.subr.mxu0 0.0
    %5147 = vmatpush1.msra.mxu0 0.0
    %5148 = vmatprep.subr.mxu0 0.0
    %5149 = vmatpush1.msra.mxu0 0.0
    %5150 = vmatprep.subr.mxu0 0.0
    %5151 = vmatpush1.msra.mxu0 0.0
    %5152 = vmatprep.subr.mxu0 0.0
    %5153 = vmatpush1.msra.mxu0 0.0
    %5154 = vmatprep.subr.mxu0 0.0
    %5155 = vmatpush1.msra.mxu0 0.0
    %5156 = vmatprep.subr.mxu0 0.0
    %5157 = vmatpush1.msra.mxu0 0.0
    %5158 = vmatprep.subr.mxu0 0.0
    %5159 = vmatpush1.msra.mxu0 0.0
    %5160 = vmatprep.subr.mxu0 0.0
    %5161 = vmatpush1.msra.mxu0 0.0
    %5162 = vmatprep.subr.mxu0 0.0
    %5163 = vmatpush1.msra.mxu0 %v4379
    %5164 = vmatprep.subr.mxu0 0.0
    %5165 = vmatpush1.msra.mxu0 %v4372
    %5166 = vmatprep.subr.mxu0 0.0
    %5167 = vmatpush1.msra.mxu0 %v4371
    %5168 = vmatprep.subr.mxu0 0.0
    %5169 = vmatpush2.msra.mxu0 0.0
    %5170 = vmatprep.subr.mxu0 0.0
    %5171 = vmatpush2.msra.mxu0 0.0
    %5172 = vmatprep.subr.mxu0 0.0
    %5173 = vmatpush2.msra.mxu0 0.0
    %5174 = vmatprep.subr.mxu0 0.0
    %5175 = vmatpush2.msra.mxu0 0.0
    %5176 = vmatprep.subr.mxu0 0.0
    %5177 = vmatpush2.msra.mxu0 0.0
    %5178 = vmatprep.subr.mxu0 0.0
    %5179 = vmatpush2.msra.mxu0 0.0
    %5180 = vmatprep.subr.mxu0 0.0
    %5181 = vmatpush2.msra.mxu0 0.0
    %5182 = vmatprep.subr.mxu0 0.0
    %5183 = vmatpush2.msra.mxu0 0.0
    %5184 = vmatprep.subr.mxu0 0.0
    %5185 = vmatpush2.msra.mxu0 0.0
    %5186 = vmatprep.subr.mxu0 0.0
    %5187 = vmatpush2.msra.mxu0 0.0
    %5188 = vmatprep.subr.mxu0 0.0
    %5189 = vmatpush2.msra.mxu0 0.0
    %5190 = vmatprep.subr.mxu0 0.0
    %5191 = vmatpush2.msra.mxu0 0.0
    %5192 = vmatprep.subr.mxu0 0.0
    %5193 = vmatpush2.msra.mxu0 0.0
    %5194 = vmatprep.subr.mxu0 0.0
    %5195 = vmatpush2.msra.mxu0 0.0
    %5196 = vmatprep.subr.mxu0 0.0
    %5197 = vmatpush2.msra.mxu0 0.0
    %5198 = vmatprep.subr.mxu0 0.0
    %5199 = vmatpush2.msra.mxu0 0.0
    %5200 = vmatprep.mubr.f32.mxu0 0.0
    %5201 = vmatmul.mubr.f32.gmra.mxu0 %v5134
    %v5202 = vpop.f32.mrf.mxu0
    %v5203 = vadd.f32 0.0, %v5202
    %v5204 = vpop.f32.mrf.mxu0
    %5205 = vdwg.mxu0
    %v5206 = vmax.f32 %v5128, %v5203
    %s5207 = scalar_lea.vmem %s18, 48
    %v5208 = vld [vmem:[%s5207] sm:$0xff]
    %v5209 = vld [vmem:[%s5207 + $0x8] sm:$0xff]
    %v5211 = vsel %vm278, %v5206, 0
    %5213 = vmatprep.subr.mxu0 0.0
    %5214 = vmatpush1.msra.mxu0 0.0
    %5215 = vmatprep.subr.mxu0 0.0
    %5216 = vmatpush1.msra.mxu0 0.0
    %5217 = vmatprep.subr.mxu0 0.0
    %5218 = vmatpush1.msra.mxu0 0.0
    %5219 = vmatprep.subr.mxu0 0.0
    %5220 = vmatpush1.msra.mxu0 0.0
    %5221 = vmatprep.subr.mxu0 0.0
    %5222 = vmatpush1.msra.mxu0 0.0
    %5223 = vmatprep.subr.mxu0 0.0
    %5224 = vmatpush1.msra.mxu0 0.0
    %5225 = vmatprep.subr.mxu0 0.0
    %5226 = vmatpush1.msra.mxu0 0.0
    %5227 = vmatprep.subr.mxu0 0.0
    %5228 = vmatpush1.msra.mxu0 0.0
    %5229 = vmatprep.subr.mxu0 0.0
    %5230 = vmatpush1.msra.mxu0 0.0
    %5231 = vmatprep.subr.mxu0 0.0
    %5232 = vmatpush1.msra.mxu0 0.0
    %5233 = vmatprep.subr.mxu0 0.0
    %5234 = vmatpush1.msra.mxu0 0.0
    %5235 = vmatprep.subr.mxu0 0.0
    %5236 = vmatpush1.msra.mxu0 0.0
    %5237 = vmatprep.subr.mxu0 0.0
    %5238 = vmatpush1.msra.mxu0 0.0
    %5239 = vmatprep.subr.mxu0 0.0
    %5240 = vmatpush1.msra.mxu0 0.0
    %5241 = vmatprep.subr.mxu0 0.0
    %5242 = vmatpush1.msra.mxu0 %v5209
    %5243 = vmatprep.subr.mxu0 0.0
    %5244 = vmatpush1.msra.mxu0 %v5208
    %5245 = vmatprep.subr.mxu0 0.0
    %5246 = vmatpush2.msra.mxu0 0.0
    %5247 = vmatprep.subr.mxu0 0.0
    %5248 = vmatpush2.msra.mxu0 0.0
    %5249 = vmatprep.subr.mxu0 0.0
    %5250 = vmatpush2.msra.mxu0 0.0
    %5251 = vmatprep.subr.mxu0 0.0
    %5252 = vmatpush2.msra.mxu0 0.0
    %5253 = vmatprep.subr.mxu0 0.0
    %5254 = vmatpush2.msra.mxu0 0.0
    %5255 = vmatprep.subr.mxu0 0.0
    %5256 = vmatpush2.msra.mxu0 0.0
    %5257 = vmatprep.subr.mxu0 0.0
    %5258 = vmatpush2.msra.mxu0 0.0
    %5259 = vmatprep.subr.mxu0 0.0
    %5260 = vmatpush2.msra.mxu0 0.0
    %5261 = vmatprep.subr.mxu0 0.0
    %5262 = vmatpush2.msra.mxu0 0.0
    %5263 = vmatprep.subr.mxu0 0.0
    %5264 = vmatpush2.msra.mxu0 0.0
    %5265 = vmatprep.subr.mxu0 0.0
    %5266 = vmatpush2.msra.mxu0 0.0
    %5267 = vmatprep.subr.mxu0 0.0
    %5268 = vmatpush2.msra.mxu0 0.0
    %5269 = vmatprep.subr.mxu0 0.0
    %5270 = vmatpush2.msra.mxu0 0.0
    %5271 = vmatprep.subr.mxu0 0.0
    %5272 = vmatpush2.msra.mxu0 0.0
    %5273 = vmatprep.subr.mxu0 0.0
    %5274 = vmatpush2.msra.mxu0 0.0
    %5275 = vmatprep.subr.mxu0 0.0
    %5276 = vmatpush2.msra.mxu0 0.0
    %5277 = vmatprep.mubr.f32.mxu0 0.0
    %5278 = vmatmul.mubr.f32.gmra.mxu0 %v5211
    %v5279 = vpop.f32.mrf.mxu0
    %v5280 = vadd.f32 0.0, %v5279
    %v5281 = vpop.f32.mrf.mxu0
    %5282 = vdwg.mxu0
    %v5283 = vadd.f32 %v5055, %v5280
    %s5284 = scalar_lea.vmem %s16, 8
    %v5285 = vld [vmem:[%s5284] sm:$0x3]
    %v5287 = vsel %vm180, %v5285, 0
    %5289 = vmatprep.subr.mxu0 0.0
    %5290 = vmatpush1.msra.mxu0 0.0
    %5291 = vmatprep.subr.mxu0 0.0
    %5292 = vmatpush1.msra.mxu0 0.0
    %5293 = vmatprep.subr.mxu0 0.0
    %5294 = vmatpush1.msra.mxu0 0.0
    %5295 = vmatprep.subr.mxu0 0.0
    %5296 = vmatpush1.msra.mxu0 0.0
    %5297 = vmatprep.subr.mxu0 0.0
    %5298 = vmatpush1.msra.mxu0 0.0
    %5299 = vmatprep.subr.mxu0 0.0
    %5300 = vmatpush1.msra.mxu0 0.0
    %5301 = vmatprep.subr.mxu0 0.0
    %5302 = vmatpush1.msra.mxu0 0.0
    %5303 = vmatprep.subr.mxu0 0.0
    %5304 = vmatpush1.msra.mxu0 0.0
    %5305 = vmatprep.subr.mxu0 0.0
    %5306 = vmatpush1.msra.mxu0 0.0
    %5307 = vmatprep.subr.mxu0 0.0
    %5308 = vmatpush1.msra.mxu0 0.0
    %5309 = vmatprep.subr.mxu0 0.0
    %5310 = vmatpush1.msra.mxu0 0.0
    %5311 = vmatprep.subr.mxu0 0.0
    %5312 = vmatpush1.msra.mxu0 0.0
    %5313 = vmatprep.subr.mxu0 0.0
    %5314 = vmatpush1.msra.mxu0 0.0
    %5315 = vmatprep.subr.mxu0 0.0
    %5316 = vmatpush1.msra.mxu0 %v4379
    %5317 = vmatprep.subr.mxu0 0.0
    %5318 = vmatpush1.msra.mxu0 %v4372
    %5319 = vmatprep.subr.mxu0 0.0
    %5320 = vmatpush1.msra.mxu0 %v4371
    %5321 = vmatprep.subr.mxu0 0.0
    %5322 = vmatpush2.msra.mxu0 0.0
    %5323 = vmatprep.subr.mxu0 0.0
    %5324 = vmatpush2.msra.mxu0 0.0
    %5325 = vmatprep.subr.mxu0 0.0
    %5326 = vmatpush2.msra.mxu0 0.0
    %5327 = vmatprep.subr.mxu0 0.0
    %5328 = vmatpush2.msra.mxu0 0.0
    %5329 = vmatprep.subr.mxu0 0.0
    %5330 = vmatpush2.msra.mxu0 0.0
    %5331 = vmatprep.subr.mxu0 0.0
    %5332 = vmatpush2.msra.mxu0 0.0
    %5333 = vmatprep.subr.mxu0 0.0
    %5334 = vmatpush2.msra.mxu0 0.0
    %5335 = vmatprep.subr.mxu0 0.0
    %5336 = vmatpush2.msra.mxu0 0.0
    %5337 = vmatprep.subr.mxu0 0.0
    %5338 = vmatpush2.msra.mxu0 0.0
    %5339 = vmatprep.subr.mxu0 0.0
    %5340 = vmatpush2.msra.mxu0 0.0
    %5341 = vmatprep.subr.mxu0 0.0
    %5342 = vmatpush2.msra.mxu0 0.0
    %5343 = vmatprep.subr.mxu0 0.0
    %5344 = vmatpush2.msra.mxu0 0.0
    %5345 = vmatprep.subr.mxu0 0.0
    %5346 = vmatpush2.msra.mxu0 0.0
    %5347 = vmatprep.subr.mxu0 0.0
    %5348 = vmatpush2.msra.mxu0 0.0
    %5349 = vmatprep.subr.mxu0 0.0
    %5350 = vmatpush2.msra.mxu0 0.0
    %5351 = vmatprep.subr.mxu0 0.0
    %5352 = vmatpush2.msra.mxu0 0.0
    %5353 = vmatprep.mubr.f32.mxu0 0.0
    %5354 = vmatmul.mubr.f32.gmra.mxu0 %v5287
    %v5355 = vpop.f32.mrf.mxu0
    %v5356 = vadd.f32 0.0, %v5355
    %v5357 = vpop.f32.mrf.mxu0
    %5358 = vdwg.mxu0
    %s5359 = scalar_lea.vmem %s17, 8
    %v5360 = vld [vmem:[%s5359] sm:$0x3]
    %v5362 = vsel %vm180, %v5360, 0
    %5364 = vmatprep.subr.mxu0 0.0
    %5365 = vmatpush1.msra.mxu0 0.0
    %5366 = vmatprep.subr.mxu0 0.0
    %5367 = vmatpush1.msra.mxu0 0.0
    %5368 = vmatprep.subr.mxu0 0.0
    %5369 = vmatpush1.msra.mxu0 0.0
    %5370 = vmatprep.subr.mxu0 0.0
    %5371 = vmatpush1.msra.mxu0 0.0
    %5372 = vmatprep.subr.mxu0 0.0
    %5373 = vmatpush1.msra.mxu0 0.0
    %5374 = vmatprep.subr.mxu0 0.0
    %5375 = vmatpush1.msra.mxu0 0.0
    %5376 = vmatprep.subr.mxu0 0.0
    %5377 = vmatpush1.msra.mxu0 0.0
    %5378 = vmatprep.subr.mxu0 0.0
    %5379 = vmatpush1.msra.mxu0 0.0
    %5380 = vmatprep.subr.mxu0 0.0
    %5381 = vmatpush1.msra.mxu0 0.0
    %5382 = vmatprep.subr.mxu0 0.0
    %5383 = vmatpush1.msra.mxu0 0.0
    %5384 = vmatprep.subr.mxu0 0.0
    %5385 = vmatpush1.msra.mxu0 0.0
    %5386 = vmatprep.subr.mxu0 0.0
    %5387 = vmatpush1.msra.mxu0 0.0
    %5388 = vmatprep.subr.mxu0 0.0
    %5389 = vmatpush1.msra.mxu0 0.0
    %5390 = vmatprep.subr.mxu0 0.0
    %5391 = vmatpush1.msra.mxu0 %v4379
    %5392 = vmatprep.subr.mxu0 0.0
    %5393 = vmatpush1.msra.mxu0 %v4372
    %5394 = vmatprep.subr.mxu0 0.0
    %5395 = vmatpush1.msra.mxu0 %v4371
    %5396 = vmatprep.subr.mxu0 0.0
    %5397 = vmatpush2.msra.mxu0 0.0
    %5398 = vmatprep.subr.mxu0 0.0
    %5399 = vmatpush2.msra.mxu0 0.0
    %5400 = vmatprep.subr.mxu0 0.0
    %5401 = vmatpush2.msra.mxu0 0.0
    %5402 = vmatprep.subr.mxu0 0.0
    %5403 = vmatpush2.msra.mxu0 0.0
    %5404 = vmatprep.subr.mxu0 0.0
    %5405 = vmatpush2.msra.mxu0 0.0
    %5406 = vmatprep.subr.mxu0 0.0
    %5407 = vmatpush2.msra.mxu0 0.0
    %5408 = vmatprep.subr.mxu0 0.0
    %5409 = vmatpush2.msra.mxu0 0.0
    %5410 = vmatprep.subr.mxu0 0.0
    %5411 = vmatpush2.msra.mxu0 0.0
    %5412 = vmatprep.subr.mxu0 0.0
    %5413 = vmatpush2.msra.mxu0 0.0
    %5414 = vmatprep.subr.mxu0 0.0
    %5415 = vmatpush2.msra.mxu0 0.0
    %5416 = vmatprep.subr.mxu0 0.0
    %5417 = vmatpush2.msra.mxu0 0.0
    %5418 = vmatprep.subr.mxu0 0.0
    %5419 = vmatpush2.msra.mxu0 0.0
    %5420 = vmatprep.subr.mxu0 0.0
    %5421 = vmatpush2.msra.mxu0 0.0
    %5422 = vmatprep.subr.mxu0 0.0
    %5423 = vmatpush2.msra.mxu0 0.0
    %5424 = vmatprep.subr.mxu0 0.0
    %5425 = vmatpush2.msra.mxu0 0.0
    %5426 = vmatprep.subr.mxu0 0.0
    %5427 = vmatpush2.msra.mxu0 0.0
    %5428 = vmatprep.mubr.f32.mxu0 0.0
    %5429 = vmatmul.mubr.f32.gmra.mxu0 %v5362
    %v5430 = vpop.f32.mrf.mxu0
    %v5431 = vadd.f32 0.0, %v5430
    %v5432 = vpop.f32.mrf.mxu0
    %5433 = vdwg.mxu0
    %v5434 = vmax.f32 %v5356, %v5431
    %s5435 = scalar_lea.vmem %s18, 64
    %v5436 = vld [vmem:[%s5435] sm:$0xff]
    %v5437 = vld [vmem:[%s5435 + $0x8] sm:$0xff]
    %v5439 = vsel %vm278, %v5434, 0
    %5441 = vmatprep.subr.mxu0 0.0
    %5442 = vmatpush1.msra.mxu0 0.0
    %5443 = vmatprep.subr.mxu0 0.0
    %5444 = vmatpush1.msra.mxu0 0.0
    %5445 = vmatprep.subr.mxu0 0.0
    %5446 = vmatpush1.msra.mxu0 0.0
    %5447 = vmatprep.subr.mxu0 0.0
    %5448 = vmatpush1.msra.mxu0 0.0
    %5449 = vmatprep.subr.mxu0 0.0
    %5450 = vmatpush1.msra.mxu0 0.0
    %5451 = vmatprep.subr.mxu0 0.0
    %5452 = vmatpush1.msra.mxu0 0.0
    %5453 = vmatprep.subr.mxu0 0.0
    %5454 = vmatpush1.msra.mxu0 0.0
    %5455 = vmatprep.subr.mxu0 0.0
    %5456 = vmatpush1.msra.mxu0 0.0
    %5457 = vmatprep.subr.mxu0 0.0
    %5458 = vmatpush1.msra.mxu0 0.0
    %5459 = vmatprep.subr.mxu0 0.0
    %5460 = vmatpush1.msra.mxu0 0.0
    %5461 = vmatprep.subr.mxu0 0.0
    %5462 = vmatpush1.msra.mxu0 0.0
    %5463 = vmatprep.subr.mxu0 0.0
    %5464 = vmatpush1.msra.mxu0 0.0
    %5465 = vmatprep.subr.mxu0 0.0
    %5466 = vmatpush1.msra.mxu0 0.0
    %5467 = vmatprep.subr.mxu0 0.0
    %5468 = vmatpush1.msra.mxu0 0.0
    %5469 = vmatprep.subr.mxu0 0.0
    %5470 = vmatpush1.msra.mxu0 %v5437
    %5471 = vmatprep.subr.mxu0 0.0
    %5472 = vmatpush1.msra.mxu0 %v5436
    %5473 = vmatprep.subr.mxu0 0.0
    %5474 = vmatpush2.msra.mxu0 0.0
    %5475 = vmatprep.subr.mxu0 0.0
    %5476 = vmatpush2.msra.mxu0 0.0
    %5477 = vmatprep.subr.mxu0 0.0
    %5478 = vmatpush2.msra.mxu0 0.0
    %5479 = vmatprep.subr.mxu0 0.0
    %5480 = vmatpush2.msra.mxu0 0.0
    %5481 = vmatprep.subr.mxu0 0.0
    %5482 = vmatpush2.msra.mxu0 0.0
    %5483 = vmatprep.subr.mxu0 0.0
    %5484 = vmatpush2.msra.mxu0 0.0
    %5485 = vmatprep.subr.mxu0 0.0
    %5486 = vmatpush2.msra.mxu0 0.0
    %5487 = vmatprep.subr.mxu0 0.0
    %5488 = vmatpush2.msra.mxu0 0.0
    %5489 = vmatprep.subr.mxu0 0.0
    %5490 = vmatpush2.msra.mxu0 0.0
    %5491 = vmatprep.subr.mxu0 0.0
    %5492 = vmatpush2.msra.mxu0 0.0
    %5493 = vmatprep.subr.mxu0 0.0
    %5494 = vmatpush2.msra.mxu0 0.0
    %5495 = vmatprep.subr.mxu0 0.0
    %5496 = vmatpush2.msra.mxu0 0.0
    %5497 = vmatprep.subr.mxu0 0.0
    %5498 = vmatpush2.msra.mxu0 0.0
    %5499 = vmatprep.subr.mxu0 0.0
    %5500 = vmatpush2.msra.mxu0 0.0
    %5501 = vmatprep.subr.mxu0 0.0
    %5502 = vmatpush2.msra.mxu0 0.0
    %5503 = vmatprep.subr.mxu0 0.0
    %5504 = vmatpush2.msra.mxu0 0.0
    %5505 = vmatprep.mubr.f32.mxu0 0.0
    %5506 = vmatmul.mubr.f32.gmra.mxu0 %v5439
    %v5507 = vpop.f32.mrf.mxu0
    %v5508 = vadd.f32 0.0, %v5507
    %v5509 = vpop.f32.mrf.mxu0
    %5510 = vdwg.mxu0
    %v5511 = vadd.f32 %v5283, %v5508
    %v5512 = vld [vmem:[%s19] sm:$0x1]
    %v5514 = vlaneseq
    %v5515 = vshrl.u32 %v5514, 7
    %v5516 = vsub.s32 0, %v5515
    %v5517 = vrot.slane %v5512, %v5516
    %v5519 = vadd.f32 %v5511, %v5517
    %v5520 = vmax.f32 %v5519, 0.0
    %v5521 = vld [vmem:[%s20] sm:$0xff]
    %v5522 = vld [vmem:[%s20 + $0x8] sm:$0xff]
    %v5523 = vld [vmem:[%s20 + $0x10] sm:$0xff]
    %v5524 = vld [vmem:[%s20 + $0x18] sm:$0xff]
    %v5525 = vld [vmem:[%s21] sm:$0x1]
    %v5527 = vlaneseq
    %v5528 = vshrl.u32 %v5527, 7
    %v5529 = vsub.s32 0, %v5528
    %v5530 = vrot.slane %v5525, %v5529
    %v5533 = vsel %vm642, %v5520, 0
    %5535 = vmatprep.subr.mxu0 0.0
    %5536 = vmatpush1.msra.mxu0 0.0
    %5537 = vmatprep.subr.mxu0 0.0
    %5538 = vmatpush1.msra.mxu0 0.0
    %5539 = vmatprep.subr.mxu0 0.0
    %5540 = vmatpush1.msra.mxu0 0.0
    %5541 = vmatprep.subr.mxu0 0.0
    %5542 = vmatpush1.msra.mxu0 0.0
    %5543 = vmatprep.subr.mxu0 0.0
    %5544 = vmatpush1.msra.mxu0 0.0
    %5545 = vmatprep.subr.mxu0 0.0
    %5546 = vmatpush1.msra.mxu0 0.0
    %5547 = vmatprep.subr.mxu0 0.0
    %5548 = vmatpush1.msra.mxu0 0.0
    %5549 = vmatprep.subr.mxu0 0.0
    %5550 = vmatpush1.msra.mxu0 0.0
    %5551 = vmatprep.subr.mxu0 0.0
    %5552 = vmatpush1.msra.mxu0 0.0
    %5553 = vmatprep.subr.mxu0 0.0
    %5554 = vmatpush1.msra.mxu0 0.0
    %5555 = vmatprep.subr.mxu0 0.0
    %5556 = vmatpush1.msra.mxu0 0.0
    %5557 = vmatprep.subr.mxu0 0.0
    %5558 = vmatpush1.msra.mxu0 0.0
    %5559 = vmatprep.subr.mxu0 0.0
    %5560 = vmatpush1.msra.mxu0 %v5524
    %5561 = vmatprep.subr.mxu0 0.0
    %5562 = vmatpush1.msra.mxu0 %v5523
    %5563 = vmatprep.subr.mxu0 0.0
    %5564 = vmatpush1.msra.mxu0 %v5522
    %5565 = vmatprep.subr.mxu0 0.0
    %5566 = vmatpush1.msra.mxu0 %v5521
    %5567 = vmatprep.subr.mxu0 0.0
    %5568 = vmatpush2.msra.mxu0 0.0
    %5569 = vmatprep.subr.mxu0 0.0
    %5570 = vmatpush2.msra.mxu0 0.0
    %5571 = vmatprep.subr.mxu0 0.0
    %5572 = vmatpush2.msra.mxu0 0.0
    %5573 = vmatprep.subr.mxu0 0.0
    %5574 = vmatpush2.msra.mxu0 0.0
    %5575 = vmatprep.subr.mxu0 0.0
    %5576 = vmatpush2.msra.mxu0 0.0
    %5577 = vmatprep.subr.mxu0 0.0
    %5578 = vmatpush2.msra.mxu0 0.0
    %5579 = vmatprep.subr.mxu0 0.0
    %5580 = vmatpush2.msra.mxu0 0.0
    %5581 = vmatprep.subr.mxu0 0.0
    %5582 = vmatpush2.msra.mxu0 0.0
    %5583 = vmatprep.subr.mxu0 0.0
    %5584 = vmatpush2.msra.mxu0 0.0
    %5585 = vmatprep.subr.mxu0 0.0
    %5586 = vmatpush2.msra.mxu0 0.0
    %5587 = vmatprep.subr.mxu0 0.0
    %5588 = vmatpush2.msra.mxu0 0.0
    %5589 = vmatprep.subr.mxu0 0.0
    %5590 = vmatpush2.msra.mxu0 0.0
    %5591 = vmatprep.subr.mxu0 0.0
    %5592 = vmatpush2.msra.mxu0 0.0
    %5593 = vmatprep.subr.mxu0 0.0
    %5594 = vmatpush2.msra.mxu0 0.0
    %5595 = vmatprep.subr.mxu0 0.0
    %5596 = vmatpush2.msra.mxu0 0.0
    %5597 = vmatprep.subr.mxu0 0.0
    %5598 = vmatpush2.msra.mxu0 0.0
    %5599 = vmatprep.mubr.f32.mxu0 0.0
    %5600 = vmatmul.mubr.f32.gmra.mxu0 %v5533
    %v5601 = vpop.f32.mrf.mxu0
    %v5602 = vadd.f32 %v5530, %v5601
    %v5603 = vpop.f32.mrf.mxu0
    %5604 = vdwg.mxu0
    %v5605 = vmax.f32 %v5602, 0.0
    %vm5606 = vcmask 254976
    %5607 = vst.msk [vmem:[#allocation2] sm:$0x3] %vm5606, %v5605
    // Predicated region
    $region90: #{tpu_custom_call.1} parent=1 // pred_check
      _
    $region91: #{tpu_custom_call.1} parent=1 // pred_check_branch
      %5609 = sbr.rel (0) target = $region93
    $region92: #{tpu_custom_call.1} parent=1 // pred_region
      %s5611 = ssub.s32 32, 32
      %5612 = vsyncadd [#allocation3], %s5611
      %s5614 = sshll.u32 [#allocation2], 4
      %s5615 = int_to_ptr.vmem [resolvable:$true] %s5614
      %5617 = dma.vmem_to_hbm [thread:$0]  %s5615, 32, %s22, [#allocation3]
    $region93: #{tpu_custom_call.1} parent=1 // pred_fallthru
      _
    // Predicated region
    $region94: #{tpu_custom_call.1} parent=1 // pred_check
      _
    $region95: #{tpu_custom_call.1} parent=1 // pred_check_branch
      %5619 = sbr.rel (0) target = $region97
    $region96: #{tpu_custom_call.1} parent=1 // pred_region
      %5620 = dma.done [#allocation3], 32
    $region97: #{tpu_custom_call.1} parent=1 // pred_fallthru
      _
    %5621 = vsyncpa [#allocation3], 1

</llo_original>
